<compile_context>
chip_gen: v7x
topology: tpu7x:2x2x1
jax: 0.10.0
libtpu: 0.0.40
codegen_flags: <defaults>
</compile_context>

<pallas_src>
import functools

import jax
import jax.numpy as jnp
from jax.experimental import pallas as pl
from jax.experimental.pallas import tpu as pltpu

F32 = jnp.float32
BF16 = jnp.bfloat16


# ------------------------- single fused Pallas kernel ------------------------

def _fused_forward_kernel(
        emb_ref, maskneg_ref,
        emb_g_ref, emb_b_ref,
        wqkv_ref, bqkv_ref,
        wo_ref, bo_ref,
        attn_g_ref, attn_b_ref,
        wff1_ref, bff1_ref,
        wff2_ref, bff2_ref,
        ff_g_ref, ff_b_ref,
        cls_w_ref, cls_b_ref,
        wih_ref, whh_ref, blstm_ref,
        w1_ref, b1_ref, w2_ref, b2_ref,
        rank_ref, qpp_ref,
        *, nh):
    emb = emb_ref[...]                                   # [D, S, H]  f32
    D, S, H = emb.shape
    hd = H // nh
    NL = cls_w_ref.shape[-1]

    def ln(x, g, b):
        # One-pass LayerNorm over hidden dim (f32 stats), eps = 1e-12 (BERT).
        mu = jnp.mean(x, axis=-1, keepdims=True)
        var = jnp.mean(x * x, axis=-1, keepdims=True) - mu * mu
        return (x - mu) * jax.lax.rsqrt(var + 1e-12) * g + b

    # --- embedding LayerNorm -------------------------------------------------
    x = ln(emb, emb_g_ref[...], emb_b_ref[...])          # [D, S, H] f32
    x2 = x.reshape(D * S, H)

    # --- fused QKV projection: one [H, 3H] MXU pass, bf16 operands -----------
    # 1/sqrt(hd) is already folded into the Wq columns (init-time transform).
    qkv = (jnp.dot(x2.astype(BF16), wqkv_ref[...],
                   preferred_element_type=jnp.float32)
           + bqkv_ref[...])                              # [D*S, 3H] f32

    # Head relayout: gather each head's lane slab onto a new LEADING batch
    # axis -> [nh*D, S, hd]; downstream attention is one batched einsum pair.
    def heads(off):
        slabs = [qkv[:, off + h * hd: off + (h + 1) * hd].reshape(D, S, hd)
                 for h in range(nh)]
        return jnp.stack(slabs, axis=0).reshape(nh * D, S, hd).astype(BF16)

    qh = heads(0 * H)
    kh = heads(1 * H)
    vh = heads(2 * H)

    # --- multi-head attention (softmax stays f32, exact reciprocal) ----------
    s = jnp.einsum('bqd,bkd->bqk', qh, kh,
                   preferred_element_type=jnp.float32)   # [nh*D, S, S]
    maskb = jnp.broadcast_to(maskneg_ref[...][None],     # [D,1,S] -> [nh*D,1,S]
                             (nh, D, 1, S)).reshape(nh * D, 1, S)
    s = s + maskb
    m = jnp.max(s, axis=-1, keepdims=True)
    e = jnp.exp(s - m)
    p = e / jnp.sum(e, axis=-1, keepdims=True)
    ctx = jnp.einsum('bqk,bkd->bqd', p.astype(BF16), vh,
                     preferred_element_type=jnp.float32)  # [nh*D, S, hd]

    # merge heads back onto lanes (single lane concat), one full out-proj matmul
    ctx4 = ctx.reshape(nh, D, S, hd)
    ctx2 = jnp.concatenate([ctx4[h] for h in range(nh)],
                           axis=-1).reshape(D * S, H)

    # --- output projection + residual + LayerNorm ----------------------------
    attn_out = (jnp.dot(ctx2.astype(BF16), wo_ref[...],
                        preferred_element_type=jnp.float32)
                + bo_ref[...]).reshape(D, S, H)
    x = ln(x + attn_out, attn_g_ref[...], attn_b_ref[...])

    # --- FFN (GELU tanh approx, f32 elementwise) + residual + LayerNorm ------
    x2 = x.reshape(D * S, H)
    ffh = (jnp.dot(x2.astype(BF16), wff1_ref[...],
                   preferred_element_type=jnp.float32) + bff1_ref[...])
    ffh = 0.5 * ffh * (1.0 + jnp.tanh(
        0.7978845608028654 * (ffh + 0.044715 * ffh * ffh * ffh)))
    ff = (jnp.dot(ffh.astype(BF16), wff2_ref[...],
                  preferred_element_type=jnp.float32)
          + bff2_ref[...]).reshape(D, S, H)
    hidden = ln(x + ff, ff_g_ref[...], ff_b_ref[...])    # last_hidden_state

    # --- classifier on [CLS] token (dropout == identity, eval mode) ----------
    cls = hidden[:, 0, :]                                # [D, H] f32
    rank = (jnp.dot(cls.astype(BF16), cls_w_ref[...],
                    preferred_element_type=jnp.float32)
            + cls_b_ref[...])                            # [D, NL]
    rank_ref[...] = rank.reshape(1, D, NL)

    # --- LSTM over this query's D docs (batch = 1 query per grid step);
    #     input projection hoisted out of the time loop ----------------------
    gates_x = (jnp.dot(cls.astype(BF16), wih_ref[...],
                       preferred_element_type=jnp.float32)
               + blstm_ref[...])                         # [D, 4H]
    whh = whh_ref[...]                                   # bf16 [H, 4H]
    h = jnp.zeros((1, H), jnp.float32)
    c = jnp.zeros((1, H), jnp.float32)
    # TODO(synk): for large Doc_per_query switch to lax.fori_loop(unroll=k).
    for t in range(D):                                   # D is small & static
        gates = gates_x[t:t + 1, :] + jnp.dot(
            h.astype(BF16), whh, preferred_element_type=jnp.float32)
        i = jax.nn.sigmoid(gates[:, 0 * H:1 * H])
        f = jax.nn.sigmoid(gates[:, 1 * H:2 * H])
        g = jnp.tanh(gates[:, 2 * H:3 * H])
        o = jax.nn.sigmoid(gates[:, 3 * H:4 * H])
        c = f * c + i * g
        h = o * jnp.tanh(c)

    # --- regression head: Linear(H,100) -> Linear(100,NL) -> Sigmoid ---------
    r = (jnp.dot(h.astype(BF16), w1_ref[...],
                 preferred_element_type=jnp.float32) + b1_ref[...])
    qpp = jax.nn.sigmoid(
        jnp.dot(r.astype(BF16), w2_ref[...],
                preferred_element_type=jnp.float32) + b2_ref[...])
    qpp_ref[...] = qpp.reshape(1, 1, NL)


# ------------------------------ parameters ----------------------------------

def init_params(key, cfg):
    H, I, NL = cfg['hidden'], cfg['intermediate'], cfg['num_labels']
    hd = H // cfg['heads']

    def nrm(k, shape, std=0.02):
        return std * jax.random.normal(k, shape, F32)

    keys = iter(jax.random.split(key, 20))
    p = {}
    # BERT embeddings
    p['word_emb'] = nrm(next(keys), (cfg['vocab'], H))
    p['pos_emb'] = nrm(next(keys), (cfg['max_pos'], H))
    p['type_emb'] = nrm(next(keys), (cfg['type_vocab'], H))
    p['emb_ln_g'] = jnp.ones((H,), F32)
    p['emb_ln_b'] = jnp.zeros((H,), F32)
    # 1-layer BERT encoder; Q/K/V pre-concatenated [H, 3H], attention scale
    # 1/sqrt(hd) folded into the Wq columns (one-time parameter transform).
    wq = nrm(next(keys), (H, H)) * (1.0 / float(hd) ** 0.5)
    wk = nrm(next(keys), (H, H))
    wv = nrm(next(keys), (H, H))
    p['wqkv'] = jnp.concatenate([wq, wk, wv], axis=1).astype(BF16)
    p['bqkv'] = jnp.zeros((3 * H,), F32)   # (q-part would be scaled if nonzero)
    p['wo'] = nrm(next(keys), (H, H)).astype(BF16)
    p['bo'] = jnp.zeros((H,), F32)
    p['attn_ln_g'] = jnp.ones((H,), F32)
    p['attn_ln_b'] = jnp.zeros((H,), F32)
    p['w_ff1'] = nrm(next(keys), (H, I)).astype(BF16)
    p['b_ff1'] = jnp.zeros((I,), F32)
    p['w_ff2'] = nrm(next(keys), (I, H)).astype(BF16)
    p['b_ff2'] = jnp.zeros((H,), F32)
    p['ff_ln_g'] = jnp.ones((H,), F32)
    p['ff_ln_b'] = jnp.zeros((H,), F32)
    # classifier (normal 0.02, zero bias -> matches _init_weights)
    p['cls_w'] = nrm(next(keys), (H, NL)).astype(BF16)
    p['cls_b'] = jnp.zeros((NL,), F32)
    # LSTM (weights stored transposed: [H, 4H], PyTorch gate order i,f,g,o;
    # b_ih + b_hh pre-summed)
    p['wih'] = nrm(next(keys), (H, 4 * H)).astype(BF16)
    p['whh'] = nrm(next(keys), (H, 4 * H)).astype(BF16)
    p['b_lstm'] = jnp.zeros((4 * H,), F32)
    # regression head
    p['w1'] = nrm(next(keys), (H, 100)).astype(BF16)
    p['b1'] = jnp.zeros((100,), F32)
    p['w2'] = nrm(next(keys), (100, NL)).astype(BF16)
    p['b2'] = jnp.zeros((NL,), F32)
    return p


# -------------------------------- forward ------------------------------------

def forward(p, cfg, input_ids, attention_mask, token_type_ids):
    N, S = input_ids.shape
    H, nh = cfg['hidden'], cfg['heads']
    D = cfg['doc_per_query']
    NL = cfg['num_labels']
    Q = N // D

    # --- BERT embedding gathers (glue: table lookups stay in XLA) -----------
    pos_ids = jnp.arange(S)
    emb = (p['word_emb'][input_ids]
           + p['pos_emb'][pos_ids][None, :, :]
           + p['type_emb'][token_type_ids]).astype(F32)            # [N, S, H]
    maskneg = ((1.0 - attention_mask.astype(F32)) * (-1e9))[:, None, :]  # [N,1,S]

    weights = [
        p['emb_ln_g'].reshape(1, 1, H), p['emb_ln_b'].reshape(1, 1, H),
        p['wqkv'], p['bqkv'].reshape(1, -1),
        p['wo'], p['bo'].reshape(1, -1),
        p['attn_ln_g'].reshape(1, 1, H), p['attn_ln_b'].reshape(1, 1, H),
        p['w_ff1'], p['b_ff1'].reshape(1, -1),
        p['w_ff2'], p['b_ff2'].reshape(1, -1),
        p['ff_ln_g'].reshape(1, 1, H), p['ff_ln_b'].reshape(1, 1, H),
        p['cls_w'], p['cls_b'].reshape(1, -1),
        p['wih'], p['whh'], p['b_lstm'].reshape(1, -1),
        p['w1'], p['b1'].reshape(1, -1), p['w2'], p['b2'].reshape(1, -1),
    ]

    def const_spec(a):
        # grid-invariant operand: full-array block, constant index map
        # TODO(synk): add pipeline_mode=pl.Buffered(1) at real sizes.
        nd = a.ndim
        return pl.BlockSpec(a.shape, lambda q, _n=nd: (0,) * _n)

    in_specs = [
        pl.BlockSpec((D, S, H), lambda q: (q, 0, 0)),   # emb: one query's docs
        pl.BlockSpec((D, 1, S), lambda q: (q, 0, 0)),   # additive mask
    ] + [const_spec(w) for w in weights]

    out_specs = (
        pl.BlockSpec((1, D, NL), lambda q: (q, 0, 0)),  # rank logits per query
        pl.BlockSpec((1, 1, NL), lambda q: (q, 0, 0)),  # qpp logits per query
    )
    out_shape = (jax.ShapeDtypeStruct((Q, D, NL), F32),
                 jax.ShapeDtypeStruct((Q, 1, NL), F32))

    kernel = functools.partial(_fused_forward_kernel, nh=nh)
    rank3, qpp3 = pl.pallas_call(
        kernel,
        grid=(Q,),
        in_specs=in_specs,
        out_specs=out_specs,
        out_shape=out_shape,
        compiler_params=pltpu.CompilerParams(
            dimension_semantics=("parallel",),          # 2 TCs on v7x
            vmem_limit_bytes=32 * 1024 * 1024),
    )(emb, maskneg, *weights)

    # matches PyTorch: rank_logits.view(-1, DOCperQuery)  (num_labels == 1)
    rank_logits = rank3.reshape(-1, D)
    qpp_logits = qpp3.reshape(Q, NL)
    return rank_logits, qpp_logits


# --------------------------------- main --------------------------------------

if __name__ == "__main__":
    cfg = dict(vocab=100, type_vocab=2, max_pos=16, hidden=32, heads=4,
               intermediate=64, seq=8, doc_per_query=4, num_queries=2,
               num_labels=1)
    assert cfg['num_labels'] == 1  # rank_logits.view(-1, D) assumes this

    key = jax.random.PRNGKey(0)
    params = init_params(key, cfg)

    N = cfg['num_queries'] * cfg['doc_per_query']            # total sequences = 8
    input_ids = jax.random.randint(jax.random.fold_in(key, 1),
                                   (N, cfg['seq']), 0, cfg['vocab'],
                                   dtype=jnp.int32)
    attention_mask = jnp.ones((N, cfg['seq']), F32)
    token_type_ids = jnp.zeros((N, cfg['seq']), jnp.int32)

    fwd = jax.jit(lambda p, ii, am, tt: forward(p, cfg, ii, am, tt))
    rank_logits, qpp_logits = fwd(params, input_ids, attention_mask,
                                  token_type_ids)
    jax.block_until_ready((rank_logits, qpp_logits))

    assert rank_logits.shape == (cfg['num_queries'], cfg['doc_per_query'])
    assert qpp_logits.shape == (cfg['num_queries'], cfg['num_labels'])
    assert bool(jnp.all(jnp.isfinite(rank_logits)))
    assert bool(jnp.all(jnp.isfinite(qpp_logits)))
    print("KERNEL_OK")
</pallas_src>

<mosaic_0001>
module attributes {stable_mosaic.version = 11 : i64} {
  func.func @_fused_forward_kernel(%arg0: i32, %arg1: memref<4x8x32xf32, #tpu.memory_space<vmem>>, %arg2: memref<4x1x8xf32, #tpu.memory_space<vmem>>, %arg3: memref<1x1x32xf32, #tpu.memory_space<vmem>>, %arg4: memref<1x1x32xf32, #tpu.memory_space<vmem>>, %arg5: memref<32x96xbf16, #tpu.memory_space<vmem>>, %arg6: memref<1x96xf32, #tpu.memory_space<vmem>>, %arg7: memref<32x32xbf16, #tpu.memory_space<vmem>>, %arg8: memref<1x32xf32, #tpu.memory_space<vmem>>, %arg9: memref<1x1x32xf32, #tpu.memory_space<vmem>>, %arg10: memref<1x1x32xf32, #tpu.memory_space<vmem>>, %arg11: memref<32x64xbf16, #tpu.memory_space<vmem>>, %arg12: memref<1x64xf32, #tpu.memory_space<vmem>>, %arg13: memref<64x32xbf16, #tpu.memory_space<vmem>>, %arg14: memref<1x32xf32, #tpu.memory_space<vmem>>, %arg15: memref<1x1x32xf32, #tpu.memory_space<vmem>>, %arg16: memref<1x1x32xf32, #tpu.memory_space<vmem>>, %arg17: memref<32x1xbf16, #tpu.memory_space<vmem>>, %arg18: memref<1x1xf32, #tpu.memory_space<vmem>>, %arg19: memref<32x128xbf16, #tpu.memory_space<vmem>>, %arg20: memref<32x128xbf16, #tpu.memory_space<vmem>>, %arg21: memref<1x128xf32, #tpu.memory_space<vmem>>, %arg22: memref<32x100xbf16, #tpu.memory_space<vmem>>, %arg23: memref<1x100xf32, #tpu.memory_space<vmem>>, %arg24: memref<100x1xbf16, #tpu.memory_space<vmem>>, %arg25: memref<1x1xf32, #tpu.memory_space<vmem>>, %arg26: memref<1x4x1xf32, #tpu.memory_space<vmem>>, %arg27: memref<1x1x1xf32, #tpu.memory_space<vmem>>) attributes {dimension_semantics = [#tpu.dimension_semantics<parallel>], iteration_bounds = array<i64: 2>, scalar_prefetch = 0 : i64, scratch_operands = 0 : i64, tpu.core_type = #tpu.core_type<tc>, window_params = [{transform_indices = @transform_0, window_bounds = array<i64: 4, 8, 32>}, {transform_indices = @transform_1, window_bounds = array<i64: 4, 1, 8>}, {pipeline_mode = #tpu.pipeline_mode<synchronous>, transform_indices = @transform_2, window_bounds = array<i64: 1, 1, 32>}, {pipeline_mode = #tpu.pipeline_mode<synchronous>, transform_indices = @transform_3, window_bounds = array<i64: 1, 1, 32>}, {pipeline_mode = #tpu.pipeline_mode<synchronous>, transform_indices = @transform_4, window_bounds = array<i64: 32, 96>}, {pipeline_mode = #tpu.pipeline_mode<synchronous>, transform_indices = @transform_5, window_bounds = array<i64: 1, 96>}, {pipeline_mode = #tpu.pipeline_mode<synchronous>, transform_indices = @transform_6, window_bounds = array<i64: 32, 32>}, {pipeline_mode = #tpu.pipeline_mode<synchronous>, transform_indices = @transform_7, window_bounds = array<i64: 1, 32>}, {pipeline_mode = #tpu.pipeline_mode<synchronous>, transform_indices = @transform_8, window_bounds = array<i64: 1, 1, 32>}, {pipeline_mode = #tpu.pipeline_mode<synchronous>, transform_indices = @transform_9, window_bounds = array<i64: 1, 1, 32>}, {pipeline_mode = #tpu.pipeline_mode<synchronous>, transform_indices = @transform_10, window_bounds = array<i64: 32, 64>}, {pipeline_mode = #tpu.pipeline_mode<synchronous>, transform_indices = @transform_11, window_bounds = array<i64: 1, 64>}, {pipeline_mode = #tpu.pipeline_mode<synchronous>, transform_indices = @transform_12, window_bounds = array<i64: 64, 32>}, {pipeline_mode = #tpu.pipeline_mode<synchronous>, transform_indices = @transform_13, window_bounds = array<i64: 1, 32>}, {pipeline_mode = #tpu.pipeline_mode<synchronous>, transform_indices = @transform_14, window_bounds = array<i64: 1, 1, 32>}, {pipeline_mode = #tpu.pipeline_mode<synchronous>, transform_indices = @transform_15, window_bounds = array<i64: 1, 1, 32>}, {pipeline_mode = #tpu.pipeline_mode<synchronous>, transform_indices = @transform_16, window_bounds = array<i64: 32, 1>}, {pipeline_mode = #tpu.pipeline_mode<synchronous>, transform_indices = @transform_17, window_bounds = array<i64: 1, 1>}, {pipeline_mode = #tpu.pipeline_mode<synchronous>, transform_indices = @transform_18, window_bounds = array<i64: 32, 128>}, {pipeline_mode = #tpu.pipeline_mode<synchronous>, transform_indices = @transform_19, window_bounds = array<i64: 32, 128>}, {pipeline_mode = #tpu.pipeline_mode<synchronous>, transform_indices = @transform_20, window_bounds = array<i64: 1, 128>}, {pipeline_mode = #tpu.pipeline_mode<synchronous>, transform_indices = @transform_21, window_bounds = array<i64: 32, 100>}, {pipeline_mode = #tpu.pipeline_mode<synchronous>, transform_indices = @transform_22, window_bounds = array<i64: 1, 100>}, {pipeline_mode = #tpu.pipeline_mode<synchronous>, transform_indices = @transform_23, window_bounds = array<i64: 100, 1>}, {pipeline_mode = #tpu.pipeline_mode<synchronous>, transform_indices = @transform_24, window_bounds = array<i64: 1, 1>}, {transform_indices = @transform_25, window_bounds = array<i64: 1, 4, 1>}, {transform_indices = @transform_26, window_bounds = array<i64: 1, 1, 1>}]} {
    %c0 = arith.constant 0 : index
    %c0_0 = arith.constant 0 : index
    %c0_1 = arith.constant 0 : index
    %0 = vector.load %arg1[%c0, %c0_0, %c0_1] : memref<4x8x32xf32, #tpu.memory_space<vmem>>, vector<4x8x32xf32>
    %c0_2 = arith.constant 0 : index
    %c0_3 = arith.constant 0 : index
    %c0_4 = arith.constant 0 : index
    %1 = vector.load %arg3[%c0_2, %c0_3, %c0_4] : memref<1x1x32xf32, #tpu.memory_space<vmem>>, vector<1x1x32xf32>
    %c0_5 = arith.constant 0 : index
    %c0_6 = arith.constant 0 : index
    %c0_7 = arith.constant 0 : index
    %2 = vector.load %arg4[%c0_5, %c0_6, %c0_7] : memref<1x1x32xf32, #tpu.memory_space<vmem>>, vector<1x1x32xf32>
    %cst = arith.constant dense<0.000000e+00> : vector<4x8xf32>
    %3 = vector.multi_reduction <add>, %0, %cst [2] : vector<4x8x32xf32> to vector<4x8xf32>
    %4 = vector.shape_cast %3 : vector<4x8xf32> to vector<4x8x1xf32>
    %cst_8 = arith.constant 3.200000e+01 : f32
    %5 = vector.broadcast %cst_8 : f32 to vector<4x8x1xf32>
    %6 = arith.divf %4, %5 : vector<4x8x1xf32>
    %7 = arith.mulf %0, %0 : vector<4x8x32xf32>
    %cst_9 = arith.constant dense<0.000000e+00> : vector<4x8xf32>
    %8 = vector.multi_reduction <add>, %7, %cst_9 [2] : vector<4x8x32xf32> to vector<4x8xf32>
    %9 = vector.shape_cast %8 : vector<4x8xf32> to vector<4x8x1xf32>
    %cst_10 = arith.constant 3.200000e+01 : f32
    %10 = vector.broadcast %cst_10 : f32 to vector<4x8x1xf32>
    %11 = arith.divf %9, %10 : vector<4x8x1xf32>
    %12 = arith.mulf %6, %6 : vector<4x8x1xf32>
    %13 = arith.subf %11, %12 : vector<4x8x1xf32>
    %14 = vector.broadcast %6 : vector<4x8x1xf32> to vector<4x8x32xf32>
    %15 = arith.subf %0, %14 : vector<4x8x32xf32>
    %cst_11 = arith.constant 9.99999996E-13 : f32
    %16 = vector.broadcast %cst_11 : f32 to vector<4x8x1xf32>
    %17 = arith.addf %13, %16 : vector<4x8x1xf32>
    %18 = math.rsqrt %17 : vector<4x8x1xf32>
    %19 = vector.broadcast %18 : vector<4x8x1xf32> to vector<4x8x32xf32>
    %20 = arith.mulf %15, %19 : vector<4x8x32xf32>
    %21 = vector.broadcast %1 : vector<1x1x32xf32> to vector<4x8x32xf32>
    %22 = arith.mulf %20, %21 : vector<4x8x32xf32>
    %23 = vector.broadcast %2 : vector<1x1x32xf32> to vector<4x8x32xf32>
    %24 = arith.addf %22, %23 : vector<4x8x32xf32>
    %25 = vector.shape_cast %24 : vector<4x8x32xf32> to vector<32x32xf32>
    %26 = arith.truncf %25 : vector<32x32xf32> to vector<32x32xbf16>
    %c0_12 = arith.constant 0 : index
    %c0_13 = arith.constant 0 : index
    %27 = vector.load %arg5[%c0_12, %c0_13] : memref<32x96xbf16, #tpu.memory_space<vmem>>, vector<32x96xbf16>
    %cst_14 = arith.constant dense<0.000000e+00> : vector<32x96xf32>
    %28 = tpu.matmul %26, %27, %cst_14 {dimension_numbers = #tpu.dot_dimension_numbers<[1], [0], [0], [1], [0, 0, 1, 1], [], []>} : vector<32x32xbf16>, vector<32x96xbf16>, vector<32x96xf32> -> vector<32x96xf32>
    %c0_15 = arith.constant 0 : index
    %c0_16 = arith.constant 0 : index
    %29 = vector.load %arg6[%c0_15, %c0_16] : memref<1x96xf32, #tpu.memory_space<vmem>>, vector<1x96xf32>
    %30 = vector.broadcast %29 : vector<1x96xf32> to vector<32x96xf32>
    %31 = arith.addf %28, %30 : vector<32x96xf32>
    %32 = vector.extract_strided_slice %31 {offsets = [0, 0], sizes = [32, 8], strides = [1, 1]} : vector<32x96xf32> to vector<32x8xf32>
    %33 = vector.shape_cast %32 : vector<32x8xf32> to vector<4x8x8xf32>
    %34 = vector.extract_strided_slice %31 {offsets = [0, 8], sizes = [32, 8], strides = [1, 1]} : vector<32x96xf32> to vector<32x8xf32>
    %35 = vector.shape_cast %34 : vector<32x8xf32> to vector<4x8x8xf32>
    %36 = vector.extract_strided_slice %31 {offsets = [0, 16], sizes = [32, 8], strides = [1, 1]} : vector<32x96xf32> to vector<32x8xf32>
    %37 = vector.shape_cast %36 : vector<32x8xf32> to vector<4x8x8xf32>
    %38 = vector.extract_strided_slice %31 {offsets = [0, 24], sizes = [32, 8], strides = [1, 1]} : vector<32x96xf32> to vector<32x8xf32>
    %39 = vector.shape_cast %38 : vector<32x8xf32> to vector<4x8x8xf32>
    %40 = vector.shape_cast %33 : vector<4x8x8xf32> to vector<1x4x8x8xf32>
    %41 = vector.shape_cast %35 : vector<4x8x8xf32> to vector<1x4x8x8xf32>
    %42 = vector.shape_cast %37 : vector<4x8x8xf32> to vector<1x4x8x8xf32>
    %43 = vector.shape_cast %39 : vector<4x8x8xf32> to vector<1x4x8x8xf32>
    %44 = tpu.concatenate %40, %41, %42, %43 in 0 : vector<1x4x8x8xf32>, vector<1x4x8x8xf32>, vector<1x4x8x8xf32>, vector<1x4x8x8xf32> -> vector<4x4x8x8xf32>
    %45 = vector.shape_cast %44 : vector<4x4x8x8xf32> to vector<16x8x8xf32>
    %46 = arith.truncf %45 : vector<16x8x8xf32> to vector<16x8x8xbf16>
    %47 = vector.extract_strided_slice %31 {offsets = [0, 32], sizes = [32, 8], strides = [1, 1]} : vector<32x96xf32> to vector<32x8xf32>
    %48 = vector.shape_cast %47 : vector<32x8xf32> to vector<4x8x8xf32>
    %49 = vector.extract_strided_slice %31 {offsets = [0, 40], sizes = [32, 8], strides = [1, 1]} : vector<32x96xf32> to vector<32x8xf32>
    %50 = vector.shape_cast %49 : vector<32x8xf32> to vector<4x8x8xf32>
    %51 = vector.extract_strided_slice %31 {offsets = [0, 48], sizes = [32, 8], strides = [1, 1]} : vector<32x96xf32> to vector<32x8xf32>
    %52 = vector.shape_cast %51 : vector<32x8xf32> to vector<4x8x8xf32>
    %53 = vector.extract_strided_slice %31 {offsets = [0, 56], sizes = [32, 8], strides = [1, 1]} : vector<32x96xf32> to vector<32x8xf32>
    %54 = vector.shape_cast %53 : vector<32x8xf32> to vector<4x8x8xf32>
    %55 = vector.shape_cast %48 : vector<4x8x8xf32> to vector<1x4x8x8xf32>
    %56 = vector.shape_cast %50 : vector<4x8x8xf32> to vector<1x4x8x8xf32>
    %57 = vector.shape_cast %52 : vector<4x8x8xf32> to vector<1x4x8x8xf32>
    %58 = vector.shape_cast %54 : vector<4x8x8xf32> to vector<1x4x8x8xf32>
    %59 = tpu.concatenate %55, %56, %57, %58 in 0 : vector<1x4x8x8xf32>, vector<1x4x8x8xf32>, vector<1x4x8x8xf32>, vector<1x4x8x8xf32> -> vector<4x4x8x8xf32>
    %60 = vector.shape_cast %59 : vector<4x4x8x8xf32> to vector<16x8x8xf32>
    %61 = arith.truncf %60 : vector<16x8x8xf32> to vector<16x8x8xbf16>
    %62 = vector.extract_strided_slice %31 {offsets = [0, 64], sizes = [32, 8], strides = [1, 1]} : vector<32x96xf32> to vector<32x8xf32>
    %63 = vector.shape_cast %62 : vector<32x8xf32> to vector<4x8x8xf32>
    %64 = vector.extract_strided_slice %31 {offsets = [0, 72], sizes = [32, 8], strides = [1, 1]} : vector<32x96xf32> to vector<32x8xf32>
    %65 = vector.shape_cast %64 : vector<32x8xf32> to vector<4x8x8xf32>
    %66 = vector.extract_strided_slice %31 {offsets = [0, 80], sizes = [32, 8], strides = [1, 1]} : vector<32x96xf32> to vector<32x8xf32>
    %67 = vector.shape_cast %66 : vector<32x8xf32> to vector<4x8x8xf32>
    %68 = vector.extract_strided_slice %31 {offsets = [0, 88], sizes = [32, 8], strides = [1, 1]} : vector<32x96xf32> to vector<32x8xf32>
    %69 = vector.shape_cast %68 : vector<32x8xf32> to vector<4x8x8xf32>
    %70 = vector.shape_cast %63 : vector<4x8x8xf32> to vector<1x4x8x8xf32>
    %71 = vector.shape_cast %65 : vector<4x8x8xf32> to vector<1x4x8x8xf32>
    %72 = vector.shape_cast %67 : vector<4x8x8xf32> to vector<1x4x8x8xf32>
    %73 = vector.shape_cast %69 : vector<4x8x8xf32> to vector<1x4x8x8xf32>
    %74 = tpu.concatenate %70, %71, %72, %73 in 0 : vector<1x4x8x8xf32>, vector<1x4x8x8xf32>, vector<1x4x8x8xf32>, vector<1x4x8x8xf32> -> vector<4x4x8x8xf32>
    %75 = vector.shape_cast %74 : vector<4x4x8x8xf32> to vector<16x8x8xf32>
    %76 = arith.truncf %75 : vector<16x8x8xf32> to vector<16x8x8xbf16>
    "tpu.trace_start"() <{level = 10 : i32, message = "bqd,bkd->bqk"}> : () -> ()
    %cst_17 = arith.constant dense<0.000000e+00> : vector<16x8x8xf32>
    %77 = tpu.matmul %46, %61, %cst_17 {dimension_numbers = #tpu.dot_dimension_numbers<[2], [2], [1], [1], [0, 0, 0, 1, 1, 1], [0], [0]>} : vector<16x8x8xbf16>, vector<16x8x8xbf16>, vector<16x8x8xf32> -> vector<16x8x8xf32>
    "tpu.trace_stop"() : () -> ()
    %c0_18 = arith.constant 0 : index
    %c0_19 = arith.constant 0 : index
    %c0_20 = arith.constant 0 : index
    %78 = vector.load %arg2[%c0_18, %c0_19, %c0_20] : memref<4x1x8xf32, #tpu.memory_space<vmem>>, vector<4x1x8xf32>
    %79 = vector.shape_cast %78 : vector<4x1x8xf32> to vector<1x4x1x8xf32>
    %80 = vector.shape_cast %79 : vector<1x4x1x8xf32> to vector<1x4x1x8xf32>
    %81 = vector.broadcast %80 : vector<1x4x1x8xf32> to vector<4x4x1x8xf32>
    %82 = vector.shape_cast %81 : vector<4x4x1x8xf32> to vector<16x1x8xf32>
    %83 = vector.broadcast %82 : vector<16x1x8xf32> to vector<16x8x8xf32>
    %84 = arith.addf %77, %83 : vector<16x8x8xf32>
    %cst_21 = arith.constant dense<0xFF800000> : vector<16x8xf32>
    %85 = vector.multi_reduction <maximumf>, %84, %cst_21 [2] : vector<16x8x8xf32> to vector<16x8xf32>
    %86 = vector.shape_cast %85 : vector<16x8xf32> to vector<16x8x1xf32>
    %87 = vector.broadcast %86 : vector<16x8x1xf32> to vector<16x8x8xf32>
    %88 = arith.subf %84, %87 : vector<16x8x8xf32>
    %89 = math.exp %88 : vector<16x8x8xf32>
    %cst_22 = arith.constant dense<0.000000e+00> : vector<16x8xf32>
    %90 = vector.multi_reduction <add>, %89, %cst_22 [2] : vector<16x8x8xf32> to vector<16x8xf32>
    %91 = vector.shape_cast %90 : vector<16x8xf32> to vector<16x8x1xf32>
    %92 = vector.broadcast %91 : vector<16x8x1xf32> to vector<16x8x8xf32>
    %93 = arith.divf %89, %92 : vector<16x8x8xf32>
    %94 = arith.truncf %93 : vector<16x8x8xf32> to vector<16x8x8xbf16>
    "tpu.trace_start"() <{level = 10 : i32, message = "bqk,bkd->bqd"}> : () -> ()
    %cst_23 = arith.constant dense<0.000000e+00> : vector<16x8x8xf32>
    %95 = tpu.matmul %94, %76, %cst_23 {dimension_numbers = #tpu.dot_dimension_numbers<[2], [1], [1], [2], [0, 0, 0, 1, 1, 2], [0], [0]>} : vector<16x8x8xbf16>, vector<16x8x8xbf16>, vector<16x8x8xf32> -> vector<16x8x8xf32>
    "tpu.trace_stop"() : () -> ()
    %96 = vector.shape_cast %95 : vector<16x8x8xf32> to vector<4x4x8x8xf32>
    %97 = vector.extract_strided_slice %96 {offsets = [0, 0, 0, 0], sizes = [1, 4, 8, 8], strides = [1, 1, 1, 1]} : vector<4x4x8x8xf32> to vector<1x4x8x8xf32>
    %98 = vector.shape_cast %97 : vector<1x4x8x8xf32> to vector<4x8x8xf32>
    %99 = vector.extract_strided_slice %96 {offsets = [1, 0, 0, 0], sizes = [1, 4, 8, 8], strides = [1, 1, 1, 1]} : vector<4x4x8x8xf32> to vector<1x4x8x8xf32>
    %100 = vector.shape_cast %99 : vector<1x4x8x8xf32> to vector<4x8x8xf32>
    %101 = vector.extract_strided_slice %96 {offsets = [2, 0, 0, 0], sizes = [1, 4, 8, 8], strides = [1, 1, 1, 1]} : vector<4x4x8x8xf32> to vector<1x4x8x8xf32>
    %102 = vector.shape_cast %101 : vector<1x4x8x8xf32> to vector<4x8x8xf32>
    %103 = vector.extract_strided_slice %96 {offsets = [3, 0, 0, 0], sizes = [1, 4, 8, 8], strides = [1, 1, 1, 1]} : vector<4x4x8x8xf32> to vector<1x4x8x8xf32>
    %104 = vector.shape_cast %103 : vector<1x4x8x8xf32> to vector<4x8x8xf32>
    %105 = tpu.concatenate %98, %100, %102, %104 in 2 : vector<4x8x8xf32>, vector<4x8x8xf32>, vector<4x8x8xf32>, vector<4x8x8xf32> -> vector<4x8x32xf32>
    %106 = vector.shape_cast %105 : vector<4x8x32xf32> to vector<32x32xf32>
    %107 = arith.truncf %106 : vector<32x32xf32> to vector<32x32xbf16>
    %c0_24 = arith.constant 0 : index
    %c0_25 = arith.constant 0 : index
    %108 = vector.load %arg7[%c0_24, %c0_25] : memref<32x32xbf16, #tpu.memory_space<vmem>>, vector<32x32xbf16>
    %cst_26 = arith.constant dense<0.000000e+00> : vector<32x32xf32>
    %109 = tpu.matmul %107, %108, %cst_26 {dimension_numbers = #tpu.dot_dimension_numbers<[1], [0], [0], [1], [0, 0, 1, 1], [], []>} : vector<32x32xbf16>, vector<32x32xbf16>, vector<32x32xf32> -> vector<32x32xf32>
    %c0_27 = arith.constant 0 : index
    %c0_28 = arith.constant 0 : index
    %110 = vector.load %arg8[%c0_27, %c0_28] : memref<1x32xf32, #tpu.memory_space<vmem>>, vector<1x32xf32>
    %111 = vector.broadcast %110 : vector<1x32xf32> to vector<32x32xf32>
    %112 = arith.addf %109, %111 : vector<32x32xf32>
    %113 = vector.shape_cast %112 : vector<32x32xf32> to vector<4x8x32xf32>
    %114 = arith.addf %24, %113 : vector<4x8x32xf32>
    %c0_29 = arith.constant 0 : index
    %c0_30 = arith.constant 0 : index
    %c0_31 = arith.constant 0 : index
    %115 = vector.load %arg9[%c0_29, %c0_30, %c0_31] : memref<1x1x32xf32, #tpu.memory_space<vmem>>, vector<1x1x32xf32>
    %c0_32 = arith.constant 0 : index
    %c0_33 = arith.constant 0 : index
    %c0_34 = arith.constant 0 : index
    %116 = vector.load %arg10[%c0_32, %c0_33, %c0_34] : memref<1x1x32xf32, #tpu.memory_space<vmem>>, vector<1x1x32xf32>
    %cst_35 = arith.constant dense<0.000000e+00> : vector<4x8xf32>
    %117 = vector.multi_reduction <add>, %114, %cst_35 [2] : vector<4x8x32xf32> to vector<4x8xf32>
    %118 = vector.shape_cast %117 : vector<4x8xf32> to vector<4x8x1xf32>
    %cst_36 = arith.constant 3.200000e+01 : f32
    %119 = vector.broadcast %cst_36 : f32 to vector<4x8x1xf32>
    %120 = arith.divf %118, %119 : vector<4x8x1xf32>
    %121 = arith.mulf %114, %114 : vector<4x8x32xf32>
    %cst_37 = arith.constant dense<0.000000e+00> : vector<4x8xf32>
    %122 = vector.multi_reduction <add>, %121, %cst_37 [2] : vector<4x8x32xf32> to vector<4x8xf32>
    %123 = vector.shape_cast %122 : vector<4x8xf32> to vector<4x8x1xf32>
    %cst_38 = arith.constant 3.200000e+01 : f32
    %124 = vector.broadcast %cst_38 : f32 to vector<4x8x1xf32>
    %125 = arith.divf %123, %124 : vector<4x8x1xf32>
    %126 = arith.mulf %120, %120 : vector<4x8x1xf32>
    %127 = arith.subf %125, %126 : vector<4x8x1xf32>
    %128 = vector.broadcast %120 : vector<4x8x1xf32> to vector<4x8x32xf32>
    %129 = arith.subf %114, %128 : vector<4x8x32xf32>
    %cst_39 = arith.constant 9.99999996E-13 : f32
    %130 = vector.broadcast %cst_39 : f32 to vector<4x8x1xf32>
    %131 = arith.addf %127, %130 : vector<4x8x1xf32>
    %132 = math.rsqrt %131 : vector<4x8x1xf32>
    %133 = vector.broadcast %132 : vector<4x8x1xf32> to vector<4x8x32xf32>
    %134 = arith.mulf %129, %133 : vector<4x8x32xf32>
    %135 = vector.broadcast %115 : vector<1x1x32xf32> to vector<4x8x32xf32>
    %136 = arith.mulf %134, %135 : vector<4x8x32xf32>
    %137 = vector.broadcast %116 : vector<1x1x32xf32> to vector<4x8x32xf32>
    %138 = arith.addf %136, %137 : vector<4x8x32xf32>
    %139 = vector.shape_cast %138 : vector<4x8x32xf32> to vector<32x32xf32>
    %140 = arith.truncf %139 : vector<32x32xf32> to vector<32x32xbf16>
    %c0_40 = arith.constant 0 : index
    %c0_41 = arith.constant 0 : index
    %141 = vector.load %arg11[%c0_40, %c0_41] : memref<32x64xbf16, #tpu.memory_space<vmem>>, vector<32x64xbf16>
    %cst_42 = arith.constant dense<0.000000e+00> : vector<32x64xf32>
    %142 = tpu.matmul %140, %141, %cst_42 {dimension_numbers = #tpu.dot_dimension_numbers<[1], [0], [0], [1], [0, 0, 1, 1], [], []>} : vector<32x32xbf16>, vector<32x64xbf16>, vector<32x64xf32> -> vector<32x64xf32>
    %c0_43 = arith.constant 0 : index
    %c0_44 = arith.constant 0 : index
    %143 = vector.load %arg12[%c0_43, %c0_44] : memref<1x64xf32, #tpu.memory_space<vmem>>, vector<1x64xf32>
    %144 = vector.broadcast %143 : vector<1x64xf32> to vector<32x64xf32>
    %145 = arith.addf %142, %144 : vector<32x64xf32>
    %cst_45 = arith.constant 5.000000e-01 : f32
    %146 = vector.broadcast %cst_45 : f32 to vector<32x64xf32>
    %147 = arith.mulf %146, %145 : vector<32x64xf32>
    %cst_46 = arith.constant 4.471500e-02 : f32
    %148 = vector.broadcast %cst_46 : f32 to vector<32x64xf32>
    %149 = arith.mulf %148, %145 : vector<32x64xf32>
    %150 = arith.mulf %149, %145 : vector<32x64xf32>
    %151 = arith.mulf %150, %145 : vector<32x64xf32>
    %152 = arith.addf %145, %151 : vector<32x64xf32>
    %cst_47 = arith.constant 0.797884583 : f32
    %153 = vector.broadcast %cst_47 : f32 to vector<32x64xf32>
    %154 = arith.mulf %153, %152 : vector<32x64xf32>
    %155 = math.tanh %154 : vector<32x64xf32>
    %cst_48 = arith.constant 1.000000e+00 : f32
    %156 = vector.broadcast %cst_48 : f32 to vector<32x64xf32>
    %157 = arith.addf %156, %155 : vector<32x64xf32>
    %158 = arith.mulf %147, %157 : vector<32x64xf32>
    %159 = arith.truncf %158 : vector<32x64xf32> to vector<32x64xbf16>
    %c0_49 = arith.constant 0 : index
    %c0_50 = arith.constant 0 : index
    %160 = vector.load %arg13[%c0_49, %c0_50] : memref<64x32xbf16, #tpu.memory_space<vmem>>, vector<64x32xbf16>
    %cst_51 = arith.constant dense<0.000000e+00> : vector<32x32xf32>
    %161 = tpu.matmul %159, %160, %cst_51 {dimension_numbers = #tpu.dot_dimension_numbers<[1], [0], [0], [1], [0, 0, 1, 1], [], []>} : vector<32x64xbf16>, vector<64x32xbf16>, vector<32x32xf32> -> vector<32x32xf32>
    %c0_52 = arith.constant 0 : index
    %c0_53 = arith.constant 0 : index
    %162 = vector.load %arg14[%c0_52, %c0_53] : memref<1x32xf32, #tpu.memory_space<vmem>>, vector<1x32xf32>
    %163 = vector.broadcast %162 : vector<1x32xf32> to vector<32x32xf32>
    %164 = arith.addf %161, %163 : vector<32x32xf32>
    %165 = vector.shape_cast %164 : vector<32x32xf32> to vector<4x8x32xf32>
    %166 = arith.addf %138, %165 : vector<4x8x32xf32>
    %c0_54 = arith.constant 0 : index
    %c0_55 = arith.constant 0 : index
    %c0_56 = arith.constant 0 : index
    %167 = vector.load %arg15[%c0_54, %c0_55, %c0_56] : memref<1x1x32xf32, #tpu.memory_space<vmem>>, vector<1x1x32xf32>
    %c0_57 = arith.constant 0 : index
    %c0_58 = arith.constant 0 : index
    %c0_59 = arith.constant 0 : index
    %168 = vector.load %arg16[%c0_57, %c0_58, %c0_59] : memref<1x1x32xf32, #tpu.memory_space<vmem>>, vector<1x1x32xf32>
    %cst_60 = arith.constant dense<0.000000e+00> : vector<4x8xf32>
    %169 = vector.multi_reduction <add>, %166, %cst_60 [2] : vector<4x8x32xf32> to vector<4x8xf32>
    %170 = vector.shape_cast %169 : vector<4x8xf32> to vector<4x8x1xf32>
    %cst_61 = arith.constant 3.200000e+01 : f32
    %171 = vector.broadcast %cst_61 : f32 to vector<4x8x1xf32>
    %172 = arith.divf %170, %171 : vector<4x8x1xf32>
    %173 = arith.mulf %166, %166 : vector<4x8x32xf32>
    %cst_62 = arith.constant dense<0.000000e+00> : vector<4x8xf32>
    %174 = vector.multi_reduction <add>, %173, %cst_62 [2] : vector<4x8x32xf32> to vector<4x8xf32>
    %175 = vector.shape_cast %174 : vector<4x8xf32> to vector<4x8x1xf32>
    %cst_63 = arith.constant 3.200000e+01 : f32
    %176 = vector.broadcast %cst_63 : f32 to vector<4x8x1xf32>
    %177 = arith.divf %175, %176 : vector<4x8x1xf32>
    %178 = arith.mulf %172, %172 : vector<4x8x1xf32>
    %179 = arith.subf %177, %178 : vector<4x8x1xf32>
    %180 = vector.broadcast %172 : vector<4x8x1xf32> to vector<4x8x32xf32>
    %181 = arith.subf %166, %180 : vector<4x8x32xf32>
    %cst_64 = arith.constant 9.99999996E-13 : f32
    %182 = vector.broadcast %cst_64 : f32 to vector<4x8x1xf32>
    %183 = arith.addf %179, %182 : vector<4x8x1xf32>
    %184 = math.rsqrt %183 : vector<4x8x1xf32>
    %185 = vector.broadcast %184 : vector<4x8x1xf32> to vector<4x8x32xf32>
    %186 = arith.mulf %181, %185 : vector<4x8x32xf32>
    %187 = vector.broadcast %167 : vector<1x1x32xf32> to vector<4x8x32xf32>
    %188 = arith.mulf %186, %187 : vector<4x8x32xf32>
    %189 = vector.broadcast %168 : vector<1x1x32xf32> to vector<4x8x32xf32>
    %190 = arith.addf %188, %189 : vector<4x8x32xf32>
    %191 = vector.extract_strided_slice %190 {offsets = [0, 0, 0], sizes = [4, 1, 32], strides = [1, 1, 1]} : vector<4x8x32xf32> to vector<4x1x32xf32>
    %192 = vector.shape_cast %191 : vector<4x1x32xf32> to vector<4x32xf32>
    %193 = arith.truncf %192 : vector<4x32xf32> to vector<4x32xbf16>
    %c0_65 = arith.constant 0 : index
    %c0_66 = arith.constant 0 : index
    %194 = vector.load %arg17[%c0_65, %c0_66] : memref<32x1xbf16, #tpu.memory_space<vmem>>, vector<32x1xbf16>
    %cst_67 = arith.constant dense<0.000000e+00> : vector<4x1xf32>
    %195 = tpu.matmul %193, %194, %cst_67 {dimension_numbers = #tpu.dot_dimension_numbers<[1], [0], [0], [1], [0, 0, 1, 1], [], []>} : vector<4x32xbf16>, vector<32x1xbf16>, vector<4x1xf32> -> vector<4x1xf32>
    %c0_68 = arith.constant 0 : index
    %c0_69 = arith.constant 0 : index
    %196 = vector.load %arg18[%c0_68, %c0_69] : memref<1x1xf32, #tpu.memory_space<vmem>>, vector<1x1xf32>
    %197 = vector.broadcast %196 : vector<1x1xf32> to vector<4x1xf32>
    %198 = arith.addf %195, %197 : vector<4x1xf32>
    %199 = vector.shape_cast %198 : vector<4x1xf32> to vector<1x4x1xf32>
    %c0_70 = arith.constant 0 : index
    %c0_71 = arith.constant 0 : index
    %c0_72 = arith.constant 0 : index
    %200 = vector.load %arg26[%c0_70, %c0_71, %c0_72] : memref<1x4x1xf32, #tpu.memory_space<vmem>>, vector<1x4x1xf32>
    tpu.vector_store %arg26[%c0_70, %c0_71, %c0_72], %199 {strides = array<i32>} : memref<1x4x1xf32, #tpu.memory_space<vmem>>, vector<1x4x1xf32>,
    %201 = arith.truncf %192 : vector<4x32xf32> to vector<4x32xbf16>
    %c0_73 = arith.constant 0 : index
    %c0_74 = arith.constant 0 : index
    %202 = vector.load %arg19[%c0_73, %c0_74] : memref<32x128xbf16, #tpu.memory_space<vmem>>, vector<32x128xbf16>
    %cst_75 = arith.constant dense<0.000000e+00> : vector<4x128xf32>
    %203 = tpu.matmul %201, %202, %cst_75 {dimension_numbers = #tpu.dot_dimension_numbers<[1], [0], [0], [1], [0, 0, 1, 1], [], []>} : vector<4x32xbf16>, vector<32x128xbf16>, vector<4x128xf32> -> vector<4x128xf32>
    %c0_76 = arith.constant 0 : index
    %c0_77 = arith.constant 0 : index
    %204 = vector.load %arg21[%c0_76, %c0_77] : memref<1x128xf32, #tpu.memory_space<vmem>>, vector<1x128xf32>
    %205 = vector.broadcast %204 : vector<1x128xf32> to vector<4x128xf32>
    %206 = arith.addf %203, %205 : vector<4x128xf32>
    %c0_78 = arith.constant 0 : index
    %c0_79 = arith.constant 0 : index
    %207 = vector.load %arg20[%c0_78, %c0_79] : memref<32x128xbf16, #tpu.memory_space<vmem>>, vector<32x128xbf16>
    %cst_80 = arith.constant 0.000000e+00 : f32
    %208 = vector.broadcast %cst_80 : f32 to vector<1x32xf32>
    %cst_81 = arith.constant 0.000000e+00 : f32
    %209 = vector.broadcast %cst_81 : f32 to vector<1x32xf32>
    %210 = vector.extract_strided_slice %206 {offsets = [0, 0], sizes = [1, 128], strides = [1, 1]} : vector<4x128xf32> to vector<1x128xf32>
    %211 = arith.truncf %208 : vector<1x32xf32> to vector<1x32xbf16>
    %cst_82 = arith.constant dense<0.000000e+00> : vector<1x128xf32>
    %212 = tpu.matmul %211, %207, %cst_82 {dimension_numbers = #tpu.dot_dimension_numbers<[1], [0], [0], [1], [0, 0, 1, 1], [], []>} : vector<1x32xbf16>, vector<32x128xbf16>, vector<1x128xf32> -> vector<1x128xf32>
    %213 = arith.addf %210, %212 : vector<1x128xf32>
    %214 = vector.extract_strided_slice %213 {offsets = [0, 0], sizes = [1, 32], strides = [1, 1]} : vector<1x128xf32> to vector<1x32xf32>
    %215 = arith.negf %214 : vector<1x32xf32>
    %216 = math.exp %215 : vector<1x32xf32>
    %cst_83 = arith.constant 1.000000e+00 : f32
    %217 = vector.broadcast %cst_83 : f32 to vector<1x32xf32>
    %218 = arith.addf %217, %216 : vector<1x32xf32>
    %219 = arith.divf %217, %218 : vector<1x32xf32>
    %220 = vector.extract_strided_slice %213 {offsets = [0, 32], sizes = [1, 32], strides = [1, 1]} : vector<1x128xf32> to vector<1x32xf32>
    %221 = arith.negf %220 : vector<1x32xf32>
    %222 = math.exp %221 : vector<1x32xf32>
    %cst_84 = arith.constant 1.000000e+00 : f32
    %223 = vector.broadcast %cst_84 : f32 to vector<1x32xf32>
    %224 = arith.addf %223, %222 : vector<1x32xf32>
    %225 = arith.divf %223, %224 : vector<1x32xf32>
    %226 = vector.extract_strided_slice %213 {offsets = [0, 64], sizes = [1, 32], strides = [1, 1]} : vector<1x128xf32> to vector<1x32xf32>
    %227 = math.tanh %226 : vector<1x32xf32>
    %228 = vector.extract_strided_slice %213 {offsets = [0, 96], sizes = [1, 32], strides = [1, 1]} : vector<1x128xf32> to vector<1x32xf32>
    %229 = arith.negf %228 : vector<1x32xf32>
    %230 = math.exp %229 : vector<1x32xf32>
    %cst_85 = arith.constant 1.000000e+00 : f32
    %231 = vector.broadcast %cst_85 : f32 to vector<1x32xf32>
    %232 = arith.addf %231, %230 : vector<1x32xf32>
    %233 = arith.divf %231, %232 : vector<1x32xf32>
    %234 = arith.mulf %225, %209 : vector<1x32xf32>
    %235 = arith.mulf %219, %227 : vector<1x32xf32>
    %236 = arith.addf %234, %235 : vector<1x32xf32>
    %237 = math.tanh %236 : vector<1x32xf32>
    %238 = arith.mulf %233, %237 : vector<1x32xf32>
    %239 = vector.extract_strided_slice %206 {offsets = [1, 0], sizes = [1, 128], strides = [1, 1]} : vector<4x128xf32> to vector<1x128xf32>
    %240 = arith.truncf %238 : vector<1x32xf32> to vector<1x32xbf16>
    %cst_86 = arith.constant dense<0.000000e+00> : vector<1x128xf32>
    %241 = tpu.matmul %240, %207, %cst_86 {dimension_numbers = #tpu.dot_dimension_numbers<[1], [0], [0], [1], [0, 0, 1, 1], [], []>} : vector<1x32xbf16>, vector<32x128xbf16>, vector<1x128xf32> -> vector<1x128xf32>
    %242 = arith.addf %239, %241 : vector<1x128xf32>
    %243 = vector.extract_strided_slice %242 {offsets = [0, 0], sizes = [1, 32], strides = [1, 1]} : vector<1x128xf32> to vector<1x32xf32>
    %244 = arith.negf %243 : vector<1x32xf32>
    %245 = math.exp %244 : vector<1x32xf32>
    %cst_87 = arith.constant 1.000000e+00 : f32
    %246 = vector.broadcast %cst_87 : f32 to vector<1x32xf32>
    %247 = arith.addf %246, %245 : vector<1x32xf32>
    %248 = arith.divf %246, %247 : vector<1x32xf32>
    %249 = vector.extract_strided_slice %242 {offsets = [0, 32], sizes = [1, 32], strides = [1, 1]} : vector<1x128xf32> to vector<1x32xf32>
    %250 = arith.negf %249 : vector<1x32xf32>
    %251 = math.exp %250 : vector<1x32xf32>
    %cst_88 = arith.constant 1.000000e+00 : f32
    %252 = vector.broadcast %cst_88 : f32 to vector<1x32xf32>
    %253 = arith.addf %252, %251 : vector<1x32xf32>
    %254 = arith.divf %252, %253 : vector<1x32xf32>
    %255 = vector.extract_strided_slice %242 {offsets = [0, 64], sizes = [1, 32], strides = [1, 1]} : vector<1x128xf32> to vector<1x32xf32>
    %256 = math.tanh %255 : vector<1x32xf32>
    %257 = vector.extract_strided_slice %242 {offsets = [0, 96], sizes = [1, 32], strides = [1, 1]} : vector<1x128xf32> to vector<1x32xf32>
    %258 = arith.negf %257 : vector<1x32xf32>
    %259 = math.exp %258 : vector<1x32xf32>
    %cst_89 = arith.constant 1.000000e+00 : f32
    %260 = vector.broadcast %cst_89 : f32 to vector<1x32xf32>
    %261 = arith.addf %260, %259 : vector<1x32xf32>
    %262 = arith.divf %260, %261 : vector<1x32xf32>
    %263 = arith.mulf %254, %236 : vector<1x32xf32>
    %264 = arith.mulf %248, %256 : vector<1x32xf32>
    %265 = arith.addf %263, %264 : vector<1x32xf32>
    %266 = math.tanh %265 : vector<1x32xf32>
    %267 = arith.mulf %262, %266 : vector<1x32xf32>
    %268 = vector.extract_strided_slice %206 {offsets = [2, 0], sizes = [1, 128], strides = [1, 1]} : vector<4x128xf32> to vector<1x128xf32>
    %269 = arith.truncf %267 : vector<1x32xf32> to vector<1x32xbf16>
    %cst_90 = arith.constant dense<0.000000e+00> : vector<1x128xf32>
    %270 = tpu.matmul %269, %207, %cst_90 {dimension_numbers = #tpu.dot_dimension_numbers<[1], [0], [0], [1], [0, 0, 1, 1], [], []>} : vector<1x32xbf16>, vector<32x128xbf16>, vector<1x128xf32> -> vector<1x128xf32>
    %271 = arith.addf %268, %270 : vector<1x128xf32>
    %272 = vector.extract_strided_slice %271 {offsets = [0, 0], sizes = [1, 32], strides = [1, 1]} : vector<1x128xf32> to vector<1x32xf32>
    %273 = arith.negf %272 : vector<1x32xf32>
    %274 = math.exp %273 : vector<1x32xf32>
    %cst_91 = arith.constant 1.000000e+00 : f32
    %275 = vector.broadcast %cst_91 : f32 to vector<1x32xf32>
    %276 = arith.addf %275, %274 : vector<1x32xf32>
    %277 = arith.divf %275, %276 : vector<1x32xf32>
    %278 = vector.extract_strided_slice %271 {offsets = [0, 32], sizes = [1, 32], strides = [1, 1]} : vector<1x128xf32> to vector<1x32xf32>
    %279 = arith.negf %278 : vector<1x32xf32>
    %280 = math.exp %279 : vector<1x32xf32>
    %cst_92 = arith.constant 1.000000e+00 : f32
    %281 = vector.broadcast %cst_92 : f32 to vector<1x32xf32>
    %282 = arith.addf %281, %280 : vector<1x32xf32>
    %283 = arith.divf %281, %282 : vector<1x32xf32>
    %284 = vector.extract_strided_slice %271 {offsets = [0, 64], sizes = [1, 32], strides = [1, 1]} : vector<1x128xf32> to vector<1x32xf32>
    %285 = math.tanh %284 : vector<1x32xf32>
    %286 = vector.extract_strided_slice %271 {offsets = [0, 96], sizes = [1, 32], strides = [1, 1]} : vector<1x128xf32> to vector<1x32xf32>
    %287 = arith.negf %286 : vector<1x32xf32>
    %288 = math.exp %287 : vector<1x32xf32>
    %cst_93 = arith.constant 1.000000e+00 : f32
    %289 = vector.broadcast %cst_93 : f32 to vector<1x32xf32>
    %290 = arith.addf %289, %288 : vector<1x32xf32>
    %291 = arith.divf %289, %290 : vector<1x32xf32>
    %292 = arith.mulf %283, %265 : vector<1x32xf32>
    %293 = arith.mulf %277, %285 : vector<1x32xf32>
    %294 = arith.addf %292, %293 : vector<1x32xf32>
    %295 = math.tanh %294 : vector<1x32xf32>
    %296 = arith.mulf %291, %295 : vector<1x32xf32>
    %297 = vector.extract_strided_slice %206 {offsets = [3, 0], sizes = [1, 128], strides = [1, 1]} : vector<4x128xf32> to vector<1x128xf32>
    %298 = arith.truncf %296 : vector<1x32xf32> to vector<1x32xbf16>
    %cst_94 = arith.constant dense<0.000000e+00> : vector<1x128xf32>
    %299 = tpu.matmul %298, %207, %cst_94 {dimension_numbers = #tpu.dot_dimension_numbers<[1], [0], [0], [1], [0, 0, 1, 1], [], []>} : vector<1x32xbf16>, vector<32x128xbf16>, vector<1x128xf32> -> vector<1x128xf32>
    %300 = arith.addf %297, %299 : vector<1x128xf32>
    %301 = vector.extract_strided_slice %300 {offsets = [0, 0], sizes = [1, 32], strides = [1, 1]} : vector<1x128xf32> to vector<1x32xf32>
    %302 = arith.negf %301 : vector<1x32xf32>
    %303 = math.exp %302 : vector<1x32xf32>
    %cst_95 = arith.constant 1.000000e+00 : f32
    %304 = vector.broadcast %cst_95 : f32 to vector<1x32xf32>
    %305 = arith.addf %304, %303 : vector<1x32xf32>
    %306 = arith.divf %304, %305 : vector<1x32xf32>
    %307 = vector.extract_strided_slice %300 {offsets = [0, 32], sizes = [1, 32], strides = [1, 1]} : vector<1x128xf32> to vector<1x32xf32>
    %308 = arith.negf %307 : vector<1x32xf32>
    %309 = math.exp %308 : vector<1x32xf32>
    %cst_96 = arith.constant 1.000000e+00 : f32
    %310 = vector.broadcast %cst_96 : f32 to vector<1x32xf32>
    %311 = arith.addf %310, %309 : vector<1x32xf32>
    %312 = arith.divf %310, %311 : vector<1x32xf32>
    %313 = vector.extract_strided_slice %300 {offsets = [0, 64], sizes = [1, 32], strides = [1, 1]} : vector<1x128xf32> to vector<1x32xf32>
    %314 = math.tanh %313 : vector<1x32xf32>
    %315 = vector.extract_strided_slice %300 {offsets = [0, 96], sizes = [1, 32], strides = [1, 1]} : vector<1x128xf32> to vector<1x32xf32>
    %316 = arith.negf %315 : vector<1x32xf32>
    %317 = math.exp %316 : vector<1x32xf32>
    %cst_97 = arith.constant 1.000000e+00 : f32
    %318 = vector.broadcast %cst_97 : f32 to vector<1x32xf32>
    %319 = arith.addf %318, %317 : vector<1x32xf32>
    %320 = arith.divf %318, %319 : vector<1x32xf32>
    %321 = arith.mulf %312, %294 : vector<1x32xf32>
    %322 = arith.mulf %306, %314 : vector<1x32xf32>
    %323 = arith.addf %321, %322 : vector<1x32xf32>
    %324 = math.tanh %323 : vector<1x32xf32>
    %325 = arith.mulf %320, %324 : vector<1x32xf32>
    %326 = arith.truncf %325 : vector<1x32xf32> to vector<1x32xbf16>
    %c0_98 = arith.constant 0 : index
    %c0_99 = arith.constant 0 : index
    %327 = vector.load %arg22[%c0_98, %c0_99] : memref<32x100xbf16, #tpu.memory_space<vmem>>, vector<32x100xbf16>
    %cst_100 = arith.constant dense<0.000000e+00> : vector<1x100xf32>
    %328 = tpu.matmul %326, %327, %cst_100 {dimension_numbers = #tpu.dot_dimension_numbers<[1], [0], [0], [1], [0, 0, 1, 1], [], []>} : vector<1x32xbf16>, vector<32x100xbf16>, vector<1x100xf32> -> vector<1x100xf32>
    %c0_101 = arith.constant 0 : index
    %c0_102 = arith.constant 0 : index
    %329 = vector.load %arg23[%c0_101, %c0_102] : memref<1x100xf32, #tpu.memory_space<vmem>>, vector<1x100xf32>
    %330 = arith.addf %328, %329 : vector<1x100xf32>
    %331 = arith.truncf %330 : vector<1x100xf32> to vector<1x100xbf16>
    %c0_103 = arith.constant 0 : index
    %c0_104 = arith.constant 0 : index
    %332 = vector.load %arg24[%c0_103, %c0_104] : memref<100x1xbf16, #tpu.memory_space<vmem>>, vector<100x1xbf16>
    %cst_105 = arith.constant dense<0.000000e+00> : vector<1x1xf32>
    %333 = tpu.matmul %331, %332, %cst_105 {dimension_numbers = #tpu.dot_dimension_numbers<[1], [0], [0], [1], [0, 0, 1, 1], [], []>} : vector<1x100xbf16>, vector<100x1xbf16>, vector<1x1xf32> -> vector<1x1xf32>
    %c0_106 = arith.constant 0 : index
    %c0_107 = arith.constant 0 : index
    %334 = vector.load %arg25[%c0_106, %c0_107] : memref<1x1xf32, #tpu.memory_space<vmem>>, vector<1x1xf32>
    %335 = arith.addf %333, %334 : vector<1x1xf32>
    %336 = arith.negf %335 : vector<1x1xf32>
    %337 = math.exp %336 : vector<1x1xf32>
    %cst_108 = arith.constant 1.000000e+00 : f32
    %338 = vector.broadcast %cst_108 : f32 to vector<1x1xf32>
    %339 = arith.addf %338, %337 : vector<1x1xf32>
    %340 = arith.divf %338, %339 : vector<1x1xf32>
    %341 = vector.shape_cast %340 : vector<1x1xf32> to vector<1x1x1xf32>
    %c0_109 = arith.constant 0 : index
    %c0_110 = arith.constant 0 : index
    %c0_111 = arith.constant 0 : index
    %342 = vector.load %arg27[%c0_109, %c0_110, %c0_111] : memref<1x1x1xf32, #tpu.memory_space<vmem>>, vector<1x1x1xf32>
    tpu.vector_store %arg27[%c0_109, %c0_110, %c0_111], %341 {strides = array<i32>} : memref<1x1x1xf32, #tpu.memory_space<vmem>>, vector<1x1x1xf32>,
    return
  }
  func.func @transform_0(%arg0: i32) -> (i32, i32, i32) {
    %c0_i32 = arith.constant 0 : i32
    %c0_i32_0 = arith.constant 0 : i32
    %c0_i32_1 = arith.constant 0 : i32
    return %arg0, %c0_i32, %c0_i32_0 : i32, i32, i32
  }
  func.func @transform_1(%arg0: i32) -> (i32, i32, i32) {
    %c0_i32 = arith.constant 0 : i32
    %c0_i32_0 = arith.constant 0 : i32
    %c0_i32_1 = arith.constant 0 : i32
    return %arg0, %c0_i32, %c0_i32_0 : i32, i32, i32
  }
  func.func @transform_2(%arg0: i32) -> (i32, i32, i32) {
    %c0_i32 = arith.constant 0 : i32
    %c0_i32_0 = arith.constant 0 : i32
    %c0_i32_1 = arith.constant 0 : i32
    %c0_i32_2 = arith.constant 0 : i32
    return %c0_i32, %c0_i32_0, %c0_i32_1 : i32, i32, i32
  }
  func.func @transform_3(%arg0: i32) -> (i32, i32, i32) {
    %c0_i32 = arith.constant 0 : i32
    %c0_i32_0 = arith.constant 0 : i32
    %c0_i32_1 = arith.constant 0 : i32
    %c0_i32_2 = arith.constant 0 : i32
    return %c0_i32, %c0_i32_0, %c0_i32_1 : i32, i32, i32
  }
  func.func @transform_4(%arg0: i32) -> (i32, i32) {
    %c0_i32 = arith.constant 0 : i32
    %c0_i32_0 = arith.constant 0 : i32
    %c0_i32_1 = arith.constant 0 : i32
    return %c0_i32, %c0_i32_0 : i32, i32
  }
  func.func @transform_5(%arg0: i32) -> (i32, i32) {
    %c0_i32 = arith.constant 0 : i32
    %c0_i32_0 = arith.constant 0 : i32
    %c0_i32_1 = arith.constant 0 : i32
    return %c0_i32, %c0_i32_0 : i32, i32
  }
  func.func @transform_6(%arg0: i32) -> (i32, i32) {
    %c0_i32 = arith.constant 0 : i32
    %c0_i32_0 = arith.constant 0 : i32
    %c0_i32_1 = arith.constant 0 : i32
    return %c0_i32, %c0_i32_0 : i32, i32
  }
  func.func @transform_7(%arg0: i32) -> (i32, i32) {
    %c0_i32 = arith.constant 0 : i32
    %c0_i32_0 = arith.constant 0 : i32
    %c0_i32_1 = arith.constant 0 : i32
    return %c0_i32, %c0_i32_0 : i32, i32
  }
  func.func @transform_8(%arg0: i32) -> (i32, i32, i32) {
    %c0_i32 = arith.constant 0 : i32
    %c0_i32_0 = arith.constant 0 : i32
    %c0_i32_1 = arith.constant 0 : i32
    %c0_i32_2 = arith.constant 0 : i32
    return %c0_i32, %c0_i32_0, %c0_i32_1 : i32, i32, i32
  }
  func.func @transform_9(%arg0: i32) -> (i32, i32, i32) {
    %c0_i32 = arith.constant 0 : i32
    %c0_i32_0 = arith.constant 0 : i32
    %c0_i32_1 = arith.constant 0 : i32
    %c0_i32_2 = arith.constant 0 : i32
    return %c0_i32, %c0_i32_0, %c0_i32_1 : i32, i32, i32
  }
  func.func @transform_10(%arg0: i32) -> (i32, i32) {
    %c0_i32 = arith.constant 0 : i32
    %c0_i32_0 = arith.constant 0 : i32
    %c0_i32_1 = arith.constant 0 : i32
    return %c0_i32, %c0_i32_0 : i32, i32
  }
  func.func @transform_11(%arg0: i32) -> (i32, i32) {
    %c0_i32 = arith.constant 0 : i32
    %c0_i32_0 = arith.constant 0 : i32
    %c0_i32_1 = arith.constant 0 : i32
    return %c0_i32, %c0_i32_0 : i32, i32
  }
  func.func @transform_12(%arg0: i32) -> (i32, i32) {
    %c0_i32 = arith.constant 0 : i32
    %c0_i32_0 = arith.constant 0 : i32
    %c0_i32_1 = arith.constant 0 : i32
    return %c0_i32, %c0_i32_0 : i32, i32
  }
  func.func @transform_13(%arg0: i32) -> (i32, i32) {
    %c0_i32 = arith.constant 0 : i32
    %c0_i32_0 = arith.constant 0 : i32
    %c0_i32_1 = arith.constant 0 : i32
    return %c0_i32, %c0_i32_0 : i32, i32
  }
  func.func @transform_14(%arg0: i32) -> (i32, i32, i32) {
    %c0_i32 = arith.constant 0 : i32
    %c0_i32_0 = arith.constant 0 : i32
    %c0_i32_1 = arith.constant 0 : i32
    %c0_i32_2 = arith.constant 0 : i32
    return %c0_i32, %c0_i32_0, %c0_i32_1 : i32, i32, i32
  }
  func.func @transform_15(%arg0: i32) -> (i32, i32, i32) {
    %c0_i32 = arith.constant 0 : i32
    %c0_i32_0 = arith.constant 0 : i32
    %c0_i32_1 = arith.constant 0 : i32
    %c0_i32_2 = arith.constant 0 : i32
    return %c0_i32, %c0_i32_0, %c0_i32_1 : i32, i32, i32
  }
  func.func @transform_16(%arg0: i32) -> (i32, i32) {
    %c0_i32 = arith.constant 0 : i32
    %c0_i32_0 = arith.constant 0 : i32
    %c0_i32_1 = arith.constant 0 : i32
    return %c0_i32, %c0_i32_0 : i32, i32
  }
  func.func @transform_17(%arg0: i32) -> (i32, i32) {
    %c0_i32 = arith.constant 0 : i32
    %c0_i32_0 = arith.constant 0 : i32
    %c0_i32_1 = arith.constant 0 : i32
    return %c0_i32, %c0_i32_0 : i32, i32
  }
  func.func @transform_18(%arg0: i32) -> (i32, i32) {
    %c0_i32 = arith.constant 0 : i32
    %c0_i32_0 = arith.constant 0 : i32
    %c0_i32_1 = arith.constant 0 : i32
    return %c0_i32, %c0_i32_0 : i32, i32
  }
  func.func @transform_19(%arg0: i32) -> (i32, i32) {
    %c0_i32 = arith.constant 0 : i32
    %c0_i32_0 = arith.constant 0 : i32
    %c0_i32_1 = arith.constant 0 : i32
    return %c0_i32, %c0_i32_0 : i32, i32
  }
  func.func @transform_20(%arg0: i32) -> (i32, i32) {
    %c0_i32 = arith.constant 0 : i32
    %c0_i32_0 = arith.constant 0 : i32
    %c0_i32_1 = arith.constant 0 : i32
    return %c0_i32, %c0_i32_0 : i32, i32
  }
  func.func @transform_21(%arg0: i32) -> (i32, i32) {
    %c0_i32 = arith.constant 0 : i32
    %c0_i32_0 = arith.constant 0 : i32
    %c0_i32_1 = arith.constant 0 : i32
    return %c0_i32, %c0_i32_0 : i32, i32
  }
  func.func @transform_22(%arg0: i32) -> (i32, i32) {
    %c0_i32 = arith.constant 0 : i32
    %c0_i32_0 = arith.constant 0 : i32
    %c0_i32_1 = arith.constant 0 : i32
    return %c0_i32, %c0_i32_0 : i32, i32
  }
  func.func @transform_23(%arg0: i32) -> (i32, i32) {
    %c0_i32 = arith.constant 0 : i32
    %c0_i32_0 = arith.constant 0 : i32
    %c0_i32_1 = arith.constant 0 : i32
    return %c0_i32, %c0_i32_0 : i32, i32
  }
  func.func @transform_24(%arg0: i32) -> (i32, i32) {
    %c0_i32 = arith.constant 0 : i32
    %c0_i32_0 = arith.constant 0 : i32
    %c0_i32_1 = arith.constant 0 : i32
    return %c0_i32, %c0_i32_0 : i32, i32
  }
  func.func @transform_25(%arg0: i32) -> (i32, i32, i32) {
    %c0_i32 = arith.constant 0 : i32
    %c0_i32_0 = arith.constant 0 : i32
    %c0_i32_1 = arith.constant 0 : i32
    return %arg0, %c0_i32, %c0_i32_0 : i32, i32, i32
  }
  func.func @transform_26(%arg0: i32) -> (i32, i32, i32) {
    %c0_i32 = arith.constant 0 : i32
    %c0_i32_0 = arith.constant 0 : i32
    %c0_i32_1 = arith.constant 0 : i32
    return %arg0, %c0_i32, %c0_i32_0 : i32, i32, i32
  }
}

</mosaic_0001>

<llo_original>
// kernel: _lambda_.1
$region0: #{_lambda_.1}
  #allocation0 [shape = 'u32[]', space=smem, size = 0x4, offset = 0x4, fixed_abs, tag = 'smem constant byte address 0x4 - core index']
  #allocation1 [shape = 'u32[144,128]{1,0:T(1,128)}', space=vmem, size = 0x12000, scoped, tag = 'internal scratch']
  #allocation2 [shape = 'f32[1,1]{1,0:T(1,128)S(1)}', space=vmem, size = 0x200, scoped, tag = 'scoped memory for _lambda_.1']
  #allocation3 [shape = 'f32[1,1]{1,0:T(1,128)S(1)}', space=vmem, size = 0x200, scoped, tag = 'scoped memory for _lambda_.1']
  %s0 = inlined_call_operand.vmem [shape: f32[8,8,32], index: 0, kind: input, shape index: {}]
  %s1 = inlined_call_operand.vmem [shape: f32[8,1,8], index: 1, kind: input, shape index: {}]
  %s2 = inlined_call_operand.vmem [shape: f32[1,1,32], index: 2, kind: input, shape index: {}]
  %s3 = inlined_call_operand.vmem [shape: f32[1,1,32], index: 3, kind: input, shape index: {}]
  %s4 = inlined_call_operand.vmem [shape: bf16[32,96], index: 4, kind: input, shape index: {}]
  %s5 = inlined_call_operand.vmem [shape: f32[1,96], index: 5, kind: input, shape index: {}]
  %s6 = inlined_call_operand.vmem [shape: bf16[32,32], index: 6, kind: input, shape index: {}]
  %s7 = inlined_call_operand.vmem [shape: f32[1,32], index: 7, kind: input, shape index: {}]
  %s8 = inlined_call_operand.vmem [shape: f32[1,1,32], index: 8, kind: input, shape index: {}]
  %s9 = inlined_call_operand.vmem [shape: f32[1,1,32], index: 9, kind: input, shape index: {}]
  %s10 = inlined_call_operand.vmem [shape: bf16[32,64], index: 10, kind: input, shape index: {}]
  %s11 = inlined_call_operand.vmem [shape: f32[1,64], index: 11, kind: input, shape index: {}]
  %s12 = inlined_call_operand.vmem [shape: bf16[64,32], index: 12, kind: input, shape index: {}]
  %s13 = inlined_call_operand.vmem [shape: f32[1,32], index: 13, kind: input, shape index: {}]
  %s14 = inlined_call_operand.vmem [shape: f32[1,1,32], index: 14, kind: input, shape index: {}]
  %s15 = inlined_call_operand.vmem [shape: f32[1,1,32], index: 15, kind: input, shape index: {}]
  %s16 = inlined_call_operand.vmem [shape: bf16[32,1], index: 16, kind: input, shape index: {}]
  %s17 = inlined_call_operand.<no memory space> [shape: f32[1,1], index: 17, kind: input, shape index: {}]
  %s18 = inlined_call_operand.vmem [shape: bf16[32,128], index: 18, kind: input, shape index: {}]
  %s19 = inlined_call_operand.vmem [shape: bf16[32,128], index: 19, kind: input, shape index: {}]
  %s20 = inlined_call_operand.vmem [shape: f32[1,128], index: 20, kind: input, shape index: {}]
  %s21 = inlined_call_operand.vmem [shape: bf16[32,100], index: 21, kind: input, shape index: {}]
  %s22 = inlined_call_operand.vmem [shape: f32[1,100], index: 22, kind: input, shape index: {}]
  %s23 = inlined_call_operand.vmem [shape: bf16[100,1], index: 23, kind: input, shape index: {}]
  %s24 = inlined_call_operand.<no memory space> [shape: f32[1,1], index: 24, kind: input, shape index: {}]
  %s25 = inlined_call_operand.vmem [shape: f32[2,4,1], index: 25, kind: output, shape index: {0}]
  %s26 = inlined_call_operand.vmem [shape: f32[2,1,1], index: 26, kind: output, shape index: {1}]
  %27 = xla_tuple %s25, %s26
  %s28 = sld [smem:[#allocation0]]
  $region141: #{_lambda_.1} parent=0
    _
  %s30 = ssub.s32 1, %s28
  %s31 = scalar_select 0, %s30, %s28
  %v32 = vstv %s17
  %33 = vst [vmem:[#allocation2] sm:$0x1] %v32
  %v34 = vstv %s24
  %35 = vst [vmem:[#allocation3] sm:$0x1] %v34
  loop: start=0, step=1, limit=4
  $region2: #{_lambda_.1} parent=0 // loop_pre_header
    _
  $region3: #{_lambda_.1} parent=0 // loop_header
    %s37 = sphi 0, %s41
    %p38 = scmp.ge.s32.totalorder %s37, 4
    %s47 = sphi 0, %s49
    %s50 = sphi 0, %s47
    %s51 = sphi 0, %s50
    %s67 = sphi 0, %s51
    %s73 = sphi 0, %s75
    %s76 = sphi 0, %s73
    %s77 = sphi 0, %s76
    %s93 = sphi 0, %s77
    %s97 = sphi 0, %s97
    %s99 = sphi 0, %s97
    %s100 = sphi 0, %s99
    %s114 = sphi 0, %s100
    %s118 = sphi 0, %s118
    %s120 = sphi 0, %s118
    %s121 = sphi 0, %s120
    %s135 = sphi 0, %s121
    %s139 = sphi 0, %s139
    %s141 = sphi 0, %s139
    %s142 = sphi 0, %s141
    %s156 = sphi 0, %s142
    %s160 = sphi 0, %s160
    %s162 = sphi 0, %s160
    %s163 = sphi 0, %s162
    %s177 = sphi 0, %s163
    %s181 = sphi 0, %s181
    %s183 = sphi 0, %s181
    %s184 = sphi 0, %s183
    %s198 = sphi 0, %s184
    %s202 = sphi 0, %s202
    %s204 = sphi 0, %s202
    %s205 = sphi 0, %s204
    %s219 = sphi 0, %s205
    %s223 = sphi 0, %s223
    %s225 = sphi 0, %s223
    %s226 = sphi 0, %s225
    %s240 = sphi 0, %s226
    %s244 = sphi 0, %s244
    %s246 = sphi 0, %s244
    %s247 = sphi 0, %s246
    %s261 = sphi 0, %s247
    %s265 = sphi 0, %s265
    %s267 = sphi 0, %s265
    %s268 = sphi 0, %s267
    %s282 = sphi 0, %s268
    %s286 = sphi 0, %s286
    %s288 = sphi 0, %s286
    %s289 = sphi 0, %s288
    %s303 = sphi 0, %s289
    %s307 = sphi 0, %s307
    %s309 = sphi 0, %s307
    %s310 = sphi 0, %s309
    %s324 = sphi 0, %s310
    %s328 = sphi 0, %s328
    %s330 = sphi 0, %s328
    %s331 = sphi 0, %s330
    %s345 = sphi 0, %s331
    %s349 = sphi 0, %s349
    %s351 = sphi 0, %s349
    %s352 = sphi 0, %s351
    %s366 = sphi 0, %s352
    %s370 = sphi 0, %s370
    %s372 = sphi 0, %s370
    %s373 = sphi 0, %s372
    %s387 = sphi 0, %s373
    %s391 = sphi 0, %s391
    %s393 = sphi 0, %s391
    %s394 = sphi 0, %s393
    %s408 = sphi 0, %s394
    %s412 = sphi 0, %s412
    %s414 = sphi 0, %s412
    %s415 = sphi 0, %s414
    %s429 = sphi 0, %s415
    %s433 = sphi 0, %s433
    %s435 = sphi 0, %s433
    %s436 = sphi 0, %s435
    %s450 = sphi 0, %s436
    %s454 = sphi 0, %s454
    %s456 = sphi 0, %s454
    %s457 = sphi 0, %s456
    %s471 = sphi 0, %s457
    %s475 = sphi 0, %s475
    %s477 = sphi 0, %s475
    %s478 = sphi 0, %s477
    %s492 = sphi 0, %s478
    %s496 = sphi 0, %s496
    %s498 = sphi 0, %s496
    %s499 = sphi 0, %s498
    %s513 = sphi 0, %s499
    %s517 = sphi 0, %s517
    %s519 = sphi 0, %s517
    %s520 = sphi 0, %s519
    %s534 = sphi 0, %s520
    %s538 = sphi 0, %s538
    %s540 = sphi 0, %s538
    %s541 = sphi 0, %s540
    %s555 = sphi 0, %s541
    %s559 = sphi 0, %s559
    %s561 = sphi 0, %s559
    %s562 = sphi 0, %s561
    %s576 = sphi 0, %s562
    %s582 = sphi 0, %s584
    %s585 = sphi 0, %s582
    %s586 = sphi 0, %s585
    %s602 = sphi 0, %s586
    %s608 = sphi 0, %s610
    %s611 = sphi 0, %s608
    %s612 = sphi 0, %s611
    %s628 = sphi 0, %s612
  $region4: #{_lambda_.1} parent=0 // loop_header_branch
    %40 = sbr.rel (%p38) target = $region8
  $region5: #{_lambda_.1} parent=0 // loop_body
    %s42 = ssub.s32 %s37, 1
    %s43 = ssub.s32 %s37, 2
    %s44 = sadd.s32 %s37, 1
    %s45 = ssub.s32 %s37, %s44
    %p46 = scmp.eq.s32.totalorder %s45, 0
    %s48 = sadd.s32 %s47, 1
    %s49 = scalar_select %p46, %s47, %s48
    %p52 = pneg %p46
    %p53 = scmp.eq.s32.totalorder %s37, 1
    %p54 = por %p52, %p53
    %p55 = scmp.ne.s32.totalorder %s47, %s50
    %p56 = scmp.eq.s32.totalorder %s37, 0
    %p57 = por %p55, %p56
    %p58 = scmp.ne.s32.totalorder %s47, %s50
    %p59 = scmp.eq.s32.totalorder %s42, 1
    %p60 = por %p58, %p59
    %p61 = scmp.ne.s32.totalorder %s50, %s51
    %p62 = scmp.eq.s32.totalorder %s42, 0
    %p63 = por %p61, %p62
    %p64 = scmp.ne.s32.totalorder %s50, %s51
    %p65 = scmp.eq.s32.totalorder %s43, 1
    %p66 = por %p64, %p65
    %p68 = scmp.ne.s32.totalorder %s51, %s67
    %p69 = scmp.eq.s32.totalorder %s43, 0
    %p70 = por %p68, %p69
    %s71 = ssub.s32 %s37, %s44
    %p72 = scmp.eq.s32.totalorder %s71, 0
    %s74 = sadd.s32 %s73, 1
    %s75 = scalar_select %p72, %s73, %s74
    %p78 = pneg %p72
    %p79 = scmp.eq.s32.totalorder %s37, 1
    %p80 = por %p78, %p79
    %p81 = scmp.ne.s32.totalorder %s73, %s76
    %p82 = scmp.eq.s32.totalorder %s37, 0
    %p83 = por %p81, %p82
    %p84 = scmp.ne.s32.totalorder %s73, %s76
    %p85 = scmp.eq.s32.totalorder %s42, 1
    %p86 = por %p84, %p85
    %p87 = scmp.ne.s32.totalorder %s76, %s77
    %p88 = scmp.eq.s32.totalorder %s42, 0
    %p89 = por %p87, %p88
    %p90 = scmp.ne.s32.totalorder %s76, %s77
    %p91 = scmp.eq.s32.totalorder %s43, 1
    %p92 = por %p90, %p91
    %p94 = scmp.ne.s32.totalorder %s77, %s93
    %p95 = scmp.eq.s32.totalorder %s43, 0
    %p96 = por %p94, %p95
    %s98 = sadd.s32 %s97, 1
    %p101 = scmp.eq.s32.totalorder %s37, 1
    %p102 = scmp.ne.s32.totalorder %s97, %s99
    %p103 = scmp.eq.s32.totalorder %s37, 0
    %p104 = por %p102, %p103
    %p105 = scmp.ne.s32.totalorder %s97, %s99
    %p106 = scmp.eq.s32.totalorder %s42, 1
    %p107 = por %p105, %p106
    %p108 = scmp.ne.s32.totalorder %s99, %s100
    %p109 = scmp.eq.s32.totalorder %s42, 0
    %p110 = por %p108, %p109
    %p111 = scmp.ne.s32.totalorder %s99, %s100
    %p112 = scmp.eq.s32.totalorder %s43, 1
    %p113 = por %p111, %p112
    %p115 = scmp.ne.s32.totalorder %s100, %s114
    %p116 = scmp.eq.s32.totalorder %s43, 0
    %p117 = por %p115, %p116
    %s119 = sadd.s32 %s118, 1
    %p122 = scmp.eq.s32.totalorder %s37, 1
    %p123 = scmp.ne.s32.totalorder %s118, %s120
    %p124 = scmp.eq.s32.totalorder %s37, 0
    %p125 = por %p123, %p124
    %p126 = scmp.ne.s32.totalorder %s118, %s120
    %p127 = scmp.eq.s32.totalorder %s42, 1
    %p128 = por %p126, %p127
    %p129 = scmp.ne.s32.totalorder %s120, %s121
    %p130 = scmp.eq.s32.totalorder %s42, 0
    %p131 = por %p129, %p130
    %p132 = scmp.ne.s32.totalorder %s120, %s121
    %p133 = scmp.eq.s32.totalorder %s43, 1
    %p134 = por %p132, %p133
    %p136 = scmp.ne.s32.totalorder %s121, %s135
    %p137 = scmp.eq.s32.totalorder %s43, 0
    %p138 = por %p136, %p137
    %s140 = sadd.s32 %s139, 1
    %p143 = scmp.eq.s32.totalorder %s37, 1
    %p144 = scmp.ne.s32.totalorder %s139, %s141
    %p145 = scmp.eq.s32.totalorder %s37, 0
    %p146 = por %p144, %p145
    %p147 = scmp.ne.s32.totalorder %s139, %s141
    %p148 = scmp.eq.s32.totalorder %s42, 1
    %p149 = por %p147, %p148
    %p150 = scmp.ne.s32.totalorder %s141, %s142
    %p151 = scmp.eq.s32.totalorder %s42, 0
    %p152 = por %p150, %p151
    %p153 = scmp.ne.s32.totalorder %s141, %s142
    %p154 = scmp.eq.s32.totalorder %s43, 1
    %p155 = por %p153, %p154
    %p157 = scmp.ne.s32.totalorder %s142, %s156
    %p158 = scmp.eq.s32.totalorder %s43, 0
    %p159 = por %p157, %p158
    %s161 = sadd.s32 %s160, 1
    %p164 = scmp.eq.s32.totalorder %s37, 1
    %p165 = scmp.ne.s32.totalorder %s160, %s162
    %p166 = scmp.eq.s32.totalorder %s37, 0
    %p167 = por %p165, %p166
    %p168 = scmp.ne.s32.totalorder %s160, %s162
    %p169 = scmp.eq.s32.totalorder %s42, 1
    %p170 = por %p168, %p169
    %p171 = scmp.ne.s32.totalorder %s162, %s163
    %p172 = scmp.eq.s32.totalorder %s42, 0
    %p173 = por %p171, %p172
    %p174 = scmp.ne.s32.totalorder %s162, %s163
    %p175 = scmp.eq.s32.totalorder %s43, 1
    %p176 = por %p174, %p175
    %p178 = scmp.ne.s32.totalorder %s163, %s177
    %p179 = scmp.eq.s32.totalorder %s43, 0
    %p180 = por %p178, %p179
    %s182 = sadd.s32 %s181, 1
    %p185 = scmp.eq.s32.totalorder %s37, 1
    %p186 = scmp.ne.s32.totalorder %s181, %s183
    %p187 = scmp.eq.s32.totalorder %s37, 0
    %p188 = por %p186, %p187
    %p189 = scmp.ne.s32.totalorder %s181, %s183
    %p190 = scmp.eq.s32.totalorder %s42, 1
    %p191 = por %p189, %p190
    %p192 = scmp.ne.s32.totalorder %s183, %s184
    %p193 = scmp.eq.s32.totalorder %s42, 0
    %p194 = por %p192, %p193
    %p195 = scmp.ne.s32.totalorder %s183, %s184
    %p196 = scmp.eq.s32.totalorder %s43, 1
    %p197 = por %p195, %p196
    %p199 = scmp.ne.s32.totalorder %s184, %s198
    %p200 = scmp.eq.s32.totalorder %s43, 0
    %p201 = por %p199, %p200
    %s203 = sadd.s32 %s202, 1
    %p206 = scmp.eq.s32.totalorder %s37, 1
    %p207 = scmp.ne.s32.totalorder %s202, %s204
    %p208 = scmp.eq.s32.totalorder %s37, 0
    %p209 = por %p207, %p208
    %p210 = scmp.ne.s32.totalorder %s202, %s204
    %p211 = scmp.eq.s32.totalorder %s42, 1
    %p212 = por %p210, %p211
    %p213 = scmp.ne.s32.totalorder %s204, %s205
    %p214 = scmp.eq.s32.totalorder %s42, 0
    %p215 = por %p213, %p214
    %p216 = scmp.ne.s32.totalorder %s204, %s205
    %p217 = scmp.eq.s32.totalorder %s43, 1
    %p218 = por %p216, %p217
    %p220 = scmp.ne.s32.totalorder %s205, %s219
    %p221 = scmp.eq.s32.totalorder %s43, 0
    %p222 = por %p220, %p221
    %s224 = sadd.s32 %s223, 1
    %p227 = scmp.eq.s32.totalorder %s37, 1
    %p228 = scmp.ne.s32.totalorder %s223, %s225
    %p229 = scmp.eq.s32.totalorder %s37, 0
    %p230 = por %p228, %p229
    %p231 = scmp.ne.s32.totalorder %s223, %s225
    %p232 = scmp.eq.s32.totalorder %s42, 1
    %p233 = por %p231, %p232
    %p234 = scmp.ne.s32.totalorder %s225, %s226
    %p235 = scmp.eq.s32.totalorder %s42, 0
    %p236 = por %p234, %p235
    %p237 = scmp.ne.s32.totalorder %s225, %s226
    %p238 = scmp.eq.s32.totalorder %s43, 1
    %p239 = por %p237, %p238
    %p241 = scmp.ne.s32.totalorder %s226, %s240
    %p242 = scmp.eq.s32.totalorder %s43, 0
    %p243 = por %p241, %p242
    %s245 = sadd.s32 %s244, 1
    %p248 = scmp.eq.s32.totalorder %s37, 1
    %p249 = scmp.ne.s32.totalorder %s244, %s246
    %p250 = scmp.eq.s32.totalorder %s37, 0
    %p251 = por %p249, %p250
    %p252 = scmp.ne.s32.totalorder %s244, %s246
    %p253 = scmp.eq.s32.totalorder %s42, 1
    %p254 = por %p252, %p253
    %p255 = scmp.ne.s32.totalorder %s246, %s247
    %p256 = scmp.eq.s32.totalorder %s42, 0
    %p257 = por %p255, %p256
    %p258 = scmp.ne.s32.totalorder %s246, %s247
    %p259 = scmp.eq.s32.totalorder %s43, 1
    %p260 = por %p258, %p259
    %p262 = scmp.ne.s32.totalorder %s247, %s261
    %p263 = scmp.eq.s32.totalorder %s43, 0
    %p264 = por %p262, %p263
    %s266 = sadd.s32 %s265, 1
    %p269 = scmp.eq.s32.totalorder %s37, 1
    %p270 = scmp.ne.s32.totalorder %s265, %s267
    %p271 = scmp.eq.s32.totalorder %s37, 0
    %p272 = por %p270, %p271
    %p273 = scmp.ne.s32.totalorder %s265, %s267
    %p274 = scmp.eq.s32.totalorder %s42, 1
    %p275 = por %p273, %p274
    %p276 = scmp.ne.s32.totalorder %s267, %s268
    %p277 = scmp.eq.s32.totalorder %s42, 0
    %p278 = por %p276, %p277
    %p279 = scmp.ne.s32.totalorder %s267, %s268
    %p280 = scmp.eq.s32.totalorder %s43, 1
    %p281 = por %p279, %p280
    %p283 = scmp.ne.s32.totalorder %s268, %s282
    %p284 = scmp.eq.s32.totalorder %s43, 0
    %p285 = por %p283, %p284
    %s287 = sadd.s32 %s286, 1
    %p290 = scmp.eq.s32.totalorder %s37, 1
    %p291 = scmp.ne.s32.totalorder %s286, %s288
    %p292 = scmp.eq.s32.totalorder %s37, 0
    %p293 = por %p291, %p292
    %p294 = scmp.ne.s32.totalorder %s286, %s288
    %p295 = scmp.eq.s32.totalorder %s42, 1
    %p296 = por %p294, %p295
    %p297 = scmp.ne.s32.totalorder %s288, %s289
    %p298 = scmp.eq.s32.totalorder %s42, 0
    %p299 = por %p297, %p298
    %p300 = scmp.ne.s32.totalorder %s288, %s289
    %p301 = scmp.eq.s32.totalorder %s43, 1
    %p302 = por %p300, %p301
    %p304 = scmp.ne.s32.totalorder %s289, %s303
    %p305 = scmp.eq.s32.totalorder %s43, 0
    %p306 = por %p304, %p305
    %s308 = sadd.s32 %s307, 1
    %p311 = scmp.eq.s32.totalorder %s37, 1
    %p312 = scmp.ne.s32.totalorder %s307, %s309
    %p313 = scmp.eq.s32.totalorder %s37, 0
    %p314 = por %p312, %p313
    %p315 = scmp.ne.s32.totalorder %s307, %s309
    %p316 = scmp.eq.s32.totalorder %s42, 1
    %p317 = por %p315, %p316
    %p318 = scmp.ne.s32.totalorder %s309, %s310
    %p319 = scmp.eq.s32.totalorder %s42, 0
    %p320 = por %p318, %p319
    %p321 = scmp.ne.s32.totalorder %s309, %s310
    %p322 = scmp.eq.s32.totalorder %s43, 1
    %p323 = por %p321, %p322
    %p325 = scmp.ne.s32.totalorder %s310, %s324
    %p326 = scmp.eq.s32.totalorder %s43, 0
    %p327 = por %p325, %p326
    %s329 = sadd.s32 %s328, 1
    %p332 = scmp.eq.s32.totalorder %s37, 1
    %p333 = scmp.ne.s32.totalorder %s328, %s330
    %p334 = scmp.eq.s32.totalorder %s37, 0
    %p335 = por %p333, %p334
    %p336 = scmp.ne.s32.totalorder %s328, %s330
    %p337 = scmp.eq.s32.totalorder %s42, 1
    %p338 = por %p336, %p337
    %p339 = scmp.ne.s32.totalorder %s330, %s331
    %p340 = scmp.eq.s32.totalorder %s42, 0
    %p341 = por %p339, %p340
    %p342 = scmp.ne.s32.totalorder %s330, %s331
    %p343 = scmp.eq.s32.totalorder %s43, 1
    %p344 = por %p342, %p343
    %p346 = scmp.ne.s32.totalorder %s331, %s345
    %p347 = scmp.eq.s32.totalorder %s43, 0
    %p348 = por %p346, %p347
    %s350 = sadd.s32 %s349, 1
    %p353 = scmp.eq.s32.totalorder %s37, 1
    %p354 = scmp.ne.s32.totalorder %s349, %s351
    %p355 = scmp.eq.s32.totalorder %s37, 0
    %p356 = por %p354, %p355
    %p357 = scmp.ne.s32.totalorder %s349, %s351
    %p358 = scmp.eq.s32.totalorder %s42, 1
    %p359 = por %p357, %p358
    %p360 = scmp.ne.s32.totalorder %s351, %s352
    %p361 = scmp.eq.s32.totalorder %s42, 0
    %p362 = por %p360, %p361
    %p363 = scmp.ne.s32.totalorder %s351, %s352
    %p364 = scmp.eq.s32.totalorder %s43, 1
    %p365 = por %p363, %p364
    %p367 = scmp.ne.s32.totalorder %s352, %s366
    %p368 = scmp.eq.s32.totalorder %s43, 0
    %p369 = por %p367, %p368
    %s371 = sadd.s32 %s370, 1
    %p374 = scmp.eq.s32.totalorder %s37, 1
    %p375 = scmp.ne.s32.totalorder %s370, %s372
    %p376 = scmp.eq.s32.totalorder %s37, 0
    %p377 = por %p375, %p376
    %p378 = scmp.ne.s32.totalorder %s370, %s372
    %p379 = scmp.eq.s32.totalorder %s42, 1
    %p380 = por %p378, %p379
    %p381 = scmp.ne.s32.totalorder %s372, %s373
    %p382 = scmp.eq.s32.totalorder %s42, 0
    %p383 = por %p381, %p382
    %p384 = scmp.ne.s32.totalorder %s372, %s373
    %p385 = scmp.eq.s32.totalorder %s43, 1
    %p386 = por %p384, %p385
    %p388 = scmp.ne.s32.totalorder %s373, %s387
    %p389 = scmp.eq.s32.totalorder %s43, 0
    %p390 = por %p388, %p389
    %s392 = sadd.s32 %s391, 1
    %p395 = scmp.eq.s32.totalorder %s37, 1
    %p396 = scmp.ne.s32.totalorder %s391, %s393
    %p397 = scmp.eq.s32.totalorder %s37, 0
    %p398 = por %p396, %p397
    %p399 = scmp.ne.s32.totalorder %s391, %s393
    %p400 = scmp.eq.s32.totalorder %s42, 1
    %p401 = por %p399, %p400
    %p402 = scmp.ne.s32.totalorder %s393, %s394
    %p403 = scmp.eq.s32.totalorder %s42, 0
    %p404 = por %p402, %p403
    %p405 = scmp.ne.s32.totalorder %s393, %s394
    %p406 = scmp.eq.s32.totalorder %s43, 1
    %p407 = por %p405, %p406
    %p409 = scmp.ne.s32.totalorder %s394, %s408
    %p410 = scmp.eq.s32.totalorder %s43, 0
    %p411 = por %p409, %p410
    %s413 = sadd.s32 %s412, 1
    %p416 = scmp.eq.s32.totalorder %s37, 1
    %p417 = scmp.ne.s32.totalorder %s412, %s414
    %p418 = scmp.eq.s32.totalorder %s37, 0
    %p419 = por %p417, %p418
    %p420 = scmp.ne.s32.totalorder %s412, %s414
    %p421 = scmp.eq.s32.totalorder %s42, 1
    %p422 = por %p420, %p421
    %p423 = scmp.ne.s32.totalorder %s414, %s415
    %p424 = scmp.eq.s32.totalorder %s42, 0
    %p425 = por %p423, %p424
    %p426 = scmp.ne.s32.totalorder %s414, %s415
    %p427 = scmp.eq.s32.totalorder %s43, 1
    %p428 = por %p426, %p427
    %p430 = scmp.ne.s32.totalorder %s415, %s429
    %p431 = scmp.eq.s32.totalorder %s43, 0
    %p432 = por %p430, %p431
    %s434 = sadd.s32 %s433, 1
    %p437 = scmp.eq.s32.totalorder %s37, 1
    %p438 = scmp.ne.s32.totalorder %s433, %s435
    %p439 = scmp.eq.s32.totalorder %s37, 0
    %p440 = por %p438, %p439
    %p441 = scmp.ne.s32.totalorder %s433, %s435
    %p442 = scmp.eq.s32.totalorder %s42, 1
    %p443 = por %p441, %p442
    %p444 = scmp.ne.s32.totalorder %s435, %s436
    %p445 = scmp.eq.s32.totalorder %s42, 0
    %p446 = por %p444, %p445
    %p447 = scmp.ne.s32.totalorder %s435, %s436
    %p448 = scmp.eq.s32.totalorder %s43, 1
    %p449 = por %p447, %p448
    %p451 = scmp.ne.s32.totalorder %s436, %s450
    %p452 = scmp.eq.s32.totalorder %s43, 0
    %p453 = por %p451, %p452
    %s455 = sadd.s32 %s454, 1
    %p458 = scmp.eq.s32.totalorder %s37, 1
    %p459 = scmp.ne.s32.totalorder %s454, %s456
    %p460 = scmp.eq.s32.totalorder %s37, 0
    %p461 = por %p459, %p460
    %p462 = scmp.ne.s32.totalorder %s454, %s456
    %p463 = scmp.eq.s32.totalorder %s42, 1
    %p464 = por %p462, %p463
    %p465 = scmp.ne.s32.totalorder %s456, %s457
    %p466 = scmp.eq.s32.totalorder %s42, 0
    %p467 = por %p465, %p466
    %p468 = scmp.ne.s32.totalorder %s456, %s457
    %p469 = scmp.eq.s32.totalorder %s43, 1
    %p470 = por %p468, %p469
    %p472 = scmp.ne.s32.totalorder %s457, %s471
    %p473 = scmp.eq.s32.totalorder %s43, 0
    %p474 = por %p472, %p473
    %s476 = sadd.s32 %s475, 1
    %p479 = scmp.eq.s32.totalorder %s37, 1
    %p480 = scmp.ne.s32.totalorder %s475, %s477
    %p481 = scmp.eq.s32.totalorder %s37, 0
    %p482 = por %p480, %p481
    %p483 = scmp.ne.s32.totalorder %s475, %s477
    %p484 = scmp.eq.s32.totalorder %s42, 1
    %p485 = por %p483, %p484
    %p486 = scmp.ne.s32.totalorder %s477, %s478
    %p487 = scmp.eq.s32.totalorder %s42, 0
    %p488 = por %p486, %p487
    %p489 = scmp.ne.s32.totalorder %s477, %s478
    %p490 = scmp.eq.s32.totalorder %s43, 1
    %p491 = por %p489, %p490
    %p493 = scmp.ne.s32.totalorder %s478, %s492
    %p494 = scmp.eq.s32.totalorder %s43, 0
    %p495 = por %p493, %p494
    %s497 = sadd.s32 %s496, 1
    %p500 = scmp.eq.s32.totalorder %s37, 1
    %p501 = scmp.ne.s32.totalorder %s496, %s498
    %p502 = scmp.eq.s32.totalorder %s37, 0
    %p503 = por %p501, %p502
    %p504 = scmp.ne.s32.totalorder %s496, %s498
    %p505 = scmp.eq.s32.totalorder %s42, 1
    %p506 = por %p504, %p505
    %p507 = scmp.ne.s32.totalorder %s498, %s499
    %p508 = scmp.eq.s32.totalorder %s42, 0
    %p509 = por %p507, %p508
    %p510 = scmp.ne.s32.totalorder %s498, %s499
    %p511 = scmp.eq.s32.totalorder %s43, 1
    %p512 = por %p510, %p511
    %p514 = scmp.ne.s32.totalorder %s499, %s513
    %p515 = scmp.eq.s32.totalorder %s43, 0
    %p516 = por %p514, %p515
    %s518 = sadd.s32 %s517, 1
    %p521 = scmp.eq.s32.totalorder %s37, 1
    %p522 = scmp.ne.s32.totalorder %s517, %s519
    %p523 = scmp.eq.s32.totalorder %s37, 0
    %p524 = por %p522, %p523
    %p525 = scmp.ne.s32.totalorder %s517, %s519
    %p526 = scmp.eq.s32.totalorder %s42, 1
    %p527 = por %p525, %p526
    %p528 = scmp.ne.s32.totalorder %s519, %s520
    %p529 = scmp.eq.s32.totalorder %s42, 0
    %p530 = por %p528, %p529
    %p531 = scmp.ne.s32.totalorder %s519, %s520
    %p532 = scmp.eq.s32.totalorder %s43, 1
    %p533 = por %p531, %p532
    %p535 = scmp.ne.s32.totalorder %s520, %s534
    %p536 = scmp.eq.s32.totalorder %s43, 0
    %p537 = por %p535, %p536
    %s539 = sadd.s32 %s538, 1
    %p542 = scmp.eq.s32.totalorder %s37, 1
    %p543 = scmp.ne.s32.totalorder %s538, %s540
    %p544 = scmp.eq.s32.totalorder %s37, 0
    %p545 = por %p543, %p544
    %p546 = scmp.ne.s32.totalorder %s538, %s540
    %p547 = scmp.eq.s32.totalorder %s42, 1
    %p548 = por %p546, %p547
    %p549 = scmp.ne.s32.totalorder %s540, %s541
    %p550 = scmp.eq.s32.totalorder %s42, 0
    %p551 = por %p549, %p550
    %p552 = scmp.ne.s32.totalorder %s540, %s541
    %p553 = scmp.eq.s32.totalorder %s43, 1
    %p554 = por %p552, %p553
    %p556 = scmp.ne.s32.totalorder %s541, %s555
    %p557 = scmp.eq.s32.totalorder %s43, 0
    %p558 = por %p556, %p557
    %s560 = sadd.s32 %s559, 1
    %p563 = scmp.eq.s32.totalorder %s37, 1
    %p564 = scmp.ne.s32.totalorder %s559, %s561
    %p565 = scmp.eq.s32.totalorder %s37, 0
    %p566 = por %p564, %p565
    %p567 = scmp.ne.s32.totalorder %s559, %s561
    %p568 = scmp.eq.s32.totalorder %s42, 1
    %p569 = por %p567, %p568
    %p570 = scmp.ne.s32.totalorder %s561, %s562
    %p571 = scmp.eq.s32.totalorder %s42, 0
    %p572 = por %p570, %p571
    %p573 = scmp.ne.s32.totalorder %s561, %s562
    %p574 = scmp.eq.s32.totalorder %s43, 1
    %p575 = por %p573, %p574
    %p577 = scmp.ne.s32.totalorder %s562, %s576
    %p578 = scmp.eq.s32.totalorder %s43, 0
    %p579 = por %p577, %p578
    %s580 = ssub.s32 %s37, %s44
    %p581 = scmp.eq.s32.totalorder %s580, 0
    %s583 = sadd.s32 %s582, 1
    %s584 = scalar_select %p581, %s582, %s583
    %p587 = pneg %p581
    %p588 = scmp.eq.s32.totalorder %s37, 1
    %p589 = por %p587, %p588
    %p590 = scmp.ne.s32.totalorder %s582, %s585
    %p591 = scmp.eq.s32.totalorder %s37, 0
    %p592 = por %p590, %p591
    %p593 = scmp.ne.s32.totalorder %s582, %s585
    %p594 = scmp.eq.s32.totalorder %s42, 1
    %p595 = por %p593, %p594
    %p596 = scmp.ne.s32.totalorder %s585, %s586
    %p597 = scmp.eq.s32.totalorder %s42, 0
    %p598 = por %p596, %p597
    %p599 = scmp.ne.s32.totalorder %s585, %s586
    %p600 = scmp.eq.s32.totalorder %s43, 1
    %p601 = por %p599, %p600
    %p603 = scmp.ne.s32.totalorder %s586, %s602
    %p604 = scmp.eq.s32.totalorder %s43, 0
    %p605 = por %p603, %p604
    %s606 = ssub.s32 %s37, %s44
    %p607 = scmp.eq.s32.totalorder %s606, 0
    %s609 = sadd.s32 %s608, 1
    %s610 = scalar_select %p607, %s608, %s609
    %p613 = pneg %p607
    %p614 = scmp.eq.s32.totalorder %s37, 1
    %p615 = por %p613, %p614
    %p616 = scmp.ne.s32.totalorder %s608, %s611
    %p617 = scmp.eq.s32.totalorder %s37, 0
    %p618 = por %p616, %p617
    %p619 = scmp.ne.s32.totalorder %s608, %s611
    %p620 = scmp.eq.s32.totalorder %s42, 1
    %p621 = por %p619, %p620
    %p622 = scmp.ne.s32.totalorder %s611, %s612
    %p623 = scmp.eq.s32.totalorder %s42, 0
    %p624 = por %p622, %p623
    %p625 = scmp.ne.s32.totalorder %s611, %s612
    %p626 = scmp.eq.s32.totalorder %s43, 1
    %p627 = por %p625, %p626
    %p629 = scmp.ne.s32.totalorder %s612, %s628
    %p630 = scmp.eq.s32.totalorder %s43, 0
    %p631 = por %p629, %p630
    %p632 = scmp.le.s32.totalorder 1, %s37
    %p633 = scmp.lt.s32.totalorder %s37, 3
    %p634 = pnand %p632, %p633
    %p635 = pneg %p634
    // Predicated region
    $region9: #{_lambda_.1} parent=5 // pred_check
      _
    $region10: #{_lambda_.1} parent=5 // pred_check_branch
      %637 = sbr.rel (%p634) target = $region12
    $region11: #{_lambda_.1} parent=5 // pred_region
      %s638 = ssub.s32 %s37, 1
      // Predicated region
      $region13: #{_lambda_.1} parent=11 // pred_check
        %p639 = pneg %p110
      $region14: #{_lambda_.1} parent=11 // pred_check_branch
        %641 = sbr.rel (%p639) target = $region16
      $region15: #{_lambda_.1} parent=11 // pred_region
        _
      $region16: #{_lambda_.1} parent=11 // pred_fallthru
        _
      // Predicated region
      $region17: #{_lambda_.1} parent=11 // pred_check
        %p642 = pneg %p131
      $region18: #{_lambda_.1} parent=11 // pred_check_branch
        %644 = sbr.rel (%p642) target = $region20
      $region19: #{_lambda_.1} parent=11 // pred_region
        _
      $region20: #{_lambda_.1} parent=11 // pred_fallthru
        _
      // Predicated region
      $region21: #{_lambda_.1} parent=11 // pred_check
        %p645 = pneg %p152
      $region22: #{_lambda_.1} parent=11 // pred_check_branch
        %647 = sbr.rel (%p645) target = $region24
      $region23: #{_lambda_.1} parent=11 // pred_region
        _
      $region24: #{_lambda_.1} parent=11 // pred_fallthru
        _
      // Predicated region
      $region25: #{_lambda_.1} parent=11 // pred_check
        %p648 = pneg %p173
      $region26: #{_lambda_.1} parent=11 // pred_check_branch
        %650 = sbr.rel (%p648) target = $region28
      $region27: #{_lambda_.1} parent=11 // pred_region
        _
      $region28: #{_lambda_.1} parent=11 // pred_fallthru
        _
      // Predicated region
      $region29: #{_lambda_.1} parent=11 // pred_check
        %p651 = pneg %p194
      $region30: #{_lambda_.1} parent=11 // pred_check_branch
        %653 = sbr.rel (%p651) target = $region32
      $region31: #{_lambda_.1} parent=11 // pred_region
        _
      $region32: #{_lambda_.1} parent=11 // pred_fallthru
        _
      // Predicated region
      $region33: #{_lambda_.1} parent=11 // pred_check
        %p654 = pneg %p215
      $region34: #{_lambda_.1} parent=11 // pred_check_branch
        %656 = sbr.rel (%p654) target = $region36
      $region35: #{_lambda_.1} parent=11 // pred_region
        _
      $region36: #{_lambda_.1} parent=11 // pred_fallthru
        _
      // Predicated region
      $region37: #{_lambda_.1} parent=11 // pred_check
        %p657 = pneg %p236
      $region38: #{_lambda_.1} parent=11 // pred_check_branch
        %659 = sbr.rel (%p657) target = $region40
      $region39: #{_lambda_.1} parent=11 // pred_region
        _
      $region40: #{_lambda_.1} parent=11 // pred_fallthru
        _
      // Predicated region
      $region41: #{_lambda_.1} parent=11 // pred_check
        %p660 = pneg %p257
      $region42: #{_lambda_.1} parent=11 // pred_check_branch
        %662 = sbr.rel (%p660) target = $region44
      $region43: #{_lambda_.1} parent=11 // pred_region
        _
      $region44: #{_lambda_.1} parent=11 // pred_fallthru
        _
      // Predicated region
      $region45: #{_lambda_.1} parent=11 // pred_check
        %p663 = pneg %p278
      $region46: #{_lambda_.1} parent=11 // pred_check_branch
        %665 = sbr.rel (%p663) target = $region48
      $region47: #{_lambda_.1} parent=11 // pred_region
        _
      $region48: #{_lambda_.1} parent=11 // pred_fallthru
        _
      // Predicated region
      $region49: #{_lambda_.1} parent=11 // pred_check
        %p666 = pneg %p299
      $region50: #{_lambda_.1} parent=11 // pred_check_branch
        %668 = sbr.rel (%p666) target = $region52
      $region51: #{_lambda_.1} parent=11 // pred_region
        _
      $region52: #{_lambda_.1} parent=11 // pred_fallthru
        _
      // Predicated region
      $region53: #{_lambda_.1} parent=11 // pred_check
        %p669 = pneg %p320
      $region54: #{_lambda_.1} parent=11 // pred_check_branch
        %671 = sbr.rel (%p669) target = $region56
      $region55: #{_lambda_.1} parent=11 // pred_region
        _
      $region56: #{_lambda_.1} parent=11 // pred_fallthru
        _
      // Predicated region
      $region57: #{_lambda_.1} parent=11 // pred_check
        %p672 = pneg %p341
      $region58: #{_lambda_.1} parent=11 // pred_check_branch
        %674 = sbr.rel (%p672) target = $region60
      $region59: #{_lambda_.1} parent=11 // pred_region
        _
      $region60: #{_lambda_.1} parent=11 // pred_fallthru
        _
      // Predicated region
      $region61: #{_lambda_.1} parent=11 // pred_check
        %p675 = pneg %p362
      $region62: #{_lambda_.1} parent=11 // pred_check_branch
        %677 = sbr.rel (%p675) target = $region64
      $region63: #{_lambda_.1} parent=11 // pred_region
        _
      $region64: #{_lambda_.1} parent=11 // pred_fallthru
        _
      // Predicated region
      $region65: #{_lambda_.1} parent=11 // pred_check
        %p678 = pneg %p383
      $region66: #{_lambda_.1} parent=11 // pred_check_branch
        %680 = sbr.rel (%p678) target = $region68
      $region67: #{_lambda_.1} parent=11 // pred_region
        _
      $region68: #{_lambda_.1} parent=11 // pred_fallthru
        _
      // Predicated region
      $region69: #{_lambda_.1} parent=11 // pred_check
        %p681 = pneg %p404
      $region70: #{_lambda_.1} parent=11 // pred_check_branch
        %683 = sbr.rel (%p681) target = $region72
      $region71: #{_lambda_.1} parent=11 // pred_region
        _
      $region72: #{_lambda_.1} parent=11 // pred_fallthru
        _
      // Predicated region
      $region73: #{_lambda_.1} parent=11 // pred_check
        %p684 = pneg %p425
      $region74: #{_lambda_.1} parent=11 // pred_check_branch
        %686 = sbr.rel (%p684) target = $region76
      $region75: #{_lambda_.1} parent=11 // pred_region
        _
      $region76: #{_lambda_.1} parent=11 // pred_fallthru
        _
      // Predicated region
      $region77: #{_lambda_.1} parent=11 // pred_check
        %p687 = pneg %p446
      $region78: #{_lambda_.1} parent=11 // pred_check_branch
        %689 = sbr.rel (%p687) target = $region80
      $region79: #{_lambda_.1} parent=11 // pred_region
        _
      $region80: #{_lambda_.1} parent=11 // pred_fallthru
        _
      // Predicated region
      $region81: #{_lambda_.1} parent=11 // pred_check
        %p690 = pneg %p467
      $region82: #{_lambda_.1} parent=11 // pred_check_branch
        %692 = sbr.rel (%p690) target = $region84
      $region83: #{_lambda_.1} parent=11 // pred_region
        _
      $region84: #{_lambda_.1} parent=11 // pred_fallthru
        _
      // Predicated region
      $region85: #{_lambda_.1} parent=11 // pred_check
        %p693 = pneg %p488
      $region86: #{_lambda_.1} parent=11 // pred_check_branch
        %695 = sbr.rel (%p693) target = $region88
      $region87: #{_lambda_.1} parent=11 // pred_region
        _
      $region88: #{_lambda_.1} parent=11 // pred_fallthru
        _
      // Predicated region
      $region89: #{_lambda_.1} parent=11 // pred_check
        %p696 = pneg %p509
      $region90: #{_lambda_.1} parent=11 // pred_check_branch
        %698 = sbr.rel (%p696) target = $region92
      $region91: #{_lambda_.1} parent=11 // pred_region
        _
      $region92: #{_lambda_.1} parent=11 // pred_fallthru
        _
      // Predicated region
      $region93: #{_lambda_.1} parent=11 // pred_check
        %p699 = pneg %p530
      $region94: #{_lambda_.1} parent=11 // pred_check_branch
        %701 = sbr.rel (%p699) target = $region96
      $region95: #{_lambda_.1} parent=11 // pred_region
        _
      $region96: #{_lambda_.1} parent=11 // pred_fallthru
        _
      // Predicated region
      $region97: #{_lambda_.1} parent=11 // pred_check
        %p702 = pneg %p551
      $region98: #{_lambda_.1} parent=11 // pred_check_branch
        %704 = sbr.rel (%p702) target = $region100
      $region99: #{_lambda_.1} parent=11 // pred_region
        _
      $region100: #{_lambda_.1} parent=11 // pred_fallthru
        _
      // Predicated region
      $region101: #{_lambda_.1} parent=11 // pred_check
        %p705 = pneg %p572
      $region102: #{_lambda_.1} parent=11 // pred_check_branch
        %707 = sbr.rel (%p705) target = $region104
      $region103: #{_lambda_.1} parent=11 // pred_region
        _
      $region104: #{_lambda_.1} parent=11 // pred_fallthru
        _
    $region12: #{_lambda_.1} parent=5 // pred_fallthru
      _
    %p708 = scmp.lt.s32.totalorder %s37, 2
    // Predicated region
    $region105: #{_lambda_.1} parent=5 // pred_check
      %p709 = pneg %p708
    $region106: #{_lambda_.1} parent=5 // pred_check_branch
      %711 = sbr.rel (%p709) target = $region108
    $region107: #{_lambda_.1} parent=5 // pred_region
      // Predicated region
      $region109: #{_lambda_.1} parent=107 // pred_check
        %p712 = pneg %p57
      $region110: #{_lambda_.1} parent=107 // pred_check_branch
        %714 = sbr.rel (%p712) target = $region112
      $region111: #{_lambda_.1} parent=107 // pred_region
        %s715 = smul.u32 4, %s37
        %p716 = scmp.lt.s32.totalorder %s715, 7
        %s717 = scalar_select %p716, %s715, 7
        %s718 = smul.addr %s717, 8
        %s719 = scalar_lea.vmem %s0, %s718
        %s720 = smul.u32 4, %s37
      $region112: #{_lambda_.1} parent=107 // pred_fallthru
        _
      // Predicated region
      $region113: #{_lambda_.1} parent=107 // pred_check
        %p721 = pneg %p83
      $region114: #{_lambda_.1} parent=107 // pred_check_branch
        %723 = sbr.rel (%p721) target = $region116
      $region115: #{_lambda_.1} parent=107 // pred_region
        %s724 = smul.u32 4, %s37
        %p725 = scmp.lt.s32.totalorder %s724, 7
        %s726 = scalar_select %p725, %s724, 7
        %s727 = scalar_lea.vmem %s1, %s726
        %s728 = smul.u32 4, %s37
      $region116: #{_lambda_.1} parent=107 // pred_fallthru
        _
    $region108: #{_lambda_.1} parent=5 // pred_fallthru
      _
    %p729 = scmp.le.s32.totalorder 1, %s37
    %p730 = scmp.lt.s32.totalorder %s37, 3
    %p731 = pnand %p729, %p730
    %p732 = pneg %p731
    // Predicated region
    $region117: #{_lambda_.1} parent=5 // pred_check
      _
    $region118: #{_lambda_.1} parent=5 // pred_check_branch
      %734 = sbr.rel (%p731) target = $region120
    $region119: #{_lambda_.1} parent=5 // pred_region
      %s735 = ssub.s32 %s37, 1
      %s736 = smul.u32 4, %s42
      %p737 = scmp.lt.s32.totalorder %s736, 7
      %s738 = scalar_select %p737, %s736, 7
      %s739 = smul.addr %s738, 8
      %s740 = scalar_lea.vmem %s0, %s739
      %p741 = pneg %p63
      %p742 = pneg %p60
      %s743 = smul.u32 4, %s42
      %p744 = scmp.lt.s32.totalorder %s743, 7
      %s745 = scalar_select %p744, %s743, 7
      %s746 = scalar_lea.vmem %s1, %s745
      %p747 = pneg %p89
      %p748 = pneg %p86
      %p749 = pneg %p110
      %p750 = pneg %p107
      %p751 = pneg %p131
      %p752 = pneg %p128
      %p753 = pneg %p152
      %p754 = pneg %p149
      %p755 = pneg %p173
      %p756 = pneg %p170
      %p757 = pneg %p194
      %p758 = pneg %p191
      %p759 = pneg %p215
      %p760 = pneg %p212
      %p761 = pneg %p236
      %p762 = pneg %p233
      %p763 = pneg %p257
      %p764 = pneg %p254
      %p765 = pneg %p278
      %p766 = pneg %p275
      %p767 = pneg %p299
      %p768 = pneg %p296
      %p769 = pneg %p320
      %p770 = pneg %p317
      %p771 = pneg %p341
      %p772 = pneg %p338
      %p773 = pneg %p362
      %p774 = pneg %p359
      %p775 = pneg %p383
      %p776 = pneg %p380
      %p777 = pneg %p404
      %p778 = pneg %p401
      %p779 = pneg %p425
      %p780 = pneg %p422
      %p781 = pneg %p446
      %p782 = pneg %p443
      %p783 = pneg %p467
      %p784 = pneg %p464
      %p785 = pneg %p488
      %p786 = pneg %p485
      %p787 = pneg %p509
      %p788 = pneg %p506
      %p789 = pneg %p530
      %p790 = pneg %p527
      %p791 = pneg %p551
      %p792 = pneg %p548
      %p793 = pneg %p572
      %p794 = pneg %p569
      %p795 = pneg %p598
      %p796 = pneg %p595
      %p797 = scmp.lt.s32.totalorder %s42, 1
      %s798 = scalar_select %p797, %s42, 1
      %s799 = smul.addr %s798, 4
      %s800 = scalar_lea.vmem %s25, %s799
      %p801 = pneg %p624
      %p802 = pneg %p621
      %p803 = scmp.lt.s32.totalorder %s42, 1
      %s804 = scalar_select %p803, %s42, 1
      %s805 = scalar_lea.vmem %s26, %s804
      %s806 = smul.u32 4, %s42
      %p807 = scmp.lt.s32.totalorder %s806, 7
      %s808 = scalar_select %p807, %s806, 7
      %s809 = smul.addr %s808, 8
      %s810 = scalar_lea.vmem %s0, %s809
      %s811 = smul.u32 4, %s42
      %s812 = smul.u32 4, %s42
      %p813 = scmp.lt.s32.totalorder %s812, 7
      %s814 = scalar_select %p813, %s812, 7
      %s815 = scalar_lea.vmem %s1, %s814
      %s816 = smul.u32 4, %s42
      %p817 = scmp.lt.s32.totalorder %s42, 1
      %s818 = scalar_select %p817, %s42, 1
      %s819 = smul.addr %s818, 4
      %s820 = scalar_lea.vmem %s25, %s819
      %p821 = scmp.lt.s32.totalorder %s42, 1
      %s822 = scalar_select %p821, %s42, 1
      %s823 = scalar_lea.vmem %s26, %s822
      %v825 = vld [vmem:[%s810] sm:$0xff]
      %v826 = vld [vmem:[%s810 + $0x8] sm:$0xff]
      %v827 = vld [vmem:[%s810 + $0x10] sm:$0xff]
      %v828 = vld [vmem:[%s810 + $0x18] sm:$0xff]
      %v829 = vld [vmem:[%s2] sm:$0x1]
      %v830 = vld [vmem:[%s3] sm:$0x1]
      %vm831 = vcmask 261120
      %v832 = vsel %vm831, %v825, 0.0
      %833 = vadd.xlane.f32.xlu0 %v832
      %v834 = vpop.xlane.xlu0 %833
      %v835 = vsel %vm831, %v826, 0.0
      %836 = vadd.xlane.f32.xlu0 %v835
      %v837 = vpop.xlane.xlu0 %836
      %v838 = vsel %vm831, %v827, 0.0
      %839 = vadd.xlane.f32.xlu0 %v838
      %v840 = vpop.xlane.xlu0 %839
      %v841 = vsel %vm831, %v828, 0.0
      %842 = vadd.xlane.f32.xlu0 %v841
      %v843 = vpop.xlane.xlu0 %842
      %v844 = vrcp.pop 32.0
      %v845 = vmul.f32 %v834, %v844
      %v846 = vmul.f32 %v837, %v844
      %v847 = vmul.f32 %v840, %v844
      %v848 = vmul.f32 %v843, %v844
      %v849 = vmul.f32 %v825, %v825
      %v850 = vmul.f32 %v826, %v826
      %v851 = vmul.f32 %v827, %v827
      %v852 = vmul.f32 %v828, %v828
      %v853 = vsel %vm831, %v849, 0.0
      %854 = vadd.xlane.f32.xlu0 %v853
      %v855 = vpop.xlane.xlu0 %854
      %v856 = vsel %vm831, %v850, 0.0
      %857 = vadd.xlane.f32.xlu0 %v856
      %v858 = vpop.xlane.xlu0 %857
      %v859 = vsel %vm831, %v851, 0.0
      %860 = vadd.xlane.f32.xlu0 %v859
      %v861 = vpop.xlane.xlu0 %860
      %v862 = vsel %vm831, %v852, 0.0
      %863 = vadd.xlane.f32.xlu0 %v862
      %v864 = vpop.xlane.xlu0 %863
      %v865 = vmul.f32 %v855, %v844
      %v866 = vmul.f32 %v858, %v844
      %v867 = vmul.f32 %v861, %v844
      %v868 = vmul.f32 %v864, %v844
      %v869 = vmul.f32 %v845, %v845
      %v870 = vmul.f32 %v846, %v846
      %v871 = vmul.f32 %v847, %v847
      %v872 = vmul.f32 %v848, %v848
      %v873 = vsub.f32 %v865, %v869
      %v874 = vsub.f32 %v866, %v870
      %v875 = vsub.f32 %v867, %v871
      %v876 = vsub.f32 %v868, %v872
      %v877 = vsub.f32 %v825, %v845
      %v878 = vsub.f32 %v826, %v846
      %v879 = vsub.f32 %v827, %v847
      %v880 = vsub.f32 %v828, %v848
      %v881 = vadd.f32 %v873, 1e-12
      %v882 = vadd.f32 %v874, 1e-12
      %v883 = vadd.f32 %v875, 1e-12
      %v884 = vadd.f32 %v876, 1e-12
      %v885 = vrsqrt.pop %v881
      %v886 = vrsqrt.pop %v882
      %v887 = vrsqrt.pop %v883
      %v888 = vrsqrt.pop %v884
      %v889 = vmul.f32 %v877, %v885
      %v890 = vmul.f32 %v878, %v886
      %v891 = vmul.f32 %v879, %v887
      %v892 = vmul.f32 %v880, %v888
      %v894 = vlaneseq
      %v895 = vshrl.u32 %v894, 7
      %v896 = vsub.s32 0, %v895
      %v897 = vrot.slane %v829, %v896
      %v899 = vmul.f32 %v889, %v897
      %v900 = vmul.f32 %v890, %v897
      %v901 = vmul.f32 %v891, %v897
      %v902 = vmul.f32 %v892, %v897
      %v904 = vlaneseq
      %v905 = vshrl.u32 %v904, 7
      %v906 = vsub.s32 0, %v905
      %v907 = vrot.slane %v830, %v906
      %v909 = vadd.f32 %v899, %v907
      %v910 = vadd.f32 %v900, %v907
      %v911 = vadd.f32 %v901, %v907
      %v912 = vadd.f32 %v902, %v907
      %v913 = vpack.c.bf16 %v910, %v909
      %v914 = vpack.c.bf16 %v912, %v911
      %v915 = vld [vmem:[%s4] sm:$0xf]
      %v916 = vld [vmem:[%s4 + $0x4] sm:$0xf]
      %v917 = vld [vmem:[%s4 + $0x8] sm:$0xf]
      %v918 = vld [vmem:[%s4 + $0xc] sm:$0xf]
      %v919 = vld [vmem:[%s5] sm:$0x1]
      %v921 = vlaneseq
      %v922 = vshrl.u32 %v921, 7
      %v923 = vsub.s32 0, %v922
      %v924 = vrot.slane %v919, %v923
      %v930 = vunpack.c.l.b16 %v915
      %v931 = vunpack.c.l.b16 %v916
      %v932 = vunpack.c.l.b16 %v917
      %v933 = vunpack.c.l.b16 %v918
      %v934 = vpack.c.b16 %v931, %v930
      %v935 = vpack.c.b16 %v933, %v932
      %v939 = vsel %vm831, %v913, 0
      %v942 = vsel %vm831, %v914, 0
      %944 = vmatprep.subr.bf16.mxu0 0
      %945 = vmatpush1.bf16.msra.mxu0 %v934
      %946 = vmatprep.subr.bf16.mxu0 0
      %947 = vmatpush1.bf16.msra.mxu0 %v935
      %948 = vmatprep.subr.bf16.mxu0 0
      %949 = vmatpush1.bf16.msra.mxu0 0
      %950 = vmatprep.subr.bf16.mxu0 0
      %951 = vmatpush1.bf16.msra.mxu0 0
      %952 = vmatprep.subr.bf16.mxu0 0
      %953 = vmatpush1.bf16.msra.mxu0 0
      %954 = vmatprep.subr.bf16.mxu0 0
      %955 = vmatpush1.bf16.msra.mxu0 0
      %956 = vmatprep.subr.bf16.mxu0 0
      %957 = vmatpush1.bf16.msra.mxu0 0
      %958 = vmatprep.subr.bf16.mxu0 0
      %959 = vmatpush1.bf16.msra.mxu0 0
      %960 = vmatprep.subr.bf16.mxu0 0
      %961 = vmatpush1.bf16.msra.mxu0 0
      %962 = vmatprep.subr.bf16.mxu0 0
      %963 = vmatpush1.bf16.msra.mxu0 0
      %964 = vmatprep.subr.bf16.mxu0 0
      %965 = vmatpush1.bf16.msra.mxu0 0
      %966 = vmatprep.subr.bf16.mxu0 0
      %967 = vmatpush1.bf16.msra.mxu0 0
      %968 = vmatprep.subr.bf16.mxu0 0
      %969 = vmatpush1.bf16.msra.mxu0 0
      %970 = vmatprep.subr.bf16.mxu0 0
      %971 = vmatpush1.bf16.msra.mxu0 0
      %972 = vmatprep.subr.bf16.mxu0 0
      %973 = vmatpush1.bf16.msra.mxu0 0
      %974 = vmatprep.subr.bf16.mxu0 0
      %975 = vmatpush1.bf16.msra.mxu0 0
      %976 = vmatprep.mubr.bf16.mxu0 0
      %977 = vmatmul.mubr.bf16.gmra.mrb[0].mxu0 %v939
      %v978 = vpop.f32.mrb[0].mxu0
      %v979 = vadd.f32 %v924, %v978
      %v980 = vpop.f32.mrb[0].mxu0
      %v981 = vpop.f32.mrb[0].mxu0
      %v982 = vadd.f32 %v924, %v981
      %v983 = vpop.f32.mrb[0].mxu0
      %984 = vmatprep.mubr.bf16.mxu0 0
      %985 = vmatmul.mubr.bf16.gmra.mrb[0].mxu0 %v942
      %v986 = vpop.f32.mrb[0].mxu0
      %v987 = vadd.f32 %v924, %v986
      %v988 = vpop.f32.mrb[0].mxu0
      %v989 = vpop.f32.mrb[0].mxu0
      %v990 = vadd.f32 %v924, %v989
      %v991 = vpop.f32.mrb[0].mxu0
      %992 = vdwg.mxu0
      %997 = vrot.lane.b32.xlu0 %v979, 120
      %v998 = vpop.permute.xlu0 %997
      %999 = vrot.lane.b32.xlu0 %v982, 120
      %v1000 = vpop.permute.xlu0 %999
      %1001 = vrot.lane.b32.xlu0 %v987, 120
      %v1002 = vpop.permute.xlu0 %1001
      %1003 = vrot.lane.b32.xlu0 %v990, 120
      %v1004 = vpop.permute.xlu0 %1003
      %1009 = vrot.lane.b32.xlu0 %v979, 112
      %v1010 = vpop.permute.xlu0 %1009
      %1011 = vrot.lane.b32.xlu0 %v982, 112
      %v1012 = vpop.permute.xlu0 %1011
      %1013 = vrot.lane.b32.xlu0 %v987, 112
      %v1014 = vpop.permute.xlu0 %1013
      %1015 = vrot.lane.b32.xlu0 %v990, 112
      %v1016 = vpop.permute.xlu0 %1015
      %1021 = vrot.lane.b32.xlu0 %v979, 104
      %v1022 = vpop.permute.xlu0 %1021
      %1023 = vrot.lane.b32.xlu0 %v982, 104
      %v1024 = vpop.permute.xlu0 %1023
      %1025 = vrot.lane.b32.xlu0 %v987, 104
      %v1026 = vpop.permute.xlu0 %1025
      %1027 = vrot.lane.b32.xlu0 %v990, 104
      %v1028 = vpop.permute.xlu0 %1027
      %v1033 = vpack.c.bf16 %v979, %v979
      %v1034 = vpack.c.bf16 %v982, %v982
      %v1035 = vpack.c.bf16 %v987, %v987
      %v1036 = vpack.c.bf16 %v990, %v990
      %v1037 = vpack.c.bf16 %v998, %v998
      %v1038 = vpack.c.bf16 %v1000, %v1000
      %v1039 = vpack.c.bf16 %v1002, %v1002
      %v1040 = vpack.c.bf16 %v1004, %v1004
      %v1041 = vpack.c.bf16 %v1010, %v1010
      %v1042 = vpack.c.bf16 %v1012, %v1012
      %v1043 = vpack.c.bf16 %v1014, %v1014
      %v1044 = vpack.c.bf16 %v1016, %v1016
      %v1045 = vpack.c.bf16 %v1022, %v1022
      %v1046 = vpack.c.bf16 %v1024, %v1024
      %v1047 = vpack.c.bf16 %v1026, %v1026
      %v1048 = vpack.c.bf16 %v1028, %v1028
      %v1049 = vld [vmem:[%s815] sm:$0x1]
      %v1050 = vld [vmem:[%s815 + $0x1] sm:$0x1]
      %v1051 = vld [vmem:[%s815 + $0x2] sm:$0x1]
      %v1052 = vld [vmem:[%s815 + $0x3] sm:$0x1]
      %v1057 = vlaneseq
      %v1058 = vshrl.u32 %v1057, 7
      %v1059 = vsub.s32 0, %v1058
      %v1060 = vrot.slane %v1049, %v1059
      %v1061 = vlaneseq
      %v1062 = vshrl.u32 %v1061, 7
      %v1063 = vsub.s32 0, %v1062
      %v1064 = vrot.slane %v1050, %v1063
      %v1065 = vlaneseq
      %v1066 = vshrl.u32 %v1065, 7
      %v1067 = vsub.s32 0, %v1066
      %v1068 = vrot.slane %v1051, %v1067
      %v1069 = vlaneseq
      %v1070 = vshrl.u32 %v1069, 7
      %v1071 = vsub.s32 0, %v1070
      %v1072 = vrot.slane %v1052, %v1071
      %1078 = vrot.lane.b32.xlu0 %v1033, 96
      %v1079 = vpop.permute.xlu0 %1078
      %vm1080 = vcmask 64512
      %v1082 = vsel %vm1080, %v1033, 0
      %v1085 = vsel %vm1080, %v1079, 0
      %1087 = vmatprep.subr.bf16.mxu0 0
      %1088 = vmatpush1.bf16.xpose.msra.mxu0 %v1085
      %1089 = vmatprep.subr.bf16.mxu0 0
      %1090 = vmatpush1.bf16.xpose.msra.mxu0 0
      %1091 = vmatprep.subr.bf16.mxu0 0
      %1092 = vmatpush1.bf16.xpose.msra.mxu0 0
      %1093 = vmatprep.subr.bf16.mxu0 0
      %1094 = vmatpush1.bf16.xpose.msra.mxu0 0
      %1095 = vmatprep.subr.bf16.mxu0 0
      %1096 = vmatpush1.bf16.xpose.msra.mxu0 0
      %1097 = vmatprep.subr.bf16.mxu0 0
      %1098 = vmatpush1.bf16.xpose.msra.mxu0 0
      %1099 = vmatprep.subr.bf16.mxu0 0
      %1100 = vmatpush1.bf16.xpose.msra.mxu0 0
      %1101 = vmatprep.subr.bf16.mxu0 0
      %1102 = vmatpush1.bf16.xpose.msra.mxu0 0
      %1103 = vmatprep.subr.bf16.mxu0 0
      %1104 = vmatpush1.bf16.xpose.msra.mxu0 0
      %1105 = vmatprep.subr.bf16.mxu0 0
      %1106 = vmatpush1.bf16.xpose.msra.mxu0 0
      %1107 = vmatprep.subr.bf16.mxu0 0
      %1108 = vmatpush1.bf16.xpose.msra.mxu0 0
      %1109 = vmatprep.subr.bf16.mxu0 0
      %1110 = vmatpush1.bf16.xpose.msra.mxu0 0
      %1111 = vmatprep.subr.bf16.mxu0 0
      %1112 = vmatpush1.bf16.xpose.msra.mxu0 0
      %1113 = vmatprep.subr.bf16.mxu0 0
      %1114 = vmatpush1.bf16.xpose.msra.mxu0 0
      %1115 = vmatprep.subr.bf16.mxu0 0
      %1116 = vmatpush1.bf16.xpose.msra.mxu0 0
      %1117 = vmatprep.subr.bf16.mxu0 0
      %1118 = vmatpush1.bf16.xpose.msra.mxu0 0
      %1119 = vmatprep.mubr.bf16.mxu0 0
      %1120 = vmatmul.mubr.bf16.gmra.mrb[0].mxu0 %v1082
      %v1121 = vpop.f32.mrb[0].mxu0
      %v1122 = vadd.f32 %v1060, %v1121
      %v1123 = vpop.f32.mrb[0].mxu0
      %v1124 = vpop.f32.mrb[0].mxu0
      %v1125 = vpop.f32.mrb[0].mxu0
      %1126 = vdwg.mxu0
      %1128 = vrot.lane.b32.xlu0 %v1034, 96
      %v1129 = vpop.permute.xlu0 %1128
      %v1131 = vsel %vm1080, %v1034, 0
      %v1134 = vsel %vm1080, %v1129, 0
      %1136 = vmatprep.subr.bf16.mxu0 0
      %1137 = vmatpush1.bf16.xpose.msra.mxu0 %v1134
      %1138 = vmatprep.subr.bf16.mxu0 0
      %1139 = vmatpush1.bf16.xpose.msra.mxu0 0
      %1140 = vmatprep.subr.bf16.mxu0 0
      %1141 = vmatpush1.bf16.xpose.msra.mxu0 0
      %1142 = vmatprep.subr.bf16.mxu0 0
      %1143 = vmatpush1.bf16.xpose.msra.mxu0 0
      %1144 = vmatprep.subr.bf16.mxu0 0
      %1145 = vmatpush1.bf16.xpose.msra.mxu0 0
      %1146 = vmatprep.subr.bf16.mxu0 0
      %1147 = vmatpush1.bf16.xpose.msra.mxu0 0
      %1148 = vmatprep.subr.bf16.mxu0 0
      %1149 = vmatpush1.bf16.xpose.msra.mxu0 0
      %1150 = vmatprep.subr.bf16.mxu0 0
      %1151 = vmatpush1.bf16.xpose.msra.mxu0 0
      %1152 = vmatprep.subr.bf16.mxu0 0
      %1153 = vmatpush1.bf16.xpose.msra.mxu0 0
      %1154 = vmatprep.subr.bf16.mxu0 0
      %1155 = vmatpush1.bf16.xpose.msra.mxu0 0
      %1156 = vmatprep.subr.bf16.mxu0 0
      %1157 = vmatpush1.bf16.xpose.msra.mxu0 0
      %1158 = vmatprep.subr.bf16.mxu0 0
      %1159 = vmatpush1.bf16.xpose.msra.mxu0 0
      %1160 = vmatprep.subr.bf16.mxu0 0
      %1161 = vmatpush1.bf16.xpose.msra.mxu0 0
      %1162 = vmatprep.subr.bf16.mxu0 0
      %1163 = vmatpush1.bf16.xpose.msra.mxu0 0
      %1164 = vmatprep.subr.bf16.mxu0 0
      %1165 = vmatpush1.bf16.xpose.msra.mxu0 0
      %1166 = vmatprep.subr.bf16.mxu0 0
      %1167 = vmatpush1.bf16.xpose.msra.mxu0 0
      %1168 = vmatprep.mubr.bf16.mxu0 0
      %1169 = vmatmul.mubr.bf16.gmra.mrb[0].mxu0 %v1131
      %v1170 = vpop.f32.mrb[0].mxu0
      %v1171 = vadd.f32 %v1064, %v1170
      %v1172 = vpop.f32.mrb[0].mxu0
      %v1173 = vpop.f32.mrb[0].mxu0
      %v1174 = vpop.f32.mrb[0].mxu0
      %1175 = vdwg.mxu0
      %1177 = vrot.lane.b32.xlu0 %v1035, 96
      %v1178 = vpop.permute.xlu0 %1177
      %v1180 = vsel %vm1080, %v1035, 0
      %v1183 = vsel %vm1080, %v1178, 0
      %1185 = vmatprep.subr.bf16.mxu0 0
      %1186 = vmatpush1.bf16.xpose.msra.mxu0 %v1183
      %1187 = vmatprep.subr.bf16.mxu0 0
      %1188 = vmatpush1.bf16.xpose.msra.mxu0 0
      %1189 = vmatprep.subr.bf16.mxu0 0
      %1190 = vmatpush1.bf16.xpose.msra.mxu0 0
      %1191 = vmatprep.subr.bf16.mxu0 0
      %1192 = vmatpush1.bf16.xpose.msra.mxu0 0
      %1193 = vmatprep.subr.bf16.mxu0 0
      %1194 = vmatpush1.bf16.xpose.msra.mxu0 0
      %1195 = vmatprep.subr.bf16.mxu0 0
      %1196 = vmatpush1.bf16.xpose.msra.mxu0 0
      %1197 = vmatprep.subr.bf16.mxu0 0
      %1198 = vmatpush1.bf16.xpose.msra.mxu0 0
      %1199 = vmatprep.subr.bf16.mxu0 0
      %1200 = vmatpush1.bf16.xpose.msra.mxu0 0
      %1201 = vmatprep.subr.bf16.mxu0 0
      %1202 = vmatpush1.bf16.xpose.msra.mxu0 0
      %1203 = vmatprep.subr.bf16.mxu0 0
      %1204 = vmatpush1.bf16.xpose.msra.mxu0 0
      %1205 = vmatprep.subr.bf16.mxu0 0
      %1206 = vmatpush1.bf16.xpose.msra.mxu0 0
      %1207 = vmatprep.subr.bf16.mxu0 0
      %1208 = vmatpush1.bf16.xpose.msra.mxu0 0
      %1209 = vmatprep.subr.bf16.mxu0 0
      %1210 = vmatpush1.bf16.xpose.msra.mxu0 0
      %1211 = vmatprep.subr.bf16.mxu0 0
      %1212 = vmatpush1.bf16.xpose.msra.mxu0 0
      %1213 = vmatprep.subr.bf16.mxu0 0
      %1214 = vmatpush1.bf16.xpose.msra.mxu0 0
      %1215 = vmatprep.subr.bf16.mxu0 0
      %1216 = vmatpush1.bf16.xpose.msra.mxu0 0
      %1217 = vmatprep.mubr.bf16.mxu0 0
      %1218 = vmatmul.mubr.bf16.gmra.mrb[0].mxu0 %v1180
      %v1219 = vpop.f32.mrb[0].mxu0
      %v1220 = vadd.f32 %v1068, %v1219
      %v1221 = vpop.f32.mrb[0].mxu0
      %v1222 = vpop.f32.mrb[0].mxu0
      %v1223 = vpop.f32.mrb[0].mxu0
      %1224 = vdwg.mxu0
      %1226 = vrot.lane.b32.xlu0 %v1036, 96
      %v1227 = vpop.permute.xlu0 %1226
      %v1229 = vsel %vm1080, %v1036, 0
      %v1232 = vsel %vm1080, %v1227, 0
      %1234 = vmatprep.subr.bf16.mxu0 0
      %1235 = vmatpush1.bf16.xpose.msra.mxu0 %v1232
      %1236 = vmatprep.subr.bf16.mxu0 0
      %1237 = vmatpush1.bf16.xpose.msra.mxu0 0
      %1238 = vmatprep.subr.bf16.mxu0 0
      %1239 = vmatpush1.bf16.xpose.msra.mxu0 0
      %1240 = vmatprep.subr.bf16.mxu0 0
      %1241 = vmatpush1.bf16.xpose.msra.mxu0 0
      %1242 = vmatprep.subr.bf16.mxu0 0
      %1243 = vmatpush1.bf16.xpose.msra.mxu0 0
      %1244 = vmatprep.subr.bf16.mxu0 0
      %1245 = vmatpush1.bf16.xpose.msra.mxu0 0
      %1246 = vmatprep.subr.bf16.mxu0 0
      %1247 = vmatpush1.bf16.xpose.msra.mxu0 0
      %1248 = vmatprep.subr.bf16.mxu0 0
      %1249 = vmatpush1.bf16.xpose.msra.mxu0 0
      %1250 = vmatprep.subr.bf16.mxu0 0
      %1251 = vmatpush1.bf16.xpose.msra.mxu0 0
      %1252 = vmatprep.subr.bf16.mxu0 0
      %1253 = vmatpush1.bf16.xpose.msra.mxu0 0
      %1254 = vmatprep.subr.bf16.mxu0 0
      %1255 = vmatpush1.bf16.xpose.msra.mxu0 0
      %1256 = vmatprep.subr.bf16.mxu0 0
      %1257 = vmatpush1.bf16.xpose.msra.mxu0 0
      %1258 = vmatprep.subr.bf16.mxu0 0
      %1259 = vmatpush1.bf16.xpose.msra.mxu0 0
      %1260 = vmatprep.subr.bf16.mxu0 0
      %1261 = vmatpush1.bf16.xpose.msra.mxu0 0
      %1262 = vmatprep.subr.bf16.mxu0 0
      %1263 = vmatpush1.bf16.xpose.msra.mxu0 0
      %1264 = vmatprep.subr.bf16.mxu0 0
      %1265 = vmatpush1.bf16.xpose.msra.mxu0 0
      %1266 = vmatprep.mubr.bf16.mxu0 0
      %1267 = vmatmul.mubr.bf16.gmra.mrb[0].mxu0 %v1229
      %v1268 = vpop.f32.mrb[0].mxu0
      %v1269 = vadd.f32 %v1072, %v1268
      %v1270 = vpop.f32.mrb[0].mxu0
      %v1271 = vpop.f32.mrb[0].mxu0
      %v1272 = vpop.f32.mrb[0].mxu0
      %1273 = vdwg.mxu0
      %1275 = vrot.lane.b32.xlu0 %v1037, 96
      %v1276 = vpop.permute.xlu0 %1275
      %v1278 = vsel %vm1080, %v1037, 0
      %v1281 = vsel %vm1080, %v1276, 0
      %1283 = vmatprep.subr.bf16.mxu0 0
      %1284 = vmatpush1.bf16.xpose.msra.mxu0 %v1281
      %1285 = vmatprep.subr.bf16.mxu0 0
      %1286 = vmatpush1.bf16.xpose.msra.mxu0 0
      %1287 = vmatprep.subr.bf16.mxu0 0
      %1288 = vmatpush1.bf16.xpose.msra.mxu0 0
      %1289 = vmatprep.subr.bf16.mxu0 0
      %1290 = vmatpush1.bf16.xpose.msra.mxu0 0
      %1291 = vmatprep.subr.bf16.mxu0 0
      %1292 = vmatpush1.bf16.xpose.msra.mxu0 0
      %1293 = vmatprep.subr.bf16.mxu0 0
      %1294 = vmatpush1.bf16.xpose.msra.mxu0 0
      %1295 = vmatprep.subr.bf16.mxu0 0
      %1296 = vmatpush1.bf16.xpose.msra.mxu0 0
      %1297 = vmatprep.subr.bf16.mxu0 0
      %1298 = vmatpush1.bf16.xpose.msra.mxu0 0
      %1299 = vmatprep.subr.bf16.mxu0 0
      %1300 = vmatpush1.bf16.xpose.msra.mxu0 0
      %1301 = vmatprep.subr.bf16.mxu0 0
      %1302 = vmatpush1.bf16.xpose.msra.mxu0 0
      %1303 = vmatprep.subr.bf16.mxu0 0
      %1304 = vmatpush1.bf16.xpose.msra.mxu0 0
      %1305 = vmatprep.subr.bf16.mxu0 0
      %1306 = vmatpush1.bf16.xpose.msra.mxu0 0
      %1307 = vmatprep.subr.bf16.mxu0 0
      %1308 = vmatpush1.bf16.xpose.msra.mxu0 0
      %1309 = vmatprep.subr.bf16.mxu0 0
      %1310 = vmatpush1.bf16.xpose.msra.mxu0 0
      %1311 = vmatprep.subr.bf16.mxu0 0
      %1312 = vmatpush1.bf16.xpose.msra.mxu0 0
      %1313 = vmatprep.subr.bf16.mxu0 0
      %1314 = vmatpush1.bf16.xpose.msra.mxu0 0
      %1315 = vmatprep.mubr.bf16.mxu0 0
      %1316 = vmatmul.mubr.bf16.gmra.mrb[0].mxu0 %v1278
      %v1317 = vpop.f32.mrb[0].mxu0
      %v1318 = vadd.f32 %v1060, %v1317
      %v1319 = vpop.f32.mrb[0].mxu0
      %v1320 = vpop.f32.mrb[0].mxu0
      %v1321 = vpop.f32.mrb[0].mxu0
      %1322 = vdwg.mxu0
      %1324 = vrot.lane.b32.xlu0 %v1038, 96
      %v1325 = vpop.permute.xlu0 %1324
      %v1327 = vsel %vm1080, %v1038, 0
      %v1330 = vsel %vm1080, %v1325, 0
      %1332 = vmatprep.subr.bf16.mxu0 0
      %1333 = vmatpush1.bf16.xpose.msra.mxu0 %v1330
      %1334 = vmatprep.subr.bf16.mxu0 0
      %1335 = vmatpush1.bf16.xpose.msra.mxu0 0
      %1336 = vmatprep.subr.bf16.mxu0 0
      %1337 = vmatpush1.bf16.xpose.msra.mxu0 0
      %1338 = vmatprep.subr.bf16.mxu0 0
      %1339 = vmatpush1.bf16.xpose.msra.mxu0 0
      %1340 = vmatprep.subr.bf16.mxu0 0
      %1341 = vmatpush1.bf16.xpose.msra.mxu0 0
      %1342 = vmatprep.subr.bf16.mxu0 0
      %1343 = vmatpush1.bf16.xpose.msra.mxu0 0
      %1344 = vmatprep.subr.bf16.mxu0 0
      %1345 = vmatpush1.bf16.xpose.msra.mxu0 0
      %1346 = vmatprep.subr.bf16.mxu0 0
      %1347 = vmatpush1.bf16.xpose.msra.mxu0 0
      %1348 = vmatprep.subr.bf16.mxu0 0
      %1349 = vmatpush1.bf16.xpose.msra.mxu0 0
      %1350 = vmatprep.subr.bf16.mxu0 0
      %1351 = vmatpush1.bf16.xpose.msra.mxu0 0
      %1352 = vmatprep.subr.bf16.mxu0 0
      %1353 = vmatpush1.bf16.xpose.msra.mxu0 0
      %1354 = vmatprep.subr.bf16.mxu0 0
      %1355 = vmatpush1.bf16.xpose.msra.mxu0 0
      %1356 = vmatprep.subr.bf16.mxu0 0
      %1357 = vmatpush1.bf16.xpose.msra.mxu0 0
      %1358 = vmatprep.subr.bf16.mxu0 0
      %1359 = vmatpush1.bf16.xpose.msra.mxu0 0
      %1360 = vmatprep.subr.bf16.mxu0 0
      %1361 = vmatpush1.bf16.xpose.msra.mxu0 0
      %1362 = vmatprep.subr.bf16.mxu0 0
      %1363 = vmatpush1.bf16.xpose.msra.mxu0 0
      %1364 = vmatprep.mubr.bf16.mxu0 0
      %1365 = vmatmul.mubr.bf16.gmra.mrb[0].mxu0 %v1327
      %v1366 = vpop.f32.mrb[0].mxu0
      %v1367 = vadd.f32 %v1064, %v1366
      %v1368 = vpop.f32.mrb[0].mxu0
      %v1369 = vpop.f32.mrb[0].mxu0
      %v1370 = vpop.f32.mrb[0].mxu0
      %1371 = vdwg.mxu0
      %1373 = vrot.lane.b32.xlu0 %v1039, 96
      %v1374 = vpop.permute.xlu0 %1373
      %v1376 = vsel %vm1080, %v1039, 0
      %v1379 = vsel %vm1080, %v1374, 0
      %1381 = vmatprep.subr.bf16.mxu0 0
      %1382 = vmatpush1.bf16.xpose.msra.mxu0 %v1379
      %1383 = vmatprep.subr.bf16.mxu0 0
      %1384 = vmatpush1.bf16.xpose.msra.mxu0 0
      %1385 = vmatprep.subr.bf16.mxu0 0
      %1386 = vmatpush1.bf16.xpose.msra.mxu0 0
      %1387 = vmatprep.subr.bf16.mxu0 0
      %1388 = vmatpush1.bf16.xpose.msra.mxu0 0
      %1389 = vmatprep.subr.bf16.mxu0 0
      %1390 = vmatpush1.bf16.xpose.msra.mxu0 0
      %1391 = vmatprep.subr.bf16.mxu0 0
      %1392 = vmatpush1.bf16.xpose.msra.mxu0 0
      %1393 = vmatprep.subr.bf16.mxu0 0
      %1394 = vmatpush1.bf16.xpose.msra.mxu0 0
      %1395 = vmatprep.subr.bf16.mxu0 0
      %1396 = vmatpush1.bf16.xpose.msra.mxu0 0
      %1397 = vmatprep.subr.bf16.mxu0 0
      %1398 = vmatpush1.bf16.xpose.msra.mxu0 0
      %1399 = vmatprep.subr.bf16.mxu0 0
      %1400 = vmatpush1.bf16.xpose.msra.mxu0 0
      %1401 = vmatprep.subr.bf16.mxu0 0
      %1402 = vmatpush1.bf16.xpose.msra.mxu0 0
      %1403 = vmatprep.subr.bf16.mxu0 0
      %1404 = vmatpush1.bf16.xpose.msra.mxu0 0
      %1405 = vmatprep.subr.bf16.mxu0 0
      %1406 = vmatpush1.bf16.xpose.msra.mxu0 0
      %1407 = vmatprep.subr.bf16.mxu0 0
      %1408 = vmatpush1.bf16.xpose.msra.mxu0 0
      %1409 = vmatprep.subr.bf16.mxu0 0
      %1410 = vmatpush1.bf16.xpose.msra.mxu0 0
      %1411 = vmatprep.subr.bf16.mxu0 0
      %1412 = vmatpush1.bf16.xpose.msra.mxu0 0
      %1413 = vmatprep.mubr.bf16.mxu0 0
      %1414 = vmatmul.mubr.bf16.gmra.mrb[0].mxu0 %v1376
      %v1415 = vpop.f32.mrb[0].mxu0
      %v1416 = vadd.f32 %v1068, %v1415
      %v1417 = vpop.f32.mrb[0].mxu0
      %v1418 = vpop.f32.mrb[0].mxu0
      %v1419 = vpop.f32.mrb[0].mxu0
      %1420 = vdwg.mxu0
      %1422 = vrot.lane.b32.xlu0 %v1040, 96
      %v1423 = vpop.permute.xlu0 %1422
      %v1425 = vsel %vm1080, %v1040, 0
      %v1428 = vsel %vm1080, %v1423, 0
      %1430 = vmatprep.subr.bf16.mxu0 0
      %1431 = vmatpush1.bf16.xpose.msra.mxu0 %v1428
      %1432 = vmatprep.subr.bf16.mxu0 0
      %1433 = vmatpush1.bf16.xpose.msra.mxu0 0
      %1434 = vmatprep.subr.bf16.mxu0 0
      %1435 = vmatpush1.bf16.xpose.msra.mxu0 0
      %1436 = vmatprep.subr.bf16.mxu0 0
      %1437 = vmatpush1.bf16.xpose.msra.mxu0 0
      %1438 = vmatprep.subr.bf16.mxu0 0
      %1439 = vmatpush1.bf16.xpose.msra.mxu0 0
      %1440 = vmatprep.subr.bf16.mxu0 0
      %1441 = vmatpush1.bf16.xpose.msra.mxu0 0
      %1442 = vmatprep.subr.bf16.mxu0 0
      %1443 = vmatpush1.bf16.xpose.msra.mxu0 0
      %1444 = vmatprep.subr.bf16.mxu0 0
      %1445 = vmatpush1.bf16.xpose.msra.mxu0 0
      %1446 = vmatprep.subr.bf16.mxu0 0
      %1447 = vmatpush1.bf16.xpose.msra.mxu0 0
      %1448 = vmatprep.subr.bf16.mxu0 0
      %1449 = vmatpush1.bf16.xpose.msra.mxu0 0
      %1450 = vmatprep.subr.bf16.mxu0 0
      %1451 = vmatpush1.bf16.xpose.msra.mxu0 0
      %1452 = vmatprep.subr.bf16.mxu0 0
      %1453 = vmatpush1.bf16.xpose.msra.mxu0 0
      %1454 = vmatprep.subr.bf16.mxu0 0
      %1455 = vmatpush1.bf16.xpose.msra.mxu0 0
      %1456 = vmatprep.subr.bf16.mxu0 0
      %1457 = vmatpush1.bf16.xpose.msra.mxu0 0
      %1458 = vmatprep.subr.bf16.mxu0 0
      %1459 = vmatpush1.bf16.xpose.msra.mxu0 0
      %1460 = vmatprep.subr.bf16.mxu0 0
      %1461 = vmatpush1.bf16.xpose.msra.mxu0 0
      %1462 = vmatprep.mubr.bf16.mxu0 0
      %1463 = vmatmul.mubr.bf16.gmra.mrb[0].mxu0 %v1425
      %v1464 = vpop.f32.mrb[0].mxu0
      %v1465 = vadd.f32 %v1072, %v1464
      %v1466 = vpop.f32.mrb[0].mxu0
      %v1467 = vpop.f32.mrb[0].mxu0
      %v1468 = vpop.f32.mrb[0].mxu0
      %1469 = vdwg.mxu0
      %1471 = vrot.lane.b32.xlu0 %v1041, 96
      %v1472 = vpop.permute.xlu0 %1471
      %v1474 = vsel %vm1080, %v1041, 0
      %v1477 = vsel %vm1080, %v1472, 0
      %1479 = vmatprep.subr.bf16.mxu0 0
      %1480 = vmatpush1.bf16.xpose.msra.mxu0 %v1477
      %1481 = vmatprep.subr.bf16.mxu0 0
      %1482 = vmatpush1.bf16.xpose.msra.mxu0 0
      %1483 = vmatprep.subr.bf16.mxu0 0
      %1484 = vmatpush1.bf16.xpose.msra.mxu0 0
      %1485 = vmatprep.subr.bf16.mxu0 0
      %1486 = vmatpush1.bf16.xpose.msra.mxu0 0
      %1487 = vmatprep.subr.bf16.mxu0 0
      %1488 = vmatpush1.bf16.xpose.msra.mxu0 0
      %1489 = vmatprep.subr.bf16.mxu0 0
      %1490 = vmatpush1.bf16.xpose.msra.mxu0 0
      %1491 = vmatprep.subr.bf16.mxu0 0
      %1492 = vmatpush1.bf16.xpose.msra.mxu0 0
      %1493 = vmatprep.subr.bf16.mxu0 0
      %1494 = vmatpush1.bf16.xpose.msra.mxu0 0
      %1495 = vmatprep.subr.bf16.mxu0 0
      %1496 = vmatpush1.bf16.xpose.msra.mxu0 0
      %1497 = vmatprep.subr.bf16.mxu0 0
      %1498 = vmatpush1.bf16.xpose.msra.mxu0 0
      %1499 = vmatprep.subr.bf16.mxu0 0
      %1500 = vmatpush1.bf16.xpose.msra.mxu0 0
      %1501 = vmatprep.subr.bf16.mxu0 0
      %1502 = vmatpush1.bf16.xpose.msra.mxu0 0
      %1503 = vmatprep.subr.bf16.mxu0 0
      %1504 = vmatpush1.bf16.xpose.msra.mxu0 0
      %1505 = vmatprep.subr.bf16.mxu0 0
      %1506 = vmatpush1.bf16.xpose.msra.mxu0 0
      %1507 = vmatprep.subr.bf16.mxu0 0
      %1508 = vmatpush1.bf16.xpose.msra.mxu0 0
      %1509 = vmatprep.subr.bf16.mxu0 0
      %1510 = vmatpush1.bf16.xpose.msra.mxu0 0
      %1511 = vmatprep.mubr.bf16.mxu0 0
      %1512 = vmatmul.mubr.bf16.gmra.mrb[0].mxu0 %v1474
      %v1513 = vpop.f32.mrb[0].mxu0
      %v1514 = vadd.f32 %v1060, %v1513
      %v1515 = vpop.f32.mrb[0].mxu0
      %v1516 = vpop.f32.mrb[0].mxu0
      %v1517 = vpop.f32.mrb[0].mxu0
      %1518 = vdwg.mxu0
      %1520 = vrot.lane.b32.xlu0 %v1042, 96
      %v1521 = vpop.permute.xlu0 %1520
      %v1523 = vsel %vm1080, %v1042, 0
      %v1526 = vsel %vm1080, %v1521, 0
      %1528 = vmatprep.subr.bf16.mxu0 0
      %1529 = vmatpush1.bf16.xpose.msra.mxu0 %v1526
      %1530 = vmatprep.subr.bf16.mxu0 0
      %1531 = vmatpush1.bf16.xpose.msra.mxu0 0
      %1532 = vmatprep.subr.bf16.mxu0 0
      %1533 = vmatpush1.bf16.xpose.msra.mxu0 0
      %1534 = vmatprep.subr.bf16.mxu0 0
      %1535 = vmatpush1.bf16.xpose.msra.mxu0 0
      %1536 = vmatprep.subr.bf16.mxu0 0
      %1537 = vmatpush1.bf16.xpose.msra.mxu0 0
      %1538 = vmatprep.subr.bf16.mxu0 0
      %1539 = vmatpush1.bf16.xpose.msra.mxu0 0
      %1540 = vmatprep.subr.bf16.mxu0 0
      %1541 = vmatpush1.bf16.xpose.msra.mxu0 0
      %1542 = vmatprep.subr.bf16.mxu0 0
      %1543 = vmatpush1.bf16.xpose.msra.mxu0 0
      %1544 = vmatprep.subr.bf16.mxu0 0
      %1545 = vmatpush1.bf16.xpose.msra.mxu0 0
      %1546 = vmatprep.subr.bf16.mxu0 0
      %1547 = vmatpush1.bf16.xpose.msra.mxu0 0
      %1548 = vmatprep.subr.bf16.mxu0 0
      %1549 = vmatpush1.bf16.xpose.msra.mxu0 0
      %1550 = vmatprep.subr.bf16.mxu0 0
      %1551 = vmatpush1.bf16.xpose.msra.mxu0 0
      %1552 = vmatprep.subr.bf16.mxu0 0
      %1553 = vmatpush1.bf16.xpose.msra.mxu0 0
      %1554 = vmatprep.subr.bf16.mxu0 0
      %1555 = vmatpush1.bf16.xpose.msra.mxu0 0
      %1556 = vmatprep.subr.bf16.mxu0 0
      %1557 = vmatpush1.bf16.xpose.msra.mxu0 0
      %1558 = vmatprep.subr.bf16.mxu0 0
      %1559 = vmatpush1.bf16.xpose.msra.mxu0 0
      %1560 = vmatprep.mubr.bf16.mxu0 0
      %1561 = vmatmul.mubr.bf16.gmra.mrb[0].mxu0 %v1523
      %v1562 = vpop.f32.mrb[0].mxu0
      %v1563 = vadd.f32 %v1064, %v1562
      %v1564 = vpop.f32.mrb[0].mxu0
      %v1565 = vpop.f32.mrb[0].mxu0
      %v1566 = vpop.f32.mrb[0].mxu0
      %1567 = vdwg.mxu0
      %1569 = vrot.lane.b32.xlu0 %v1043, 96
      %v1570 = vpop.permute.xlu0 %1569
      %v1572 = vsel %vm1080, %v1043, 0
      %v1575 = vsel %vm1080, %v1570, 0
      %1577 = vmatprep.subr.bf16.mxu0 0
      %1578 = vmatpush1.bf16.xpose.msra.mxu0 %v1575
      %1579 = vmatprep.subr.bf16.mxu0 0
      %1580 = vmatpush1.bf16.xpose.msra.mxu0 0
      %1581 = vmatprep.subr.bf16.mxu0 0
      %1582 = vmatpush1.bf16.xpose.msra.mxu0 0
      %1583 = vmatprep.subr.bf16.mxu0 0
      %1584 = vmatpush1.bf16.xpose.msra.mxu0 0
      %1585 = vmatprep.subr.bf16.mxu0 0
      %1586 = vmatpush1.bf16.xpose.msra.mxu0 0
      %1587 = vmatprep.subr.bf16.mxu0 0
      %1588 = vmatpush1.bf16.xpose.msra.mxu0 0
      %1589 = vmatprep.subr.bf16.mxu0 0
      %1590 = vmatpush1.bf16.xpose.msra.mxu0 0
      %1591 = vmatprep.subr.bf16.mxu0 0
      %1592 = vmatpush1.bf16.xpose.msra.mxu0 0
      %1593 = vmatprep.subr.bf16.mxu0 0
      %1594 = vmatpush1.bf16.xpose.msra.mxu0 0
      %1595 = vmatprep.subr.bf16.mxu0 0
      %1596 = vmatpush1.bf16.xpose.msra.mxu0 0
      %1597 = vmatprep.subr.bf16.mxu0 0
      %1598 = vmatpush1.bf16.xpose.msra.mxu0 0
      %1599 = vmatprep.subr.bf16.mxu0 0
      %1600 = vmatpush1.bf16.xpose.msra.mxu0 0
      %1601 = vmatprep.subr.bf16.mxu0 0
      %1602 = vmatpush1.bf16.xpose.msra.mxu0 0
      %1603 = vmatprep.subr.bf16.mxu0 0
      %1604 = vmatpush1.bf16.xpose.msra.mxu0 0
      %1605 = vmatprep.subr.bf16.mxu0 0
      %1606 = vmatpush1.bf16.xpose.msra.mxu0 0
      %1607 = vmatprep.subr.bf16.mxu0 0
      %1608 = vmatpush1.bf16.xpose.msra.mxu0 0
      %1609 = vmatprep.mubr.bf16.mxu0 0
      %1610 = vmatmul.mubr.bf16.gmra.mrb[0].mxu0 %v1572
      %v1611 = vpop.f32.mrb[0].mxu0
      %v1612 = vadd.f32 %v1068, %v1611
      %v1613 = vpop.f32.mrb[0].mxu0
      %v1614 = vpop.f32.mrb[0].mxu0
      %v1615 = vpop.f32.mrb[0].mxu0
      %1616 = vdwg.mxu0
      %1618 = vrot.lane.b32.xlu0 %v1044, 96
      %v1619 = vpop.permute.xlu0 %1618
      %v1621 = vsel %vm1080, %v1044, 0
      %v1624 = vsel %vm1080, %v1619, 0
      %1626 = vmatprep.subr.bf16.mxu0 0
      %1627 = vmatpush1.bf16.xpose.msra.mxu0 %v1624
      %1628 = vmatprep.subr.bf16.mxu0 0
      %1629 = vmatpush1.bf16.xpose.msra.mxu0 0
      %1630 = vmatprep.subr.bf16.mxu0 0
      %1631 = vmatpush1.bf16.xpose.msra.mxu0 0
      %1632 = vmatprep.subr.bf16.mxu0 0
      %1633 = vmatpush1.bf16.xpose.msra.mxu0 0
      %1634 = vmatprep.subr.bf16.mxu0 0
      %1635 = vmatpush1.bf16.xpose.msra.mxu0 0
      %1636 = vmatprep.subr.bf16.mxu0 0
      %1637 = vmatpush1.bf16.xpose.msra.mxu0 0
      %1638 = vmatprep.subr.bf16.mxu0 0
      %1639 = vmatpush1.bf16.xpose.msra.mxu0 0
      %1640 = vmatprep.subr.bf16.mxu0 0
      %1641 = vmatpush1.bf16.xpose.msra.mxu0 0
      %1642 = vmatprep.subr.bf16.mxu0 0
      %1643 = vmatpush1.bf16.xpose.msra.mxu0 0
      %1644 = vmatprep.subr.bf16.mxu0 0
      %1645 = vmatpush1.bf16.xpose.msra.mxu0 0
      %1646 = vmatprep.subr.bf16.mxu0 0
      %1647 = vmatpush1.bf16.xpose.msra.mxu0 0
      %1648 = vmatprep.subr.bf16.mxu0 0
      %1649 = vmatpush1.bf16.xpose.msra.mxu0 0
      %1650 = vmatprep.subr.bf16.mxu0 0
      %1651 = vmatpush1.bf16.xpose.msra.mxu0 0
      %1652 = vmatprep.subr.bf16.mxu0 0
      %1653 = vmatpush1.bf16.xpose.msra.mxu0 0
      %1654 = vmatprep.subr.bf16.mxu0 0
      %1655 = vmatpush1.bf16.xpose.msra.mxu0 0
      %1656 = vmatprep.subr.bf16.mxu0 0
      %1657 = vmatpush1.bf16.xpose.msra.mxu0 0
      %1658 = vmatprep.mubr.bf16.mxu0 0
      %1659 = vmatmul.mubr.bf16.gmra.mrb[0].mxu0 %v1621
      %v1660 = vpop.f32.mrb[0].mxu0
      %v1661 = vadd.f32 %v1072, %v1660
      %v1662 = vpop.f32.mrb[0].mxu0
      %v1663 = vpop.f32.mrb[0].mxu0
      %v1664 = vpop.f32.mrb[0].mxu0
      %1665 = vdwg.mxu0
      %1667 = vrot.lane.b32.xlu0 %v1045, 96
      %v1668 = vpop.permute.xlu0 %1667
      %v1670 = vsel %vm1080, %v1045, 0
      %v1673 = vsel %vm1080, %v1668, 0
      %1675 = vmatprep.subr.bf16.mxu0 0
      %1676 = vmatpush1.bf16.xpose.msra.mxu0 %v1673
      %1677 = vmatprep.subr.bf16.mxu0 0
      %1678 = vmatpush1.bf16.xpose.msra.mxu0 0
      %1679 = vmatprep.subr.bf16.mxu0 0
      %1680 = vmatpush1.bf16.xpose.msra.mxu0 0
      %1681 = vmatprep.subr.bf16.mxu0 0
      %1682 = vmatpush1.bf16.xpose.msra.mxu0 0
      %1683 = vmatprep.subr.bf16.mxu0 0
      %1684 = vmatpush1.bf16.xpose.msra.mxu0 0
      %1685 = vmatprep.subr.bf16.mxu0 0
      %1686 = vmatpush1.bf16.xpose.msra.mxu0 0
      %1687 = vmatprep.subr.bf16.mxu0 0
      %1688 = vmatpush1.bf16.xpose.msra.mxu0 0
      %1689 = vmatprep.subr.bf16.mxu0 0
      %1690 = vmatpush1.bf16.xpose.msra.mxu0 0
      %1691 = vmatprep.subr.bf16.mxu0 0
      %1692 = vmatpush1.bf16.xpose.msra.mxu0 0
      %1693 = vmatprep.subr.bf16.mxu0 0
      %1694 = vmatpush1.bf16.xpose.msra.mxu0 0
      %1695 = vmatprep.subr.bf16.mxu0 0
      %1696 = vmatpush1.bf16.xpose.msra.mxu0 0
      %1697 = vmatprep.subr.bf16.mxu0 0
      %1698 = vmatpush1.bf16.xpose.msra.mxu0 0
      %1699 = vmatprep.subr.bf16.mxu0 0
      %1700 = vmatpush1.bf16.xpose.msra.mxu0 0
      %1701 = vmatprep.subr.bf16.mxu0 0
      %1702 = vmatpush1.bf16.xpose.msra.mxu0 0
      %1703 = vmatprep.subr.bf16.mxu0 0
      %1704 = vmatpush1.bf16.xpose.msra.mxu0 0
      %1705 = vmatprep.subr.bf16.mxu0 0
      %1706 = vmatpush1.bf16.xpose.msra.mxu0 0
      %1707 = vmatprep.mubr.bf16.mxu0 0
      %1708 = vmatmul.mubr.bf16.gmra.mrb[0].mxu0 %v1670
      %v1709 = vpop.f32.mrb[0].mxu0
      %v1710 = vadd.f32 %v1060, %v1709
      %v1711 = vpop.f32.mrb[0].mxu0
      %v1712 = vpop.f32.mrb[0].mxu0
      %v1713 = vpop.f32.mrb[0].mxu0
      %1714 = vdwg.mxu0
      %1716 = vrot.lane.b32.xlu0 %v1046, 96
      %v1717 = vpop.permute.xlu0 %1716
      %v1719 = vsel %vm1080, %v1046, 0
      %v1722 = vsel %vm1080, %v1717, 0
      %1724 = vmatprep.subr.bf16.mxu0 0
      %1725 = vmatpush1.bf16.xpose.msra.mxu0 %v1722
      %1726 = vmatprep.subr.bf16.mxu0 0
      %1727 = vmatpush1.bf16.xpose.msra.mxu0 0
      %1728 = vmatprep.subr.bf16.mxu0 0
      %1729 = vmatpush1.bf16.xpose.msra.mxu0 0
      %1730 = vmatprep.subr.bf16.mxu0 0
      %1731 = vmatpush1.bf16.xpose.msra.mxu0 0
      %1732 = vmatprep.subr.bf16.mxu0 0
      %1733 = vmatpush1.bf16.xpose.msra.mxu0 0
      %1734 = vmatprep.subr.bf16.mxu0 0
      %1735 = vmatpush1.bf16.xpose.msra.mxu0 0
      %1736 = vmatprep.subr.bf16.mxu0 0
      %1737 = vmatpush1.bf16.xpose.msra.mxu0 0
      %1738 = vmatprep.subr.bf16.mxu0 0
      %1739 = vmatpush1.bf16.xpose.msra.mxu0 0
      %1740 = vmatprep.subr.bf16.mxu0 0
      %1741 = vmatpush1.bf16.xpose.msra.mxu0 0
      %1742 = vmatprep.subr.bf16.mxu0 0
      %1743 = vmatpush1.bf16.xpose.msra.mxu0 0
      %1744 = vmatprep.subr.bf16.mxu0 0
      %1745 = vmatpush1.bf16.xpose.msra.mxu0 0
      %1746 = vmatprep.subr.bf16.mxu0 0
      %1747 = vmatpush1.bf16.xpose.msra.mxu0 0
      %1748 = vmatprep.subr.bf16.mxu0 0
      %1749 = vmatpush1.bf16.xpose.msra.mxu0 0
      %1750 = vmatprep.subr.bf16.mxu0 0
      %1751 = vmatpush1.bf16.xpose.msra.mxu0 0
      %1752 = vmatprep.subr.bf16.mxu0 0
      %1753 = vmatpush1.bf16.xpose.msra.mxu0 0
      %1754 = vmatprep.subr.bf16.mxu0 0
      %1755 = vmatpush1.bf16.xpose.msra.mxu0 0
      %1756 = vmatprep.mubr.bf16.mxu0 0
      %1757 = vmatmul.mubr.bf16.gmra.mrb[0].mxu0 %v1719
      %v1758 = vpop.f32.mrb[0].mxu0
      %v1759 = vadd.f32 %v1064, %v1758
      %v1760 = vpop.f32.mrb[0].mxu0
      %v1761 = vpop.f32.mrb[0].mxu0
      %v1762 = vpop.f32.mrb[0].mxu0
      %1763 = vdwg.mxu0
      %1765 = vrot.lane.b32.xlu0 %v1047, 96
      %v1766 = vpop.permute.xlu0 %1765
      %v1768 = vsel %vm1080, %v1047, 0
      %v1771 = vsel %vm1080, %v1766, 0
      %1773 = vmatprep.subr.bf16.mxu0 0
      %1774 = vmatpush1.bf16.xpose.msra.mxu0 %v1771
      %1775 = vmatprep.subr.bf16.mxu0 0
      %1776 = vmatpush1.bf16.xpose.msra.mxu0 0
      %1777 = vmatprep.subr.bf16.mxu0 0
      %1778 = vmatpush1.bf16.xpose.msra.mxu0 0
      %1779 = vmatprep.subr.bf16.mxu0 0
      %1780 = vmatpush1.bf16.xpose.msra.mxu0 0
      %1781 = vmatprep.subr.bf16.mxu0 0
      %1782 = vmatpush1.bf16.xpose.msra.mxu0 0
      %1783 = vmatprep.subr.bf16.mxu0 0
      %1784 = vmatpush1.bf16.xpose.msra.mxu0 0
      %1785 = vmatprep.subr.bf16.mxu0 0
      %1786 = vmatpush1.bf16.xpose.msra.mxu0 0
      %1787 = vmatprep.subr.bf16.mxu0 0
      %1788 = vmatpush1.bf16.xpose.msra.mxu0 0
      %1789 = vmatprep.subr.bf16.mxu0 0
      %1790 = vmatpush1.bf16.xpose.msra.mxu0 0
      %1791 = vmatprep.subr.bf16.mxu0 0
      %1792 = vmatpush1.bf16.xpose.msra.mxu0 0
      %1793 = vmatprep.subr.bf16.mxu0 0
      %1794 = vmatpush1.bf16.xpose.msra.mxu0 0
      %1795 = vmatprep.subr.bf16.mxu0 0
      %1796 = vmatpush1.bf16.xpose.msra.mxu0 0
      %1797 = vmatprep.subr.bf16.mxu0 0
      %1798 = vmatpush1.bf16.xpose.msra.mxu0 0
      %1799 = vmatprep.subr.bf16.mxu0 0
      %1800 = vmatpush1.bf16.xpose.msra.mxu0 0
      %1801 = vmatprep.subr.bf16.mxu0 0
      %1802 = vmatpush1.bf16.xpose.msra.mxu0 0
      %1803 = vmatprep.subr.bf16.mxu0 0
      %1804 = vmatpush1.bf16.xpose.msra.mxu0 0
      %1805 = vmatprep.mubr.bf16.mxu0 0
      %1806 = vmatmul.mubr.bf16.gmra.mrb[0].mxu0 %v1768
      %v1807 = vpop.f32.mrb[0].mxu0
      %v1808 = vadd.f32 %v1068, %v1807
      %v1809 = vpop.f32.mrb[0].mxu0
      %v1810 = vpop.f32.mrb[0].mxu0
      %v1811 = vpop.f32.mrb[0].mxu0
      %1812 = vdwg.mxu0
      %1814 = vrot.lane.b32.xlu0 %v1048, 96
      %v1815 = vpop.permute.xlu0 %1814
      %v1817 = vsel %vm1080, %v1048, 0
      %v1820 = vsel %vm1080, %v1815, 0
      %1822 = vmatprep.subr.bf16.mxu0 0
      %1823 = vmatpush1.bf16.xpose.msra.mxu0 %v1820
      %1824 = vmatprep.subr.bf16.mxu0 0
      %1825 = vmatpush1.bf16.xpose.msra.mxu0 0
      %1826 = vmatprep.subr.bf16.mxu0 0
      %1827 = vmatpush1.bf16.xpose.msra.mxu0 0
      %1828 = vmatprep.subr.bf16.mxu0 0
      %1829 = vmatpush1.bf16.xpose.msra.mxu0 0
      %1830 = vmatprep.subr.bf16.mxu0 0
      %1831 = vmatpush1.bf16.xpose.msra.mxu0 0
      %1832 = vmatprep.subr.bf16.mxu0 0
      %1833 = vmatpush1.bf16.xpose.msra.mxu0 0
      %1834 = vmatprep.subr.bf16.mxu0 0
      %1835 = vmatpush1.bf16.xpose.msra.mxu0 0
      %1836 = vmatprep.subr.bf16.mxu0 0
      %1837 = vmatpush1.bf16.xpose.msra.mxu0 0
      %1838 = vmatprep.subr.bf16.mxu0 0
      %1839 = vmatpush1.bf16.xpose.msra.mxu0 0
      %1840 = vmatprep.subr.bf16.mxu0 0
      %1841 = vmatpush1.bf16.xpose.msra.mxu0 0
      %1842 = vmatprep.subr.bf16.mxu0 0
      %1843 = vmatpush1.bf16.xpose.msra.mxu0 0
      %1844 = vmatprep.subr.bf16.mxu0 0
      %1845 = vmatpush1.bf16.xpose.msra.mxu0 0
      %1846 = vmatprep.subr.bf16.mxu0 0
      %1847 = vmatpush1.bf16.xpose.msra.mxu0 0
      %1848 = vmatprep.subr.bf16.mxu0 0
      %1849 = vmatpush1.bf16.xpose.msra.mxu0 0
      %1850 = vmatprep.subr.bf16.mxu0 0
      %1851 = vmatpush1.bf16.xpose.msra.mxu0 0
      %1852 = vmatprep.subr.bf16.mxu0 0
      %1853 = vmatpush1.bf16.xpose.msra.mxu0 0
      %1854 = vmatprep.mubr.bf16.mxu0 0
      %1855 = vmatmul.mubr.bf16.gmra.mrb[0].mxu0 %v1817
      %v1856 = vpop.f32.mrb[0].mxu0
      %v1857 = vadd.f32 %v1072, %v1856
      %v1858 = vpop.f32.mrb[0].mxu0
      %v1859 = vpop.f32.mrb[0].mxu0
      %v1860 = vpop.f32.mrb[0].mxu0
      %1861 = vdwg.mxu0
      %v1862 = vsel %vm1080, %v1122, -inf
      %1863 = vmax.xlane.f32.xlu0 %v1862
      %v1864 = vpop.xlane.xlu0 %1863
      %v1865 = vsel %vm1080, %v1171, -inf
      %1866 = vmax.xlane.f32.xlu0 %v1865
      %v1867 = vpop.xlane.xlu0 %1866
      %v1868 = vsel %vm1080, %v1220, -inf
      %1869 = vmax.xlane.f32.xlu0 %v1868
      %v1870 = vpop.xlane.xlu0 %1869
      %v1871 = vsel %vm1080, %v1269, -inf
      %1872 = vmax.xlane.f32.xlu0 %v1871
      %v1873 = vpop.xlane.xlu0 %1872
      %v1874 = vsel %vm1080, %v1318, -inf
      %1875 = vmax.xlane.f32.xlu0 %v1874
      %v1876 = vpop.xlane.xlu0 %1875
      %v1877 = vsel %vm1080, %v1367, -inf
      %1878 = vmax.xlane.f32.xlu0 %v1877
      %v1879 = vpop.xlane.xlu0 %1878
      %v1880 = vsel %vm1080, %v1416, -inf
      %1881 = vmax.xlane.f32.xlu0 %v1880
      %v1882 = vpop.xlane.xlu0 %1881
      %v1883 = vsel %vm1080, %v1465, -inf
      %1884 = vmax.xlane.f32.xlu0 %v1883
      %v1885 = vpop.xlane.xlu0 %1884
      %v1886 = vsel %vm1080, %v1514, -inf
      %1887 = vmax.xlane.f32.xlu0 %v1886
      %v1888 = vpop.xlane.xlu0 %1887
      %v1889 = vsel %vm1080, %v1563, -inf
      %1890 = vmax.xlane.f32.xlu0 %v1889
      %v1891 = vpop.xlane.xlu0 %1890
      %v1892 = vsel %vm1080, %v1612, -inf
      %1893 = vmax.xlane.f32.xlu0 %v1892
      %v1894 = vpop.xlane.xlu0 %1893
      %v1895 = vsel %vm1080, %v1661, -inf
      %1896 = vmax.xlane.f32.xlu0 %v1895
      %v1897 = vpop.xlane.xlu0 %1896
      %v1898 = vsel %vm1080, %v1710, -inf
      %1899 = vmax.xlane.f32.xlu0 %v1898
      %v1900 = vpop.xlane.xlu0 %1899
      %v1901 = vsel %vm1080, %v1759, -inf
      %1902 = vmax.xlane.f32.xlu0 %v1901
      %v1903 = vpop.xlane.xlu0 %1902
      %v1904 = vsel %vm1080, %v1808, -inf
      %1905 = vmax.xlane.f32.xlu0 %v1904
      %v1906 = vpop.xlane.xlu0 %1905
      %v1907 = vsel %vm1080, %v1857, -inf
      %1908 = vmax.xlane.f32.xlu0 %v1907
      %v1909 = vpop.xlane.xlu0 %1908
      %v1910 = vsub.f32 %v1122, %v1864
      %v1911 = vsub.f32 %v1171, %v1867
      %v1912 = vsub.f32 %v1220, %v1870
      %v1913 = vsub.f32 %v1269, %v1873
      %v1914 = vsub.f32 %v1318, %v1876
      %v1915 = vsub.f32 %v1367, %v1879
      %v1916 = vsub.f32 %v1416, %v1882
      %v1917 = vsub.f32 %v1465, %v1885
      %v1918 = vsub.f32 %v1514, %v1888
      %v1919 = vsub.f32 %v1563, %v1891
      %v1920 = vsub.f32 %v1612, %v1894
      %v1921 = vsub.f32 %v1661, %v1897
      %v1922 = vsub.f32 %v1710, %v1900
      %v1923 = vsub.f32 %v1759, %v1903
      %v1924 = vsub.f32 %v1808, %v1906
      %v1925 = vsub.f32 %v1857, %v1909
      %v1926 = vmul.f32 %v1910, 1.442695
      %v1927 = vpow.pop %v1926
      %v1928 = vmul.f32 %v1911, 1.442695
      %v1929 = vpow.pop %v1928
      %v1930 = vmul.f32 %v1912, 1.442695
      %v1931 = vpow.pop %v1930
      %v1932 = vmul.f32 %v1913, 1.442695
      %v1933 = vpow.pop %v1932
      %v1934 = vmul.f32 %v1914, 1.442695
      %v1935 = vpow.pop %v1934
      %v1936 = vmul.f32 %v1915, 1.442695
      %v1937 = vpow.pop %v1936
      %v1938 = vmul.f32 %v1916, 1.442695
      %v1939 = vpow.pop %v1938
      %v1940 = vmul.f32 %v1917, 1.442695
      %v1941 = vpow.pop %v1940
      %v1942 = vmul.f32 %v1918, 1.442695
      %v1943 = vpow.pop %v1942
      %v1944 = vmul.f32 %v1919, 1.442695
      %v1945 = vpow.pop %v1944
      %v1946 = vmul.f32 %v1920, 1.442695
      %v1947 = vpow.pop %v1946
      %v1948 = vmul.f32 %v1921, 1.442695
      %v1949 = vpow.pop %v1948
      %v1950 = vmul.f32 %v1922, 1.442695
      %v1951 = vpow.pop %v1950
      %v1952 = vmul.f32 %v1923, 1.442695
      %v1953 = vpow.pop %v1952
      %v1954 = vmul.f32 %v1924, 1.442695
      %v1955 = vpow.pop %v1954
      %v1956 = vmul.f32 %v1925, 1.442695
      %v1957 = vpow.pop %v1956
      %v1958 = vsel %vm1080, %v1927, 0.0
      %1959 = vadd.xlane.f32.xlu0 %v1958
      %v1960 = vpop.xlane.xlu0 %1959
      %v1961 = vsel %vm1080, %v1929, 0.0
      %1962 = vadd.xlane.f32.xlu0 %v1961
      %v1963 = vpop.xlane.xlu0 %1962
      %v1964 = vsel %vm1080, %v1931, 0.0
      %1965 = vadd.xlane.f32.xlu0 %v1964
      %v1966 = vpop.xlane.xlu0 %1965
      %v1967 = vsel %vm1080, %v1933, 0.0
      %1968 = vadd.xlane.f32.xlu0 %v1967
      %v1969 = vpop.xlane.xlu0 %1968
      %v1970 = vsel %vm1080, %v1935, 0.0
      %1971 = vadd.xlane.f32.xlu0 %v1970
      %v1972 = vpop.xlane.xlu0 %1971
      %v1973 = vsel %vm1080, %v1937, 0.0
      %1974 = vadd.xlane.f32.xlu0 %v1973
      %v1975 = vpop.xlane.xlu0 %1974
      %v1976 = vsel %vm1080, %v1939, 0.0
      %1977 = vadd.xlane.f32.xlu0 %v1976
      %v1978 = vpop.xlane.xlu0 %1977
      %v1979 = vsel %vm1080, %v1941, 0.0
      %1980 = vadd.xlane.f32.xlu0 %v1979
      %v1981 = vpop.xlane.xlu0 %1980
      %v1982 = vsel %vm1080, %v1943, 0.0
      %1983 = vadd.xlane.f32.xlu0 %v1982
      %v1984 = vpop.xlane.xlu0 %1983
      %v1985 = vsel %vm1080, %v1945, 0.0
      %1986 = vadd.xlane.f32.xlu0 %v1985
      %v1987 = vpop.xlane.xlu0 %1986
      %v1988 = vsel %vm1080, %v1947, 0.0
      %1989 = vadd.xlane.f32.xlu0 %v1988
      %v1990 = vpop.xlane.xlu0 %1989
      %v1991 = vsel %vm1080, %v1949, 0.0
      %1992 = vadd.xlane.f32.xlu0 %v1991
      %v1993 = vpop.xlane.xlu0 %1992
      %v1994 = vsel %vm1080, %v1951, 0.0
      %1995 = vadd.xlane.f32.xlu0 %v1994
      %v1996 = vpop.xlane.xlu0 %1995
      %v1997 = vsel %vm1080, %v1953, 0.0
      %1998 = vadd.xlane.f32.xlu0 %v1997
      %v1999 = vpop.xlane.xlu0 %1998
      %v2000 = vsel %vm1080, %v1955, 0.0
      %2001 = vadd.xlane.f32.xlu0 %v2000
      %v2002 = vpop.xlane.xlu0 %2001
      %v2003 = vsel %vm1080, %v1957, 0.0
      %2004 = vadd.xlane.f32.xlu0 %v2003
      %v2005 = vpop.xlane.xlu0 %2004
      %v2006 = vrcp.pop %v1960
      %v2007 = vmul.f32 %v1927, %v2006
      %v2008 = vrcp.pop %v1963
      %v2009 = vmul.f32 %v1929, %v2008
      %v2010 = vrcp.pop %v1966
      %v2011 = vmul.f32 %v1931, %v2010
      %v2012 = vrcp.pop %v1969
      %v2013 = vmul.f32 %v1933, %v2012
      %v2014 = vrcp.pop %v1972
      %v2015 = vmul.f32 %v1935, %v2014
      %v2016 = vrcp.pop %v1975
      %v2017 = vmul.f32 %v1937, %v2016
      %v2018 = vrcp.pop %v1978
      %v2019 = vmul.f32 %v1939, %v2018
      %v2020 = vrcp.pop %v1981
      %v2021 = vmul.f32 %v1941, %v2020
      %v2022 = vrcp.pop %v1984
      %v2023 = vmul.f32 %v1943, %v2022
      %v2024 = vrcp.pop %v1987
      %v2025 = vmul.f32 %v1945, %v2024
      %v2026 = vrcp.pop %v1990
      %v2027 = vmul.f32 %v1947, %v2026
      %v2028 = vrcp.pop %v1993
      %v2029 = vmul.f32 %v1949, %v2028
      %v2030 = vrcp.pop %v1996
      %v2031 = vmul.f32 %v1951, %v2030
      %v2032 = vrcp.pop %v1999
      %v2033 = vmul.f32 %v1953, %v2032
      %v2034 = vrcp.pop %v2002
      %v2035 = vmul.f32 %v1955, %v2034
      %v2036 = vrcp.pop %v2005
      %v2037 = vmul.f32 %v1957, %v2036
      %v2038 = vpack.c.bf16 %v2007, %v2007
      %v2039 = vpack.c.bf16 %v2009, %v2009
      %v2040 = vpack.c.bf16 %v2011, %v2011
      %v2041 = vpack.c.bf16 %v2013, %v2013
      %v2042 = vpack.c.bf16 %v2015, %v2015
      %v2043 = vpack.c.bf16 %v2017, %v2017
      %v2044 = vpack.c.bf16 %v2019, %v2019
      %v2045 = vpack.c.bf16 %v2021, %v2021
      %v2046 = vpack.c.bf16 %v2023, %v2023
      %v2047 = vpack.c.bf16 %v2025, %v2025
      %v2048 = vpack.c.bf16 %v2027, %v2027
      %v2049 = vpack.c.bf16 %v2029, %v2029
      %v2050 = vpack.c.bf16 %v2031, %v2031
      %v2051 = vpack.c.bf16 %v2033, %v2033
      %v2052 = vpack.c.bf16 %v2035, %v2035
      %v2053 = vpack.c.bf16 %v2037, %v2037
      %2054 = vrot.lane.b32.xlu0 %v1033, 64
      %v2055 = vpop.permute.xlu0 %2054
      %v2057 = vsel %vm1080, %v2038, 0
      %vm2059 = vcmask 1043456
      %v2061 = vsel %vm2059, %v2055, 0
      %2063 = vmatprep.subr.bf16.mxu0 0
      %2064 = vmatpush1.bf16.msra.mxu0 %v2061
      %2065 = vmatprep.subr.bf16.mxu0 0
      %2066 = vmatpush1.bf16.msra.mxu0 0
      %2067 = vmatprep.subr.bf16.mxu0 0
      %2068 = vmatpush1.bf16.msra.mxu0 0
      %2069 = vmatprep.subr.bf16.mxu0 0
      %2070 = vmatpush1.bf16.msra.mxu0 0
      %2071 = vmatprep.subr.bf16.mxu0 0
      %2072 = vmatpush1.bf16.msra.mxu0 0
      %2073 = vmatprep.subr.bf16.mxu0 0
      %2074 = vmatpush1.bf16.msra.mxu0 0
      %2075 = vmatprep.subr.bf16.mxu0 0
      %2076 = vmatpush1.bf16.msra.mxu0 0
      %2077 = vmatprep.subr.bf16.mxu0 0
      %2078 = vmatpush1.bf16.msra.mxu0 0
      %2079 = vmatprep.subr.bf16.mxu0 0
      %2080 = vmatpush1.bf16.msra.mxu0 0
      %2081 = vmatprep.subr.bf16.mxu0 0
      %2082 = vmatpush1.bf16.msra.mxu0 0
      %2083 = vmatprep.subr.bf16.mxu0 0
      %2084 = vmatpush1.bf16.msra.mxu0 0
      %2085 = vmatprep.subr.bf16.mxu0 0
      %2086 = vmatpush1.bf16.msra.mxu0 0
      %2087 = vmatprep.subr.bf16.mxu0 0
      %2088 = vmatpush1.bf16.msra.mxu0 0
      %2089 = vmatprep.subr.bf16.mxu0 0
      %2090 = vmatpush1.bf16.msra.mxu0 0
      %2091 = vmatprep.subr.bf16.mxu0 0
      %2092 = vmatpush1.bf16.msra.mxu0 0
      %2093 = vmatprep.subr.bf16.mxu0 0
      %2094 = vmatpush1.bf16.msra.mxu0 0
      %2095 = vmatprep.mubr.bf16.mxu0 0
      %2096 = vmatmul.mubr.bf16.gmra.mrb[0].mxu0 %v2057
      %v2097 = vpop.f32.mrb[0].mxu0
      %v2098 = vadd.f32 0.0, %v2097
      %v2099 = vpop.f32.mrb[0].mxu0
      %v2100 = vpop.f32.mrb[0].mxu0
      %v2101 = vpop.f32.mrb[0].mxu0
      %2102 = vdwg.mxu0
      %2103 = vrot.lane.b32.xlu0 %v1034, 64
      %v2104 = vpop.permute.xlu0 %2103
      %v2106 = vsel %vm1080, %v2039, 0
      %v2109 = vsel %vm2059, %v2104, 0
      %2111 = vmatprep.subr.bf16.mxu0 0
      %2112 = vmatpush1.bf16.msra.mxu0 %v2109
      %2113 = vmatprep.subr.bf16.mxu0 0
      %2114 = vmatpush1.bf16.msra.mxu0 0
      %2115 = vmatprep.subr.bf16.mxu0 0
      %2116 = vmatpush1.bf16.msra.mxu0 0
      %2117 = vmatprep.subr.bf16.mxu0 0
      %2118 = vmatpush1.bf16.msra.mxu0 0
      %2119 = vmatprep.subr.bf16.mxu0 0
      %2120 = vmatpush1.bf16.msra.mxu0 0
      %2121 = vmatprep.subr.bf16.mxu0 0
      %2122 = vmatpush1.bf16.msra.mxu0 0
      %2123 = vmatprep.subr.bf16.mxu0 0
      %2124 = vmatpush1.bf16.msra.mxu0 0
      %2125 = vmatprep.subr.bf16.mxu0 0
      %2126 = vmatpush1.bf16.msra.mxu0 0
      %2127 = vmatprep.subr.bf16.mxu0 0
      %2128 = vmatpush1.bf16.msra.mxu0 0
      %2129 = vmatprep.subr.bf16.mxu0 0
      %2130 = vmatpush1.bf16.msra.mxu0 0
      %2131 = vmatprep.subr.bf16.mxu0 0
      %2132 = vmatpush1.bf16.msra.mxu0 0
      %2133 = vmatprep.subr.bf16.mxu0 0
      %2134 = vmatpush1.bf16.msra.mxu0 0
      %2135 = vmatprep.subr.bf16.mxu0 0
      %2136 = vmatpush1.bf16.msra.mxu0 0
      %2137 = vmatprep.subr.bf16.mxu0 0
      %2138 = vmatpush1.bf16.msra.mxu0 0
      %2139 = vmatprep.subr.bf16.mxu0 0
      %2140 = vmatpush1.bf16.msra.mxu0 0
      %2141 = vmatprep.subr.bf16.mxu0 0
      %2142 = vmatpush1.bf16.msra.mxu0 0
      %2143 = vmatprep.mubr.bf16.mxu0 0
      %2144 = vmatmul.mubr.bf16.gmra.mrb[0].mxu0 %v2106
      %v2145 = vpop.f32.mrb[0].mxu0
      %v2146 = vadd.f32 0.0, %v2145
      %v2147 = vpop.f32.mrb[0].mxu0
      %v2148 = vpop.f32.mrb[0].mxu0
      %v2149 = vpop.f32.mrb[0].mxu0
      %2150 = vdwg.mxu0
      %2151 = vrot.lane.b32.xlu0 %v1035, 64
      %v2152 = vpop.permute.xlu0 %2151
      %v2154 = vsel %vm1080, %v2040, 0
      %v2157 = vsel %vm2059, %v2152, 0
      %2159 = vmatprep.subr.bf16.mxu0 0
      %2160 = vmatpush1.bf16.msra.mxu0 %v2157
      %2161 = vmatprep.subr.bf16.mxu0 0
      %2162 = vmatpush1.bf16.msra.mxu0 0
      %2163 = vmatprep.subr.bf16.mxu0 0
      %2164 = vmatpush1.bf16.msra.mxu0 0
      %2165 = vmatprep.subr.bf16.mxu0 0
      %2166 = vmatpush1.bf16.msra.mxu0 0
      %2167 = vmatprep.subr.bf16.mxu0 0
      %2168 = vmatpush1.bf16.msra.mxu0 0
      %2169 = vmatprep.subr.bf16.mxu0 0
      %2170 = vmatpush1.bf16.msra.mxu0 0
      %2171 = vmatprep.subr.bf16.mxu0 0
      %2172 = vmatpush1.bf16.msra.mxu0 0
      %2173 = vmatprep.subr.bf16.mxu0 0
      %2174 = vmatpush1.bf16.msra.mxu0 0
      %2175 = vmatprep.subr.bf16.mxu0 0
      %2176 = vmatpush1.bf16.msra.mxu0 0
      %2177 = vmatprep.subr.bf16.mxu0 0
      %2178 = vmatpush1.bf16.msra.mxu0 0
      %2179 = vmatprep.subr.bf16.mxu0 0
      %2180 = vmatpush1.bf16.msra.mxu0 0
      %2181 = vmatprep.subr.bf16.mxu0 0
      %2182 = vmatpush1.bf16.msra.mxu0 0
      %2183 = vmatprep.subr.bf16.mxu0 0
      %2184 = vmatpush1.bf16.msra.mxu0 0
      %2185 = vmatprep.subr.bf16.mxu0 0
      %2186 = vmatpush1.bf16.msra.mxu0 0
      %2187 = vmatprep.subr.bf16.mxu0 0
      %2188 = vmatpush1.bf16.msra.mxu0 0
      %2189 = vmatprep.subr.bf16.mxu0 0
      %2190 = vmatpush1.bf16.msra.mxu0 0
      %2191 = vmatprep.mubr.bf16.mxu0 0
      %2192 = vmatmul.mubr.bf16.gmra.mrb[0].mxu0 %v2154
      %v2193 = vpop.f32.mrb[0].mxu0
      %v2194 = vadd.f32 0.0, %v2193
      %v2195 = vpop.f32.mrb[0].mxu0
      %v2196 = vpop.f32.mrb[0].mxu0
      %v2197 = vpop.f32.mrb[0].mxu0
      %2198 = vdwg.mxu0
      %2199 = vrot.lane.b32.xlu0 %v1036, 64
      %v2200 = vpop.permute.xlu0 %2199
      %v2202 = vsel %vm1080, %v2041, 0
      %v2205 = vsel %vm2059, %v2200, 0
      %2207 = vmatprep.subr.bf16.mxu0 0
      %2208 = vmatpush1.bf16.msra.mxu0 %v2205
      %2209 = vmatprep.subr.bf16.mxu0 0
      %2210 = vmatpush1.bf16.msra.mxu0 0
      %2211 = vmatprep.subr.bf16.mxu0 0
      %2212 = vmatpush1.bf16.msra.mxu0 0
      %2213 = vmatprep.subr.bf16.mxu0 0
      %2214 = vmatpush1.bf16.msra.mxu0 0
      %2215 = vmatprep.subr.bf16.mxu0 0
      %2216 = vmatpush1.bf16.msra.mxu0 0
      %2217 = vmatprep.subr.bf16.mxu0 0
      %2218 = vmatpush1.bf16.msra.mxu0 0
      %2219 = vmatprep.subr.bf16.mxu0 0
      %2220 = vmatpush1.bf16.msra.mxu0 0
      %2221 = vmatprep.subr.bf16.mxu0 0
      %2222 = vmatpush1.bf16.msra.mxu0 0
      %2223 = vmatprep.subr.bf16.mxu0 0
      %2224 = vmatpush1.bf16.msra.mxu0 0
      %2225 = vmatprep.subr.bf16.mxu0 0
      %2226 = vmatpush1.bf16.msra.mxu0 0
      %2227 = vmatprep.subr.bf16.mxu0 0
      %2228 = vmatpush1.bf16.msra.mxu0 0
      %2229 = vmatprep.subr.bf16.mxu0 0
      %2230 = vmatpush1.bf16.msra.mxu0 0
      %2231 = vmatprep.subr.bf16.mxu0 0
      %2232 = vmatpush1.bf16.msra.mxu0 0
      %2233 = vmatprep.subr.bf16.mxu0 0
      %2234 = vmatpush1.bf16.msra.mxu0 0
      %2235 = vmatprep.subr.bf16.mxu0 0
      %2236 = vmatpush1.bf16.msra.mxu0 0
      %2237 = vmatprep.subr.bf16.mxu0 0
      %2238 = vmatpush1.bf16.msra.mxu0 0
      %2239 = vmatprep.mubr.bf16.mxu0 0
      %2240 = vmatmul.mubr.bf16.gmra.mrb[0].mxu0 %v2202
      %v2241 = vpop.f32.mrb[0].mxu0
      %v2242 = vadd.f32 0.0, %v2241
      %v2243 = vpop.f32.mrb[0].mxu0
      %v2244 = vpop.f32.mrb[0].mxu0
      %v2245 = vpop.f32.mrb[0].mxu0
      %2246 = vdwg.mxu0
      %2247 = vrot.lane.b32.xlu0 %v1037, 64
      %v2248 = vpop.permute.xlu0 %2247
      %v2250 = vsel %vm1080, %v2042, 0
      %v2253 = vsel %vm2059, %v2248, 0
      %2255 = vmatprep.subr.bf16.mxu0 0
      %2256 = vmatpush1.bf16.msra.mxu0 %v2253
      %2257 = vmatprep.subr.bf16.mxu0 0
      %2258 = vmatpush1.bf16.msra.mxu0 0
      %2259 = vmatprep.subr.bf16.mxu0 0
      %2260 = vmatpush1.bf16.msra.mxu0 0
      %2261 = vmatprep.subr.bf16.mxu0 0
      %2262 = vmatpush1.bf16.msra.mxu0 0
      %2263 = vmatprep.subr.bf16.mxu0 0
      %2264 = vmatpush1.bf16.msra.mxu0 0
      %2265 = vmatprep.subr.bf16.mxu0 0
      %2266 = vmatpush1.bf16.msra.mxu0 0
      %2267 = vmatprep.subr.bf16.mxu0 0
      %2268 = vmatpush1.bf16.msra.mxu0 0
      %2269 = vmatprep.subr.bf16.mxu0 0
      %2270 = vmatpush1.bf16.msra.mxu0 0
      %2271 = vmatprep.subr.bf16.mxu0 0
      %2272 = vmatpush1.bf16.msra.mxu0 0
      %2273 = vmatprep.subr.bf16.mxu0 0
      %2274 = vmatpush1.bf16.msra.mxu0 0
      %2275 = vmatprep.subr.bf16.mxu0 0
      %2276 = vmatpush1.bf16.msra.mxu0 0
      %2277 = vmatprep.subr.bf16.mxu0 0
      %2278 = vmatpush1.bf16.msra.mxu0 0
      %2279 = vmatprep.subr.bf16.mxu0 0
      %2280 = vmatpush1.bf16.msra.mxu0 0
      %2281 = vmatprep.subr.bf16.mxu0 0
      %2282 = vmatpush1.bf16.msra.mxu0 0
      %2283 = vmatprep.subr.bf16.mxu0 0
      %2284 = vmatpush1.bf16.msra.mxu0 0
      %2285 = vmatprep.subr.bf16.mxu0 0
      %2286 = vmatpush1.bf16.msra.mxu0 0
      %2287 = vmatprep.mubr.bf16.mxu0 0
      %2288 = vmatmul.mubr.bf16.gmra.mrb[0].mxu0 %v2250
      %v2289 = vpop.f32.mrb[0].mxu0
      %v2290 = vadd.f32 0.0, %v2289
      %v2291 = vpop.f32.mrb[0].mxu0
      %v2292 = vpop.f32.mrb[0].mxu0
      %v2293 = vpop.f32.mrb[0].mxu0
      %2294 = vdwg.mxu0
      %2295 = vrot.lane.b32.xlu0 %v1038, 64
      %v2296 = vpop.permute.xlu0 %2295
      %v2298 = vsel %vm1080, %v2043, 0
      %v2301 = vsel %vm2059, %v2296, 0
      %2303 = vmatprep.subr.bf16.mxu0 0
      %2304 = vmatpush1.bf16.msra.mxu0 %v2301
      %2305 = vmatprep.subr.bf16.mxu0 0
      %2306 = vmatpush1.bf16.msra.mxu0 0
      %2307 = vmatprep.subr.bf16.mxu0 0
      %2308 = vmatpush1.bf16.msra.mxu0 0
      %2309 = vmatprep.subr.bf16.mxu0 0
      %2310 = vmatpush1.bf16.msra.mxu0 0
      %2311 = vmatprep.subr.bf16.mxu0 0
      %2312 = vmatpush1.bf16.msra.mxu0 0
      %2313 = vmatprep.subr.bf16.mxu0 0
      %2314 = vmatpush1.bf16.msra.mxu0 0
      %2315 = vmatprep.subr.bf16.mxu0 0
      %2316 = vmatpush1.bf16.msra.mxu0 0
      %2317 = vmatprep.subr.bf16.mxu0 0
      %2318 = vmatpush1.bf16.msra.mxu0 0
      %2319 = vmatprep.subr.bf16.mxu0 0
      %2320 = vmatpush1.bf16.msra.mxu0 0
      %2321 = vmatprep.subr.bf16.mxu0 0
      %2322 = vmatpush1.bf16.msra.mxu0 0
      %2323 = vmatprep.subr.bf16.mxu0 0
      %2324 = vmatpush1.bf16.msra.mxu0 0
      %2325 = vmatprep.subr.bf16.mxu0 0
      %2326 = vmatpush1.bf16.msra.mxu0 0
      %2327 = vmatprep.subr.bf16.mxu0 0
      %2328 = vmatpush1.bf16.msra.mxu0 0
      %2329 = vmatprep.subr.bf16.mxu0 0
      %2330 = vmatpush1.bf16.msra.mxu0 0
      %2331 = vmatprep.subr.bf16.mxu0 0
      %2332 = vmatpush1.bf16.msra.mxu0 0
      %2333 = vmatprep.subr.bf16.mxu0 0
      %2334 = vmatpush1.bf16.msra.mxu0 0
      %2335 = vmatprep.mubr.bf16.mxu0 0
      %2336 = vmatmul.mubr.bf16.gmra.mrb[0].mxu0 %v2298
      %v2337 = vpop.f32.mrb[0].mxu0
      %v2338 = vadd.f32 0.0, %v2337
      %v2339 = vpop.f32.mrb[0].mxu0
      %v2340 = vpop.f32.mrb[0].mxu0
      %v2341 = vpop.f32.mrb[0].mxu0
      %2342 = vdwg.mxu0
      %2343 = vrot.lane.b32.xlu0 %v1039, 64
      %v2344 = vpop.permute.xlu0 %2343
      %v2346 = vsel %vm1080, %v2044, 0
      %v2349 = vsel %vm2059, %v2344, 0
      %2351 = vmatprep.subr.bf16.mxu0 0
      %2352 = vmatpush1.bf16.msra.mxu0 %v2349
      %2353 = vmatprep.subr.bf16.mxu0 0
      %2354 = vmatpush1.bf16.msra.mxu0 0
      %2355 = vmatprep.subr.bf16.mxu0 0
      %2356 = vmatpush1.bf16.msra.mxu0 0
      %2357 = vmatprep.subr.bf16.mxu0 0
      %2358 = vmatpush1.bf16.msra.mxu0 0
      %2359 = vmatprep.subr.bf16.mxu0 0
      %2360 = vmatpush1.bf16.msra.mxu0 0
      %2361 = vmatprep.subr.bf16.mxu0 0
      %2362 = vmatpush1.bf16.msra.mxu0 0
      %2363 = vmatprep.subr.bf16.mxu0 0
      %2364 = vmatpush1.bf16.msra.mxu0 0
      %2365 = vmatprep.subr.bf16.mxu0 0
      %2366 = vmatpush1.bf16.msra.mxu0 0
      %2367 = vmatprep.subr.bf16.mxu0 0
      %2368 = vmatpush1.bf16.msra.mxu0 0
      %2369 = vmatprep.subr.bf16.mxu0 0
      %2370 = vmatpush1.bf16.msra.mxu0 0
      %2371 = vmatprep.subr.bf16.mxu0 0
      %2372 = vmatpush1.bf16.msra.mxu0 0
      %2373 = vmatprep.subr.bf16.mxu0 0
      %2374 = vmatpush1.bf16.msra.mxu0 0
      %2375 = vmatprep.subr.bf16.mxu0 0
      %2376 = vmatpush1.bf16.msra.mxu0 0
      %2377 = vmatprep.subr.bf16.mxu0 0
      %2378 = vmatpush1.bf16.msra.mxu0 0
      %2379 = vmatprep.subr.bf16.mxu0 0
      %2380 = vmatpush1.bf16.msra.mxu0 0
      %2381 = vmatprep.subr.bf16.mxu0 0
      %2382 = vmatpush1.bf16.msra.mxu0 0
      %2383 = vmatprep.mubr.bf16.mxu0 0
      %2384 = vmatmul.mubr.bf16.gmra.mrb[0].mxu0 %v2346
      %v2385 = vpop.f32.mrb[0].mxu0
      %v2386 = vadd.f32 0.0, %v2385
      %v2387 = vpop.f32.mrb[0].mxu0
      %v2388 = vpop.f32.mrb[0].mxu0
      %v2389 = vpop.f32.mrb[0].mxu0
      %2390 = vdwg.mxu0
      %2391 = vrot.lane.b32.xlu0 %v1040, 64
      %v2392 = vpop.permute.xlu0 %2391
      %v2394 = vsel %vm1080, %v2045, 0
      %v2397 = vsel %vm2059, %v2392, 0
      %2399 = vmatprep.subr.bf16.mxu0 0
      %2400 = vmatpush1.bf16.msra.mxu0 %v2397
      %2401 = vmatprep.subr.bf16.mxu0 0
      %2402 = vmatpush1.bf16.msra.mxu0 0
      %2403 = vmatprep.subr.bf16.mxu0 0
      %2404 = vmatpush1.bf16.msra.mxu0 0
      %2405 = vmatprep.subr.bf16.mxu0 0
      %2406 = vmatpush1.bf16.msra.mxu0 0
      %2407 = vmatprep.subr.bf16.mxu0 0
      %2408 = vmatpush1.bf16.msra.mxu0 0
      %2409 = vmatprep.subr.bf16.mxu0 0
      %2410 = vmatpush1.bf16.msra.mxu0 0
      %2411 = vmatprep.subr.bf16.mxu0 0
      %2412 = vmatpush1.bf16.msra.mxu0 0
      %2413 = vmatprep.subr.bf16.mxu0 0
      %2414 = vmatpush1.bf16.msra.mxu0 0
      %2415 = vmatprep.subr.bf16.mxu0 0
      %2416 = vmatpush1.bf16.msra.mxu0 0
      %2417 = vmatprep.subr.bf16.mxu0 0
      %2418 = vmatpush1.bf16.msra.mxu0 0
      %2419 = vmatprep.subr.bf16.mxu0 0
      %2420 = vmatpush1.bf16.msra.mxu0 0
      %2421 = vmatprep.subr.bf16.mxu0 0
      %2422 = vmatpush1.bf16.msra.mxu0 0
      %2423 = vmatprep.subr.bf16.mxu0 0
      %2424 = vmatpush1.bf16.msra.mxu0 0
      %2425 = vmatprep.subr.bf16.mxu0 0
      %2426 = vmatpush1.bf16.msra.mxu0 0
      %2427 = vmatprep.subr.bf16.mxu0 0
      %2428 = vmatpush1.bf16.msra.mxu0 0
      %2429 = vmatprep.subr.bf16.mxu0 0
      %2430 = vmatpush1.bf16.msra.mxu0 0
      %2431 = vmatprep.mubr.bf16.mxu0 0
      %2432 = vmatmul.mubr.bf16.gmra.mrb[0].mxu0 %v2394
      %v2433 = vpop.f32.mrb[0].mxu0
      %v2434 = vadd.f32 0.0, %v2433
      %v2435 = vpop.f32.mrb[0].mxu0
      %v2436 = vpop.f32.mrb[0].mxu0
      %v2437 = vpop.f32.mrb[0].mxu0
      %2438 = vdwg.mxu0
      %2439 = vrot.lane.b32.xlu0 %v1041, 64
      %v2440 = vpop.permute.xlu0 %2439
      %v2442 = vsel %vm1080, %v2046, 0
      %v2445 = vsel %vm2059, %v2440, 0
      %2447 = vmatprep.subr.bf16.mxu0 0
      %2448 = vmatpush1.bf16.msra.mxu0 %v2445
      %2449 = vmatprep.subr.bf16.mxu0 0
      %2450 = vmatpush1.bf16.msra.mxu0 0
      %2451 = vmatprep.subr.bf16.mxu0 0
      %2452 = vmatpush1.bf16.msra.mxu0 0
      %2453 = vmatprep.subr.bf16.mxu0 0
      %2454 = vmatpush1.bf16.msra.mxu0 0
      %2455 = vmatprep.subr.bf16.mxu0 0
      %2456 = vmatpush1.bf16.msra.mxu0 0
      %2457 = vmatprep.subr.bf16.mxu0 0
      %2458 = vmatpush1.bf16.msra.mxu0 0
      %2459 = vmatprep.subr.bf16.mxu0 0
      %2460 = vmatpush1.bf16.msra.mxu0 0
      %2461 = vmatprep.subr.bf16.mxu0 0
      %2462 = vmatpush1.bf16.msra.mxu0 0
      %2463 = vmatprep.subr.bf16.mxu0 0
      %2464 = vmatpush1.bf16.msra.mxu0 0
      %2465 = vmatprep.subr.bf16.mxu0 0
      %2466 = vmatpush1.bf16.msra.mxu0 0
      %2467 = vmatprep.subr.bf16.mxu0 0
      %2468 = vmatpush1.bf16.msra.mxu0 0
      %2469 = vmatprep.subr.bf16.mxu0 0
      %2470 = vmatpush1.bf16.msra.mxu0 0
      %2471 = vmatprep.subr.bf16.mxu0 0
      %2472 = vmatpush1.bf16.msra.mxu0 0
      %2473 = vmatprep.subr.bf16.mxu0 0
      %2474 = vmatpush1.bf16.msra.mxu0 0
      %2475 = vmatprep.subr.bf16.mxu0 0
      %2476 = vmatpush1.bf16.msra.mxu0 0
      %2477 = vmatprep.subr.bf16.mxu0 0
      %2478 = vmatpush1.bf16.msra.mxu0 0
      %2479 = vmatprep.mubr.bf16.mxu0 0
      %2480 = vmatmul.mubr.bf16.gmra.mrb[0].mxu0 %v2442
      %v2481 = vpop.f32.mrb[0].mxu0
      %v2482 = vadd.f32 0.0, %v2481
      %v2483 = vpop.f32.mrb[0].mxu0
      %v2484 = vpop.f32.mrb[0].mxu0
      %v2485 = vpop.f32.mrb[0].mxu0
      %2486 = vdwg.mxu0
      %2487 = vrot.lane.b32.xlu0 %v1042, 64
      %v2488 = vpop.permute.xlu0 %2487
      %v2490 = vsel %vm1080, %v2047, 0
      %v2493 = vsel %vm2059, %v2488, 0
      %2495 = vmatprep.subr.bf16.mxu0 0
      %2496 = vmatpush1.bf16.msra.mxu0 %v2493
      %2497 = vmatprep.subr.bf16.mxu0 0
      %2498 = vmatpush1.bf16.msra.mxu0 0
      %2499 = vmatprep.subr.bf16.mxu0 0
      %2500 = vmatpush1.bf16.msra.mxu0 0
      %2501 = vmatprep.subr.bf16.mxu0 0
      %2502 = vmatpush1.bf16.msra.mxu0 0
      %2503 = vmatprep.subr.bf16.mxu0 0
      %2504 = vmatpush1.bf16.msra.mxu0 0
      %2505 = vmatprep.subr.bf16.mxu0 0
      %2506 = vmatpush1.bf16.msra.mxu0 0
      %2507 = vmatprep.subr.bf16.mxu0 0
      %2508 = vmatpush1.bf16.msra.mxu0 0
      %2509 = vmatprep.subr.bf16.mxu0 0
      %2510 = vmatpush1.bf16.msra.mxu0 0
      %2511 = vmatprep.subr.bf16.mxu0 0
      %2512 = vmatpush1.bf16.msra.mxu0 0
      %2513 = vmatprep.subr.bf16.mxu0 0
      %2514 = vmatpush1.bf16.msra.mxu0 0
      %2515 = vmatprep.subr.bf16.mxu0 0
      %2516 = vmatpush1.bf16.msra.mxu0 0
      %2517 = vmatprep.subr.bf16.mxu0 0
      %2518 = vmatpush1.bf16.msra.mxu0 0
      %2519 = vmatprep.subr.bf16.mxu0 0
      %2520 = vmatpush1.bf16.msra.mxu0 0
      %2521 = vmatprep.subr.bf16.mxu0 0
      %2522 = vmatpush1.bf16.msra.mxu0 0
      %2523 = vmatprep.subr.bf16.mxu0 0
      %2524 = vmatpush1.bf16.msra.mxu0 0
      %2525 = vmatprep.subr.bf16.mxu0 0
      %2526 = vmatpush1.bf16.msra.mxu0 0
      %2527 = vmatprep.mubr.bf16.mxu0 0
      %2528 = vmatmul.mubr.bf16.gmra.mrb[0].mxu0 %v2490
      %v2529 = vpop.f32.mrb[0].mxu0
      %v2530 = vadd.f32 0.0, %v2529
      %v2531 = vpop.f32.mrb[0].mxu0
      %v2532 = vpop.f32.mrb[0].mxu0
      %v2533 = vpop.f32.mrb[0].mxu0
      %2534 = vdwg.mxu0
      %2535 = vrot.lane.b32.xlu0 %v1043, 64
      %v2536 = vpop.permute.xlu0 %2535
      %v2538 = vsel %vm1080, %v2048, 0
      %v2541 = vsel %vm2059, %v2536, 0
      %2543 = vmatprep.subr.bf16.mxu0 0
      %2544 = vmatpush1.bf16.msra.mxu0 %v2541
      %2545 = vmatprep.subr.bf16.mxu0 0
      %2546 = vmatpush1.bf16.msra.mxu0 0
      %2547 = vmatprep.subr.bf16.mxu0 0
      %2548 = vmatpush1.bf16.msra.mxu0 0
      %2549 = vmatprep.subr.bf16.mxu0 0
      %2550 = vmatpush1.bf16.msra.mxu0 0
      %2551 = vmatprep.subr.bf16.mxu0 0
      %2552 = vmatpush1.bf16.msra.mxu0 0
      %2553 = vmatprep.subr.bf16.mxu0 0
      %2554 = vmatpush1.bf16.msra.mxu0 0
      %2555 = vmatprep.subr.bf16.mxu0 0
      %2556 = vmatpush1.bf16.msra.mxu0 0
      %2557 = vmatprep.subr.bf16.mxu0 0
      %2558 = vmatpush1.bf16.msra.mxu0 0
      %2559 = vmatprep.subr.bf16.mxu0 0
      %2560 = vmatpush1.bf16.msra.mxu0 0
      %2561 = vmatprep.subr.bf16.mxu0 0
      %2562 = vmatpush1.bf16.msra.mxu0 0
      %2563 = vmatprep.subr.bf16.mxu0 0
      %2564 = vmatpush1.bf16.msra.mxu0 0
      %2565 = vmatprep.subr.bf16.mxu0 0
      %2566 = vmatpush1.bf16.msra.mxu0 0
      %2567 = vmatprep.subr.bf16.mxu0 0
      %2568 = vmatpush1.bf16.msra.mxu0 0
      %2569 = vmatprep.subr.bf16.mxu0 0
      %2570 = vmatpush1.bf16.msra.mxu0 0
      %2571 = vmatprep.subr.bf16.mxu0 0
      %2572 = vmatpush1.bf16.msra.mxu0 0
      %2573 = vmatprep.subr.bf16.mxu0 0
      %2574 = vmatpush1.bf16.msra.mxu0 0
      %2575 = vmatprep.mubr.bf16.mxu0 0
      %2576 = vmatmul.mubr.bf16.gmra.mrb[0].mxu0 %v2538
      %v2577 = vpop.f32.mrb[0].mxu0
      %v2578 = vadd.f32 0.0, %v2577
      %v2579 = vpop.f32.mrb[0].mxu0
      %v2580 = vpop.f32.mrb[0].mxu0
      %v2581 = vpop.f32.mrb[0].mxu0
      %2582 = vdwg.mxu0
      %2583 = vrot.lane.b32.xlu0 %v1044, 64
      %v2584 = vpop.permute.xlu0 %2583
      %v2586 = vsel %vm1080, %v2049, 0
      %v2589 = vsel %vm2059, %v2584, 0
      %2591 = vmatprep.subr.bf16.mxu0 0
      %2592 = vmatpush1.bf16.msra.mxu0 %v2589
      %2593 = vmatprep.subr.bf16.mxu0 0
      %2594 = vmatpush1.bf16.msra.mxu0 0
      %2595 = vmatprep.subr.bf16.mxu0 0
      %2596 = vmatpush1.bf16.msra.mxu0 0
      %2597 = vmatprep.subr.bf16.mxu0 0
      %2598 = vmatpush1.bf16.msra.mxu0 0
      %2599 = vmatprep.subr.bf16.mxu0 0
      %2600 = vmatpush1.bf16.msra.mxu0 0
      %2601 = vmatprep.subr.bf16.mxu0 0
      %2602 = vmatpush1.bf16.msra.mxu0 0
      %2603 = vmatprep.subr.bf16.mxu0 0
      %2604 = vmatpush1.bf16.msra.mxu0 0
      %2605 = vmatprep.subr.bf16.mxu0 0
      %2606 = vmatpush1.bf16.msra.mxu0 0
      %2607 = vmatprep.subr.bf16.mxu0 0
      %2608 = vmatpush1.bf16.msra.mxu0 0
      %2609 = vmatprep.subr.bf16.mxu0 0
      %2610 = vmatpush1.bf16.msra.mxu0 0
      %2611 = vmatprep.subr.bf16.mxu0 0
      %2612 = vmatpush1.bf16.msra.mxu0 0
      %2613 = vmatprep.subr.bf16.mxu0 0
      %2614 = vmatpush1.bf16.msra.mxu0 0
      %2615 = vmatprep.subr.bf16.mxu0 0
      %2616 = vmatpush1.bf16.msra.mxu0 0
      %2617 = vmatprep.subr.bf16.mxu0 0
      %2618 = vmatpush1.bf16.msra.mxu0 0
      %2619 = vmatprep.subr.bf16.mxu0 0
      %2620 = vmatpush1.bf16.msra.mxu0 0
      %2621 = vmatprep.subr.bf16.mxu0 0
      %2622 = vmatpush1.bf16.msra.mxu0 0
      %2623 = vmatprep.mubr.bf16.mxu0 0
      %2624 = vmatmul.mubr.bf16.gmra.mrb[0].mxu0 %v2586
      %v2625 = vpop.f32.mrb[0].mxu0
      %v2626 = vadd.f32 0.0, %v2625
      %v2627 = vpop.f32.mrb[0].mxu0
      %v2628 = vpop.f32.mrb[0].mxu0
      %v2629 = vpop.f32.mrb[0].mxu0
      %2630 = vdwg.mxu0
      %2631 = vrot.lane.b32.xlu0 %v1045, 64
      %v2632 = vpop.permute.xlu0 %2631
      %v2634 = vsel %vm1080, %v2050, 0
      %v2637 = vsel %vm2059, %v2632, 0
      %2639 = vmatprep.subr.bf16.mxu0 0
      %2640 = vmatpush1.bf16.msra.mxu0 %v2637
      %2641 = vmatprep.subr.bf16.mxu0 0
      %2642 = vmatpush1.bf16.msra.mxu0 0
      %2643 = vmatprep.subr.bf16.mxu0 0
      %2644 = vmatpush1.bf16.msra.mxu0 0
      %2645 = vmatprep.subr.bf16.mxu0 0
      %2646 = vmatpush1.bf16.msra.mxu0 0
      %2647 = vmatprep.subr.bf16.mxu0 0
      %2648 = vmatpush1.bf16.msra.mxu0 0
      %2649 = vmatprep.subr.bf16.mxu0 0
      %2650 = vmatpush1.bf16.msra.mxu0 0
      %2651 = vmatprep.subr.bf16.mxu0 0
      %2652 = vmatpush1.bf16.msra.mxu0 0
      %2653 = vmatprep.subr.bf16.mxu0 0
      %2654 = vmatpush1.bf16.msra.mxu0 0
      %2655 = vmatprep.subr.bf16.mxu0 0
      %2656 = vmatpush1.bf16.msra.mxu0 0
      %2657 = vmatprep.subr.bf16.mxu0 0
      %2658 = vmatpush1.bf16.msra.mxu0 0
      %2659 = vmatprep.subr.bf16.mxu0 0
      %2660 = vmatpush1.bf16.msra.mxu0 0
      %2661 = vmatprep.subr.bf16.mxu0 0
      %2662 = vmatpush1.bf16.msra.mxu0 0
      %2663 = vmatprep.subr.bf16.mxu0 0
      %2664 = vmatpush1.bf16.msra.mxu0 0
      %2665 = vmatprep.subr.bf16.mxu0 0
      %2666 = vmatpush1.bf16.msra.mxu0 0
      %2667 = vmatprep.subr.bf16.mxu0 0
      %2668 = vmatpush1.bf16.msra.mxu0 0
      %2669 = vmatprep.subr.bf16.mxu0 0
      %2670 = vmatpush1.bf16.msra.mxu0 0
      %2671 = vmatprep.mubr.bf16.mxu0 0
      %2672 = vmatmul.mubr.bf16.gmra.mrb[0].mxu0 %v2634
      %v2673 = vpop.f32.mrb[0].mxu0
      %v2674 = vadd.f32 0.0, %v2673
      %v2675 = vpop.f32.mrb[0].mxu0
      %v2676 = vpop.f32.mrb[0].mxu0
      %v2677 = vpop.f32.mrb[0].mxu0
      %2678 = vdwg.mxu0
      %2679 = vrot.lane.b32.xlu0 %v1046, 64
      %v2680 = vpop.permute.xlu0 %2679
      %v2682 = vsel %vm1080, %v2051, 0
      %v2685 = vsel %vm2059, %v2680, 0
      %2687 = vmatprep.subr.bf16.mxu0 0
      %2688 = vmatpush1.bf16.msra.mxu0 %v2685
      %2689 = vmatprep.subr.bf16.mxu0 0
      %2690 = vmatpush1.bf16.msra.mxu0 0
      %2691 = vmatprep.subr.bf16.mxu0 0
      %2692 = vmatpush1.bf16.msra.mxu0 0
      %2693 = vmatprep.subr.bf16.mxu0 0
      %2694 = vmatpush1.bf16.msra.mxu0 0
      %2695 = vmatprep.subr.bf16.mxu0 0
      %2696 = vmatpush1.bf16.msra.mxu0 0
      %2697 = vmatprep.subr.bf16.mxu0 0
      %2698 = vmatpush1.bf16.msra.mxu0 0
      %2699 = vmatprep.subr.bf16.mxu0 0
      %2700 = vmatpush1.bf16.msra.mxu0 0
      %2701 = vmatprep.subr.bf16.mxu0 0
      %2702 = vmatpush1.bf16.msra.mxu0 0
      %2703 = vmatprep.subr.bf16.mxu0 0
      %2704 = vmatpush1.bf16.msra.mxu0 0
      %2705 = vmatprep.subr.bf16.mxu0 0
      %2706 = vmatpush1.bf16.msra.mxu0 0
      %2707 = vmatprep.subr.bf16.mxu0 0
      %2708 = vmatpush1.bf16.msra.mxu0 0
      %2709 = vmatprep.subr.bf16.mxu0 0
      %2710 = vmatpush1.bf16.msra.mxu0 0
      %2711 = vmatprep.subr.bf16.mxu0 0
      %2712 = vmatpush1.bf16.msra.mxu0 0
      %2713 = vmatprep.subr.bf16.mxu0 0
      %2714 = vmatpush1.bf16.msra.mxu0 0
      %2715 = vmatprep.subr.bf16.mxu0 0
      %2716 = vmatpush1.bf16.msra.mxu0 0
      %2717 = vmatprep.subr.bf16.mxu0 0
      %2718 = vmatpush1.bf16.msra.mxu0 0
      %2719 = vmatprep.mubr.bf16.mxu0 0
      %2720 = vmatmul.mubr.bf16.gmra.mrb[0].mxu0 %v2682
      %v2721 = vpop.f32.mrb[0].mxu0
      %v2722 = vadd.f32 0.0, %v2721
      %v2723 = vpop.f32.mrb[0].mxu0
      %v2724 = vpop.f32.mrb[0].mxu0
      %v2725 = vpop.f32.mrb[0].mxu0
      %2726 = vdwg.mxu0
      %2727 = vrot.lane.b32.xlu0 %v1047, 64
      %v2728 = vpop.permute.xlu0 %2727
      %v2730 = vsel %vm1080, %v2052, 0
      %v2733 = vsel %vm2059, %v2728, 0
      %2735 = vmatprep.subr.bf16.mxu0 0
      %2736 = vmatpush1.bf16.msra.mxu0 %v2733
      %2737 = vmatprep.subr.bf16.mxu0 0
      %2738 = vmatpush1.bf16.msra.mxu0 0
      %2739 = vmatprep.subr.bf16.mxu0 0
      %2740 = vmatpush1.bf16.msra.mxu0 0
      %2741 = vmatprep.subr.bf16.mxu0 0
      %2742 = vmatpush1.bf16.msra.mxu0 0
      %2743 = vmatprep.subr.bf16.mxu0 0
      %2744 = vmatpush1.bf16.msra.mxu0 0
      %2745 = vmatprep.subr.bf16.mxu0 0
      %2746 = vmatpush1.bf16.msra.mxu0 0
      %2747 = vmatprep.subr.bf16.mxu0 0
      %2748 = vmatpush1.bf16.msra.mxu0 0
      %2749 = vmatprep.subr.bf16.mxu0 0
      %2750 = vmatpush1.bf16.msra.mxu0 0
      %2751 = vmatprep.subr.bf16.mxu0 0
      %2752 = vmatpush1.bf16.msra.mxu0 0
      %2753 = vmatprep.subr.bf16.mxu0 0
      %2754 = vmatpush1.bf16.msra.mxu0 0
      %2755 = vmatprep.subr.bf16.mxu0 0
      %2756 = vmatpush1.bf16.msra.mxu0 0
      %2757 = vmatprep.subr.bf16.mxu0 0
      %2758 = vmatpush1.bf16.msra.mxu0 0
      %2759 = vmatprep.subr.bf16.mxu0 0
      %2760 = vmatpush1.bf16.msra.mxu0 0
      %2761 = vmatprep.subr.bf16.mxu0 0
      %2762 = vmatpush1.bf16.msra.mxu0 0
      %2763 = vmatprep.subr.bf16.mxu0 0
      %2764 = vmatpush1.bf16.msra.mxu0 0
      %2765 = vmatprep.subr.bf16.mxu0 0
      %2766 = vmatpush1.bf16.msra.mxu0 0
      %2767 = vmatprep.mubr.bf16.mxu0 0
      %2768 = vmatmul.mubr.bf16.gmra.mrb[0].mxu0 %v2730
      %v2769 = vpop.f32.mrb[0].mxu0
      %v2770 = vadd.f32 0.0, %v2769
      %v2771 = vpop.f32.mrb[0].mxu0
      %v2772 = vpop.f32.mrb[0].mxu0
      %v2773 = vpop.f32.mrb[0].mxu0
      %2774 = vdwg.mxu0
      %2775 = vrot.lane.b32.xlu0 %v1048, 64
      %v2776 = vpop.permute.xlu0 %2775
      %v2778 = vsel %vm1080, %v2053, 0
      %v2781 = vsel %vm2059, %v2776, 0
      %2783 = vmatprep.subr.bf16.mxu0 0
      %2784 = vmatpush1.bf16.msra.mxu0 %v2781
      %2785 = vmatprep.subr.bf16.mxu0 0
      %2786 = vmatpush1.bf16.msra.mxu0 0
      %2787 = vmatprep.subr.bf16.mxu0 0
      %2788 = vmatpush1.bf16.msra.mxu0 0
      %2789 = vmatprep.subr.bf16.mxu0 0
      %2790 = vmatpush1.bf16.msra.mxu0 0
      %2791 = vmatprep.subr.bf16.mxu0 0
      %2792 = vmatpush1.bf16.msra.mxu0 0
      %2793 = vmatprep.subr.bf16.mxu0 0
      %2794 = vmatpush1.bf16.msra.mxu0 0
      %2795 = vmatprep.subr.bf16.mxu0 0
      %2796 = vmatpush1.bf16.msra.mxu0 0
      %2797 = vmatprep.subr.bf16.mxu0 0
      %2798 = vmatpush1.bf16.msra.mxu0 0
      %2799 = vmatprep.subr.bf16.mxu0 0
      %2800 = vmatpush1.bf16.msra.mxu0 0
      %2801 = vmatprep.subr.bf16.mxu0 0
      %2802 = vmatpush1.bf16.msra.mxu0 0
      %2803 = vmatprep.subr.bf16.mxu0 0
      %2804 = vmatpush1.bf16.msra.mxu0 0
      %2805 = vmatprep.subr.bf16.mxu0 0
      %2806 = vmatpush1.bf16.msra.mxu0 0
      %2807 = vmatprep.subr.bf16.mxu0 0
      %2808 = vmatpush1.bf16.msra.mxu0 0
      %2809 = vmatprep.subr.bf16.mxu0 0
      %2810 = vmatpush1.bf16.msra.mxu0 0
      %2811 = vmatprep.subr.bf16.mxu0 0
      %2812 = vmatpush1.bf16.msra.mxu0 0
      %2813 = vmatprep.subr.bf16.mxu0 0
      %2814 = vmatpush1.bf16.msra.mxu0 0
      %2815 = vmatprep.mubr.bf16.mxu0 0
      %2816 = vmatmul.mubr.bf16.gmra.mrb[0].mxu0 %v2778
      %v2817 = vpop.f32.mrb[0].mxu0
      %v2818 = vadd.f32 0.0, %v2817
      %v2819 = vpop.f32.mrb[0].mxu0
      %v2820 = vpop.f32.mrb[0].mxu0
      %v2821 = vpop.f32.mrb[0].mxu0
      %2822 = vdwg.mxu0
      %2827 = vrot.lane.b32.xlu0 %v2290, 8
      %v2828 = vpop.permute.xlu0 %2827
      %2829 = vrot.lane.b32.xlu0 %v2338, 8
      %v2830 = vpop.permute.xlu0 %2829
      %2831 = vrot.lane.b32.xlu0 %v2386, 8
      %v2832 = vpop.permute.xlu0 %2831
      %2833 = vrot.lane.b32.xlu0 %v2434, 8
      %v2834 = vpop.permute.xlu0 %2833
      %2843 = vrot.lane.b32.xlu0 %v2482, 16
      %v2844 = vpop.permute.xlu0 %2843
      %2845 = vrot.lane.b32.xlu0 %v2530, 16
      %v2846 = vpop.permute.xlu0 %2845
      %2847 = vrot.lane.b32.xlu0 %v2578, 16
      %v2848 = vpop.permute.xlu0 %2847
      %2849 = vrot.lane.b32.xlu0 %v2626, 16
      %v2850 = vpop.permute.xlu0 %2849
      %2859 = vrot.lane.b32.xlu0 %v2674, 24
      %v2860 = vpop.permute.xlu0 %2859
      %2861 = vrot.lane.b32.xlu0 %v2722, 24
      %v2862 = vpop.permute.xlu0 %2861
      %2863 = vrot.lane.b32.xlu0 %v2770, 24
      %v2864 = vpop.permute.xlu0 %2863
      %2865 = vrot.lane.b32.xlu0 %v2818, 24
      %v2866 = vpop.permute.xlu0 %2865
      %v2871 = vsel %vm1080, %v2098, %v2828
      %v2872 = vsel %vm1080, %v2146, %v2830
      %v2873 = vsel %vm1080, %v2194, %v2832
      %v2874 = vsel %vm1080, %v2242, %v2834
      %vm2875 = vcmask 130048
      %v2876 = vsel %vm2875, %v2871, %v2844
      %v2877 = vsel %vm2875, %v2872, %v2846
      %v2878 = vsel %vm2875, %v2873, %v2848
      %v2879 = vsel %vm2875, %v2874, %v2850
      %vm2880 = vcmask 195584
      %v2881 = vsel %vm2880, %v2876, %v2860
      %v2882 = vsel %vm2880, %v2877, %v2862
      %v2883 = vsel %vm2880, %v2878, %v2864
      %v2884 = vsel %vm2880, %v2879, %v2866
      %v2885 = vpack.c.bf16 %v2882, %v2881
      %v2886 = vpack.c.bf16 %v2884, %v2883
      %v2887 = vld [vmem:[%s6] sm:$0xf]
      %v2888 = vld [vmem:[%s6 + $0x4] sm:$0xf]
      %v2889 = vld [vmem:[%s6 + $0x8] sm:$0xf]
      %v2890 = vld [vmem:[%s6 + $0xc] sm:$0xf]
      %v2891 = vld [vmem:[%s7] sm:$0x1]
      %v2893 = vlaneseq
      %v2894 = vshrl.u32 %v2893, 7
      %v2895 = vsub.s32 0, %v2894
      %v2896 = vrot.slane %v2891, %v2895
      %v2902 = vunpack.c.l.b16 %v2887
      %v2903 = vunpack.c.l.b16 %v2888
      %v2904 = vunpack.c.l.b16 %v2889
      %v2905 = vunpack.c.l.b16 %v2890
      %v2906 = vpack.c.b16 %v2903, %v2902
      %v2907 = vpack.c.b16 %v2905, %v2904
      %v2911 = vsel %vm831, %v2885, 0
      %v2914 = vsel %vm831, %v2886, 0
      %2916 = vmatprep.subr.bf16.mxu0 0
      %2917 = vmatpush1.bf16.msra.mxu0 %v2906
      %2918 = vmatprep.subr.bf16.mxu0 0
      %2919 = vmatpush1.bf16.msra.mxu0 %v2907
      %2920 = vmatprep.subr.bf16.mxu0 0
      %2921 = vmatpush1.bf16.msra.mxu0 0
      %2922 = vmatprep.subr.bf16.mxu0 0
      %2923 = vmatpush1.bf16.msra.mxu0 0
      %2924 = vmatprep.subr.bf16.mxu0 0
      %2925 = vmatpush1.bf16.msra.mxu0 0
      %2926 = vmatprep.subr.bf16.mxu0 0
      %2927 = vmatpush1.bf16.msra.mxu0 0
      %2928 = vmatprep.subr.bf16.mxu0 0
      %2929 = vmatpush1.bf16.msra.mxu0 0
      %2930 = vmatprep.subr.bf16.mxu0 0
      %2931 = vmatpush1.bf16.msra.mxu0 0
      %2932 = vmatprep.subr.bf16.mxu0 0
      %2933 = vmatpush1.bf16.msra.mxu0 0
      %2934 = vmatprep.subr.bf16.mxu0 0
      %2935 = vmatpush1.bf16.msra.mxu0 0
      %2936 = vmatprep.subr.bf16.mxu0 0
      %2937 = vmatpush1.bf16.msra.mxu0 0
      %2938 = vmatprep.subr.bf16.mxu0 0
      %2939 = vmatpush1.bf16.msra.mxu0 0
      %2940 = vmatprep.subr.bf16.mxu0 0
      %2941 = vmatpush1.bf16.msra.mxu0 0
      %2942 = vmatprep.subr.bf16.mxu0 0
      %2943 = vmatpush1.bf16.msra.mxu0 0
      %2944 = vmatprep.subr.bf16.mxu0 0
      %2945 = vmatpush1.bf16.msra.mxu0 0
      %2946 = vmatprep.subr.bf16.mxu0 0
      %2947 = vmatpush1.bf16.msra.mxu0 0
      %2948 = vmatprep.mubr.bf16.mxu0 0
      %2949 = vmatmul.mubr.bf16.gmra.mrb[0].mxu0 %v2911
      %v2950 = vpop.f32.mrb[0].mxu0
      %v2951 = vadd.f32 %v2896, %v2950
      %v2952 = vpop.f32.mrb[0].mxu0
      %v2953 = vpop.f32.mrb[0].mxu0
      %v2954 = vadd.f32 %v2896, %v2953
      %v2955 = vpop.f32.mrb[0].mxu0
      %2956 = vmatprep.mubr.bf16.mxu0 0
      %2957 = vmatmul.mubr.bf16.gmra.mrb[0].mxu0 %v2914
      %v2958 = vpop.f32.mrb[0].mxu0
      %v2959 = vadd.f32 %v2896, %v2958
      %v2960 = vpop.f32.mrb[0].mxu0
      %v2961 = vpop.f32.mrb[0].mxu0
      %v2962 = vadd.f32 %v2896, %v2961
      %v2963 = vpop.f32.mrb[0].mxu0
      %2964 = vdwg.mxu0
      %v2965 = vadd.f32 %v909, %v2951
      %v2966 = vadd.f32 %v910, %v2954
      %v2967 = vadd.f32 %v911, %v2959
      %v2968 = vadd.f32 %v912, %v2962
      %v2969 = vld [vmem:[%s8] sm:$0x1]
      %v2970 = vld [vmem:[%s9] sm:$0x1]
      %v2971 = vsel %vm831, %v2965, 0.0
      %2972 = vadd.xlane.f32.xlu0 %v2971
      %v2973 = vpop.xlane.xlu0 %2972
      %v2974 = vsel %vm831, %v2966, 0.0
      %2975 = vadd.xlane.f32.xlu0 %v2974
      %v2976 = vpop.xlane.xlu0 %2975
      %v2977 = vsel %vm831, %v2967, 0.0
      %2978 = vadd.xlane.f32.xlu0 %v2977
      %v2979 = vpop.xlane.xlu0 %2978
      %v2980 = vsel %vm831, %v2968, 0.0
      %2981 = vadd.xlane.f32.xlu0 %v2980
      %v2982 = vpop.xlane.xlu0 %2981
      %v2983 = vmul.f32 %v2973, %v844
      %v2984 = vmul.f32 %v2976, %v844
      %v2985 = vmul.f32 %v2979, %v844
      %v2986 = vmul.f32 %v2982, %v844
      %v2987 = vmul.f32 %v2965, %v2965
      %v2988 = vmul.f32 %v2966, %v2966
      %v2989 = vmul.f32 %v2967, %v2967
      %v2990 = vmul.f32 %v2968, %v2968
      %v2991 = vsel %vm831, %v2987, 0.0
      %2992 = vadd.xlane.f32.xlu0 %v2991
      %v2993 = vpop.xlane.xlu0 %2992
      %v2994 = vsel %vm831, %v2988, 0.0
      %2995 = vadd.xlane.f32.xlu0 %v2994
      %v2996 = vpop.xlane.xlu0 %2995
      %v2997 = vsel %vm831, %v2989, 0.0
      %2998 = vadd.xlane.f32.xlu0 %v2997
      %v2999 = vpop.xlane.xlu0 %2998
      %v3000 = vsel %vm831, %v2990, 0.0
      %3001 = vadd.xlane.f32.xlu0 %v3000
      %v3002 = vpop.xlane.xlu0 %3001
      %v3003 = vmul.f32 %v2993, %v844
      %v3004 = vmul.f32 %v2996, %v844
      %v3005 = vmul.f32 %v2999, %v844
      %v3006 = vmul.f32 %v3002, %v844
      %v3007 = vmul.f32 %v2983, %v2983
      %v3008 = vmul.f32 %v2984, %v2984
      %v3009 = vmul.f32 %v2985, %v2985
      %v3010 = vmul.f32 %v2986, %v2986
      %v3011 = vsub.f32 %v3003, %v3007
      %v3012 = vsub.f32 %v3004, %v3008
      %v3013 = vsub.f32 %v3005, %v3009
      %v3014 = vsub.f32 %v3006, %v3010
      %v3015 = vsub.f32 %v2965, %v2983
      %v3016 = vsub.f32 %v2966, %v2984
      %v3017 = vsub.f32 %v2967, %v2985
      %v3018 = vsub.f32 %v2968, %v2986
      %v3019 = vadd.f32 %v3011, 1e-12
      %v3020 = vadd.f32 %v3012, 1e-12
      %v3021 = vadd.f32 %v3013, 1e-12
      %v3022 = vadd.f32 %v3014, 1e-12
      %v3023 = vrsqrt.pop %v3019
      %v3024 = vrsqrt.pop %v3020
      %v3025 = vrsqrt.pop %v3021
      %v3026 = vrsqrt.pop %v3022
      %v3027 = vmul.f32 %v3015, %v3023
      %v3028 = vmul.f32 %v3016, %v3024
      %v3029 = vmul.f32 %v3017, %v3025
      %v3030 = vmul.f32 %v3018, %v3026
      %v3032 = vlaneseq
      %v3033 = vshrl.u32 %v3032, 7
      %v3034 = vsub.s32 0, %v3033
      %v3035 = vrot.slane %v2969, %v3034
      %v3037 = vmul.f32 %v3027, %v3035
      %v3038 = vmul.f32 %v3028, %v3035
      %v3039 = vmul.f32 %v3029, %v3035
      %v3040 = vmul.f32 %v3030, %v3035
      %v3042 = vlaneseq
      %v3043 = vshrl.u32 %v3042, 7
      %v3044 = vsub.s32 0, %v3043
      %v3045 = vrot.slane %v2970, %v3044
      %v3047 = vadd.f32 %v3037, %v3045
      %v3048 = vadd.f32 %v3038, %v3045
      %v3049 = vadd.f32 %v3039, %v3045
      %v3050 = vadd.f32 %v3040, %v3045
      %v3051 = vpack.c.bf16 %v3048, %v3047
      %v3052 = vpack.c.bf16 %v3050, %v3049
      %v3053 = vld [vmem:[%s10] sm:$0xf]
      %v3054 = vld [vmem:[%s10 + $0x4] sm:$0xf]
      %v3055 = vld [vmem:[%s10 + $0x8] sm:$0xf]
      %v3056 = vld [vmem:[%s10 + $0xc] sm:$0xf]
      %v3057 = vld [vmem:[%s11] sm:$0x1]
      %v3059 = vlaneseq
      %v3060 = vshrl.u32 %v3059, 7
      %v3061 = vsub.s32 0, %v3060
      %v3062 = vrot.slane %v3057, %v3061
      %v3068 = vunpack.c.l.b16 %v3053
      %v3069 = vunpack.c.l.b16 %v3054
      %v3070 = vunpack.c.l.b16 %v3055
      %v3071 = vunpack.c.l.b16 %v3056
      %v3072 = vpack.c.b16 %v3069, %v3068
      %v3073 = vpack.c.b16 %v3071, %v3070
      %v3077 = vsel %vm831, %v3051, 0
      %v3080 = vsel %vm831, %v3052, 0
      %3082 = vmatprep.subr.bf16.mxu0 0
      %3083 = vmatpush1.bf16.msra.mxu0 %v3072
      %3084 = vmatprep.subr.bf16.mxu0 0
      %3085 = vmatpush1.bf16.msra.mxu0 %v3073
      %3086 = vmatprep.subr.bf16.mxu0 0
      %3087 = vmatpush1.bf16.msra.mxu0 0
      %3088 = vmatprep.subr.bf16.mxu0 0
      %3089 = vmatpush1.bf16.msra.mxu0 0
      %3090 = vmatprep.subr.bf16.mxu0 0
      %3091 = vmatpush1.bf16.msra.mxu0 0
      %3092 = vmatprep.subr.bf16.mxu0 0
      %3093 = vmatpush1.bf16.msra.mxu0 0
      %3094 = vmatprep.subr.bf16.mxu0 0
      %3095 = vmatpush1.bf16.msra.mxu0 0
      %3096 = vmatprep.subr.bf16.mxu0 0
      %3097 = vmatpush1.bf16.msra.mxu0 0
      %3098 = vmatprep.subr.bf16.mxu0 0
      %3099 = vmatpush1.bf16.msra.mxu0 0
      %3100 = vmatprep.subr.bf16.mxu0 0
      %3101 = vmatpush1.bf16.msra.mxu0 0
      %3102 = vmatprep.subr.bf16.mxu0 0
      %3103 = vmatpush1.bf16.msra.mxu0 0
      %3104 = vmatprep.subr.bf16.mxu0 0
      %3105 = vmatpush1.bf16.msra.mxu0 0
      %3106 = vmatprep.subr.bf16.mxu0 0
      %3107 = vmatpush1.bf16.msra.mxu0 0
      %3108 = vmatprep.subr.bf16.mxu0 0
      %3109 = vmatpush1.bf16.msra.mxu0 0
      %3110 = vmatprep.subr.bf16.mxu0 0
      %3111 = vmatpush1.bf16.msra.mxu0 0
      %3112 = vmatprep.subr.bf16.mxu0 0
      %3113 = vmatpush1.bf16.msra.mxu0 0
      %3114 = vmatprep.mubr.bf16.mxu0 0
      %3115 = vmatmul.mubr.bf16.gmra.mrb[0].mxu0 %v3077
      %v3116 = vpop.f32.mrb[0].mxu0
      %v3117 = vadd.f32 %v3062, %v3116
      %v3118 = vpop.f32.mrb[0].mxu0
      %v3119 = vpop.f32.mrb[0].mxu0
      %v3120 = vadd.f32 %v3062, %v3119
      %v3121 = vpop.f32.mrb[0].mxu0
      %3122 = vmatprep.mubr.bf16.mxu0 0
      %3123 = vmatmul.mubr.bf16.gmra.mrb[0].mxu0 %v3080
      %v3124 = vpop.f32.mrb[0].mxu0
      %v3125 = vadd.f32 %v3062, %v3124
      %v3126 = vpop.f32.mrb[0].mxu0
      %v3127 = vpop.f32.mrb[0].mxu0
      %v3128 = vadd.f32 %v3062, %v3127
      %v3129 = vpop.f32.mrb[0].mxu0
      %3130 = vdwg.mxu0
      %v3131 = vmul.f32 %v3117, 0.5
      %v3132 = vmul.f32 %v3120, 0.5
      %v3133 = vmul.f32 %v3125, 0.5
      %v3134 = vmul.f32 %v3128, 0.5
      %v3135 = vmul.f32 %v3117, 0.044715
      %v3136 = vmul.f32 %v3120, 0.044715
      %v3137 = vmul.f32 %v3125, 0.044715
      %v3138 = vmul.f32 %v3128, 0.044715
      %v3139 = vmul.f32 %v3135, %v3117
      %v3140 = vmul.f32 %v3136, %v3120
      %v3141 = vmul.f32 %v3137, %v3125
      %v3142 = vmul.f32 %v3138, %v3128
      %v3143 = vmul.f32 %v3139, %v3117
      %v3144 = vmul.f32 %v3140, %v3120
      %v3145 = vmul.f32 %v3141, %v3125
      %v3146 = vmul.f32 %v3142, %v3128
      %v3147 = vadd.f32 %v3117, %v3143
      %v3148 = vadd.f32 %v3120, %v3144
      %v3149 = vadd.f32 %v3125, %v3145
      %v3150 = vadd.f32 %v3128, %v3146
      %v3151 = vmul.f32 %v3147, 0.7978846
      %v3152 = vmul.f32 %v3148, 0.7978846
      %v3153 = vmul.f32 %v3149, 0.7978846
      %v3154 = vmul.f32 %v3150, 0.7978846
      %v3155 = vtanh.pop %v3151
      %v3156 = vtanh.pop %v3152
      %v3157 = vtanh.pop %v3153
      %v3158 = vtanh.pop %v3154
      %v3159 = vadd.f32 %v3155, 1.0
      %v3160 = vadd.f32 %v3156, 1.0
      %v3161 = vadd.f32 %v3157, 1.0
      %v3162 = vadd.f32 %v3158, 1.0
      %v3163 = vmul.f32 %v3131, %v3159
      %v3164 = vmul.f32 %v3132, %v3160
      %v3165 = vmul.f32 %v3133, %v3161
      %v3166 = vmul.f32 %v3134, %v3162
      %v3167 = vpack.c.bf16 %v3164, %v3163
      %v3168 = vpack.c.bf16 %v3166, %v3165
      %v3169 = vld [vmem:[%s12] sm:$0xf]
      %v3170 = vld [vmem:[%s12 + $0x4] sm:$0xf]
      %v3171 = vld [vmem:[%s12 + $0x8] sm:$0xf]
      %v3172 = vld [vmem:[%s12 + $0xc] sm:$0xf]
      %v3173 = vld [vmem:[%s12 + $0x10] sm:$0xf]
      %v3174 = vld [vmem:[%s12 + $0x14] sm:$0xf]
      %v3175 = vld [vmem:[%s12 + $0x18] sm:$0xf]
      %v3176 = vld [vmem:[%s12 + $0x1c] sm:$0xf]
      %v3177 = vld [vmem:[%s13] sm:$0x1]
      %v3179 = vlaneseq
      %v3180 = vshrl.u32 %v3179, 7
      %v3181 = vsub.s32 0, %v3180
      %v3182 = vrot.slane %v3177, %v3181
      %v3192 = vunpack.c.l.b16 %v3169
      %v3193 = vunpack.c.l.b16 %v3170
      %v3194 = vunpack.c.l.b16 %v3171
      %v3195 = vunpack.c.l.b16 %v3172
      %v3196 = vunpack.c.l.b16 %v3173
      %v3197 = vunpack.c.l.b16 %v3174
      %v3198 = vunpack.c.l.b16 %v3175
      %v3199 = vunpack.c.l.b16 %v3176
      %v3200 = vpack.c.b16 %v3193, %v3192
      %v3201 = vpack.c.b16 %v3195, %v3194
      %v3202 = vpack.c.b16 %v3197, %v3196
      %v3203 = vpack.c.b16 %v3199, %v3198
      %vm3208 = vcmask 523264
      %v3210 = vsel %vm3208, %v3167, 0
      %v3213 = vsel %vm3208, %v3168, 0
      %3215 = vmatprep.subr.bf16.mxu0 0
      %3216 = vmatpush1.bf16.msra.mxu0 %v3200
      %3217 = vmatprep.subr.bf16.mxu0 0
      %3218 = vmatpush1.bf16.msra.mxu0 %v3201
      %3219 = vmatprep.subr.bf16.mxu0 0
      %3220 = vmatpush1.bf16.msra.mxu0 %v3202
      %3221 = vmatprep.subr.bf16.mxu0 0
      %3222 = vmatpush1.bf16.msra.mxu0 %v3203
      %3223 = vmatprep.subr.bf16.mxu0 0
      %3224 = vmatpush1.bf16.msra.mxu0 0
      %3225 = vmatprep.subr.bf16.mxu0 0
      %3226 = vmatpush1.bf16.msra.mxu0 0
      %3227 = vmatprep.subr.bf16.mxu0 0
      %3228 = vmatpush1.bf16.msra.mxu0 0
      %3229 = vmatprep.subr.bf16.mxu0 0
      %3230 = vmatpush1.bf16.msra.mxu0 0
      %3231 = vmatprep.subr.bf16.mxu0 0
      %3232 = vmatpush1.bf16.msra.mxu0 0
      %3233 = vmatprep.subr.bf16.mxu0 0
      %3234 = vmatpush1.bf16.msra.mxu0 0
      %3235 = vmatprep.subr.bf16.mxu0 0
      %3236 = vmatpush1.bf16.msra.mxu0 0
      %3237 = vmatprep.subr.bf16.mxu0 0
      %3238 = vmatpush1.bf16.msra.mxu0 0
      %3239 = vmatprep.subr.bf16.mxu0 0
      %3240 = vmatpush1.bf16.msra.mxu0 0
      %3241 = vmatprep.subr.bf16.mxu0 0
      %3242 = vmatpush1.bf16.msra.mxu0 0
      %3243 = vmatprep.subr.bf16.mxu0 0
      %3244 = vmatpush1.bf16.msra.mxu0 0
      %3245 = vmatprep.subr.bf16.mxu0 0
      %3246 = vmatpush1.bf16.msra.mxu0 0
      %3247 = vmatprep.mubr.bf16.mxu0 0
      %3248 = vmatmul.mubr.bf16.gmra.mrb[0].mxu0 %v3210
      %v3249 = vpop.f32.mrb[0].mxu0
      %v3250 = vadd.f32 %v3182, %v3249
      %v3251 = vpop.f32.mrb[0].mxu0
      %v3252 = vpop.f32.mrb[0].mxu0
      %v3253 = vadd.f32 %v3182, %v3252
      %v3254 = vpop.f32.mrb[0].mxu0
      %3255 = vmatprep.mubr.bf16.mxu0 0
      %3256 = vmatmul.mubr.bf16.gmra.mrb[0].mxu0 %v3213
      %v3257 = vpop.f32.mrb[0].mxu0
      %v3258 = vadd.f32 %v3182, %v3257
      %v3259 = vpop.f32.mrb[0].mxu0
      %v3260 = vpop.f32.mrb[0].mxu0
      %v3261 = vadd.f32 %v3182, %v3260
      %v3262 = vpop.f32.mrb[0].mxu0
      %3263 = vdwg.mxu0
      %v3264 = vadd.f32 %v3047, %v3250
      %v3265 = vadd.f32 %v3048, %v3253
      %v3266 = vadd.f32 %v3049, %v3258
      %v3267 = vadd.f32 %v3050, %v3261
      %v3268 = vld [vmem:[%s14] sm:$0x1]
      %v3269 = vld [vmem:[%s15] sm:$0x1]
      %v3270 = vsel %vm831, %v3264, 0.0
      %3271 = vadd.xlane.f32.xlu0 %v3270
      %v3272 = vpop.xlane.xlu0 %3271
      %v3273 = vsel %vm831, %v3265, 0.0
      %3274 = vadd.xlane.f32.xlu0 %v3273
      %v3275 = vpop.xlane.xlu0 %3274
      %v3276 = vsel %vm831, %v3266, 0.0
      %3277 = vadd.xlane.f32.xlu0 %v3276
      %v3278 = vpop.xlane.xlu0 %3277
      %v3279 = vsel %vm831, %v3267, 0.0
      %3280 = vadd.xlane.f32.xlu0 %v3279
      %v3281 = vpop.xlane.xlu0 %3280
      %v3282 = vmul.f32 %v3272, %v844
      %v3283 = vmul.f32 %v3275, %v844
      %v3284 = vmul.f32 %v3278, %v844
      %v3285 = vmul.f32 %v3281, %v844
      %v3286 = vmul.f32 %v3264, %v3264
      %v3287 = vmul.f32 %v3265, %v3265
      %v3288 = vmul.f32 %v3266, %v3266
      %v3289 = vmul.f32 %v3267, %v3267
      %v3290 = vsel %vm831, %v3286, 0.0
      %3291 = vadd.xlane.f32.xlu0 %v3290
      %v3292 = vpop.xlane.xlu0 %3291
      %v3293 = vsel %vm831, %v3287, 0.0
      %3294 = vadd.xlane.f32.xlu0 %v3293
      %v3295 = vpop.xlane.xlu0 %3294
      %v3296 = vsel %vm831, %v3288, 0.0
      %3297 = vadd.xlane.f32.xlu0 %v3296
      %v3298 = vpop.xlane.xlu0 %3297
      %v3299 = vsel %vm831, %v3289, 0.0
      %3300 = vadd.xlane.f32.xlu0 %v3299
      %v3301 = vpop.xlane.xlu0 %3300
      %v3302 = vmul.f32 %v3292, %v844
      %v3303 = vmul.f32 %v3295, %v844
      %v3304 = vmul.f32 %v3298, %v844
      %v3305 = vmul.f32 %v3301, %v844
      %v3306 = vmul.f32 %v3282, %v3282
      %v3307 = vmul.f32 %v3283, %v3283
      %v3308 = vmul.f32 %v3284, %v3284
      %v3309 = vmul.f32 %v3285, %v3285
      %v3310 = vsub.f32 %v3302, %v3306
      %v3311 = vsub.f32 %v3303, %v3307
      %v3312 = vsub.f32 %v3304, %v3308
      %v3313 = vsub.f32 %v3305, %v3309
      %v3314 = vsub.f32 %v3264, %v3282
      %v3315 = vsub.f32 %v3265, %v3283
      %v3316 = vsub.f32 %v3266, %v3284
      %v3317 = vsub.f32 %v3267, %v3285
      %v3318 = vadd.f32 %v3310, 1e-12
      %v3319 = vadd.f32 %v3311, 1e-12
      %v3320 = vadd.f32 %v3312, 1e-12
      %v3321 = vadd.f32 %v3313, 1e-12
      %v3322 = vrsqrt.pop %v3318
      %v3323 = vrsqrt.pop %v3319
      %v3324 = vrsqrt.pop %v3320
      %v3325 = vrsqrt.pop %v3321
      %v3326 = vmul.f32 %v3314, %v3322
      %v3327 = vmul.f32 %v3315, %v3323
      %v3328 = vmul.f32 %v3316, %v3324
      %v3329 = vmul.f32 %v3317, %v3325
      %v3331 = vlaneseq
      %v3332 = vshrl.u32 %v3331, 7
      %v3333 = vsub.s32 0, %v3332
      %v3334 = vrot.slane %v3268, %v3333
      %v3336 = vmul.f32 %v3326, %v3334
      %v3337 = vmul.f32 %v3327, %v3334
      %v3338 = vmul.f32 %v3328, %v3334
      %v3339 = vmul.f32 %v3329, %v3334
      %v3341 = vlaneseq
      %v3342 = vshrl.u32 %v3341, 7
      %v3343 = vsub.s32 0, %v3342
      %v3344 = vrot.slane %v3269, %v3343
      %v3346 = vadd.f32 %v3336, %v3344
      %v3347 = vadd.f32 %v3337, %v3344
      %v3348 = vadd.f32 %v3338, %v3344
      %v3349 = vadd.f32 %v3339, %v3344
      %v3350 = vpack.c.bf16 %v3346, %v3346
      %v3351 = vpack.c.bf16 %v3347, %v3347
      %v3352 = vpack.c.bf16 %v3348, %v3348
      %v3353 = vpack.c.bf16 %v3349, %v3349
      %v3354 = vld [vmem:[%s16] sm:$0xf]
      %v3355 = vld [vmem:[%s16 + $0x4] sm:$0xf]
      %v3356 = vld [vmem:[%s16 + $0x8] sm:$0xf]
      %v3357 = vld [vmem:[%s16 + $0xc] sm:$0xf]
      %v3358 = vld [vmem:[#allocation2] sm:$0x1]
      %v3360 = vlaneseq
      %v3361 = vshrl.u32 %v3360, 7
      %v3362 = vsub.s32 0, %v3361
      %v3363 = vrot.slane %v3358, %v3362
      %v3369 = vunpack.c.l.b16 %v3350
      %v3370 = vunpack.c.l.b16 %v3351
      %v3371 = vunpack.c.l.b16 %v3352
      %v3372 = vunpack.c.l.b16 %v3353
      %v3373 = vrot.slane %v3370, 7
      %vm3374 = vcmask 1041409
      %v3375 = vsel %vm3374, %v3373, %v3369
      %v3376 = vrot.slane %v3371, 6
      %vm3377 = vcmask 1042434
      %v3378 = vsel %vm3377, %v3376, %v3375
      %v3379 = vrot.slane %v3372, 5
      %vm3380 = vcmask 1043459
      %v3381 = vsel %vm3380, %v3379, %v3378
      %v3382 = vpack.c.b16 %v3381, %v3381
      %v3387 = vunpack.c.l.b16 %v3354
      %v3388 = vunpack.c.l.b16 %v3355
      %v3389 = vunpack.c.l.b16 %v3356
      %v3390 = vunpack.c.l.b16 %v3357
      %v3391 = vpack.c.b16 %v3388, %v3387
      %v3392 = vpack.c.b16 %v3390, %v3389
      %v3396 = vsel %vm831, %v3382, 0
      %3398 = vmatprep.subr.bf16.mxu0 0
      %3399 = vmatpush1.bf16.msra.mxu0 %v3391
      %3400 = vmatprep.subr.bf16.mxu0 0
      %3401 = vmatpush1.bf16.msra.mxu0 %v3392
      %3402 = vmatprep.subr.bf16.mxu0 0
      %3403 = vmatpush1.bf16.msra.mxu0 0
      %3404 = vmatprep.subr.bf16.mxu0 0
      %3405 = vmatpush1.bf16.msra.mxu0 0
      %3406 = vmatprep.subr.bf16.mxu0 0
      %3407 = vmatpush1.bf16.msra.mxu0 0
      %3408 = vmatprep.subr.bf16.mxu0 0
      %3409 = vmatpush1.bf16.msra.mxu0 0
      %3410 = vmatprep.subr.bf16.mxu0 0
      %3411 = vmatpush1.bf16.msra.mxu0 0
      %3412 = vmatprep.subr.bf16.mxu0 0
      %3413 = vmatpush1.bf16.msra.mxu0 0
      %3414 = vmatprep.subr.bf16.mxu0 0
      %3415 = vmatpush1.bf16.msra.mxu0 0
      %3416 = vmatprep.subr.bf16.mxu0 0
      %3417 = vmatpush1.bf16.msra.mxu0 0
      %3418 = vmatprep.subr.bf16.mxu0 0
      %3419 = vmatpush1.bf16.msra.mxu0 0
      %3420 = vmatprep.subr.bf16.mxu0 0
      %3421 = vmatpush1.bf16.msra.mxu0 0
      %3422 = vmatprep.subr.bf16.mxu0 0
      %3423 = vmatpush1.bf16.msra.mxu0 0
      %3424 = vmatprep.subr.bf16.mxu0 0
      %3425 = vmatpush1.bf16.msra.mxu0 0
      %3426 = vmatprep.subr.bf16.mxu0 0
      %3427 = vmatpush1.bf16.msra.mxu0 0
      %3428 = vmatprep.subr.bf16.mxu0 0
      %3429 = vmatpush1.bf16.msra.mxu0 0
      %3430 = vmatprep.mubr.bf16.mxu0 0
      %3431 = vmatmul.mubr.bf16.gmra.mrb[0].mxu0 %v3396
      %v3432 = vpop.f32.mrb[0].mxu0
      %v3433 = vadd.f32 %v3363, %v3432
      %v3434 = vpop.f32.mrb[0].mxu0
      %v3435 = vpop.f32.mrb[0].mxu0
      %v3436 = vpop.f32.mrb[0].mxu0
      %3437 = vdwg.mxu0
      %vm3438 = vcmask 3072
      %3439 = vst.msk [vmem:[%s820] sm:$0xf] %vm3438, %v3433
      %v3440 = vld [vmem:[%s18] sm:$0xf]
      %v3441 = vld [vmem:[%s18 + $0x4] sm:$0xf]
      %v3442 = vld [vmem:[%s18 + $0x8] sm:$0xf]
      %v3443 = vld [vmem:[%s18 + $0xc] sm:$0xf]
      %v3444 = vld [vmem:[%s20] sm:$0x1]
      %v3446 = vlaneseq
      %v3447 = vshrl.u32 %v3446, 7
      %v3448 = vsub.s32 0, %v3447
      %v3449 = vrot.slane %v3444, %v3448
      %v3455 = vunpack.c.l.b16 %v3440
      %v3456 = vunpack.c.l.b16 %v3441
      %v3457 = vunpack.c.l.b16 %v3442
      %v3458 = vunpack.c.l.b16 %v3443
      %v3459 = vpack.c.b16 %v3456, %v3455
      %v3460 = vpack.c.b16 %v3458, %v3457
      %3463 = vmatprep.subr.bf16.mxu0 0
      %3464 = vmatpush1.bf16.msra.mxu0 %v3459
      %3465 = vmatprep.subr.bf16.mxu0 0
      %3466 = vmatpush1.bf16.msra.mxu0 %v3460
      %3467 = vmatprep.subr.bf16.mxu0 0
      %3468 = vmatpush1.bf16.msra.mxu0 0
      %3469 = vmatprep.subr.bf16.mxu0 0
      %3470 = vmatpush1.bf16.msra.mxu0 0
      %3471 = vmatprep.subr.bf16.mxu0 0
      %3472 = vmatpush1.bf16.msra.mxu0 0
      %3473 = vmatprep.subr.bf16.mxu0 0
      %3474 = vmatpush1.bf16.msra.mxu0 0
      %3475 = vmatprep.subr.bf16.mxu0 0
      %3476 = vmatpush1.bf16.msra.mxu0 0
      %3477 = vmatprep.subr.bf16.mxu0 0
      %3478 = vmatpush1.bf16.msra.mxu0 0
      %3479 = vmatprep.subr.bf16.mxu0 0
      %3480 = vmatpush1.bf16.msra.mxu0 0
      %3481 = vmatprep.subr.bf16.mxu0 0
      %3482 = vmatpush1.bf16.msra.mxu0 0
      %3483 = vmatprep.subr.bf16.mxu0 0
      %3484 = vmatpush1.bf16.msra.mxu0 0
      %3485 = vmatprep.subr.bf16.mxu0 0
      %3486 = vmatpush1.bf16.msra.mxu0 0
      %3487 = vmatprep.subr.bf16.mxu0 0
      %3488 = vmatpush1.bf16.msra.mxu0 0
      %3489 = vmatprep.subr.bf16.mxu0 0
      %3490 = vmatpush1.bf16.msra.mxu0 0
      %3491 = vmatprep.subr.bf16.mxu0 0
      %3492 = vmatpush1.bf16.msra.mxu0 0
      %3493 = vmatprep.subr.bf16.mxu0 0
      %3494 = vmatpush1.bf16.msra.mxu0 0
      %3495 = vmatprep.mubr.bf16.mxu0 0
      %3496 = vmatmul.mubr.bf16.gmra.mrb[0].mxu0 %v3396
      %v3497 = vpop.f32.mrb[0].mxu0
      %v3498 = vadd.f32 %v3449, %v3497
      %v3499 = vpop.f32.mrb[0].mxu0
      %v3500 = vpop.f32.mrb[0].mxu0
      %v3501 = vpop.f32.mrb[0].mxu0
      %3502 = vdwg.mxu0
      %v3503 = vld [vmem:[%s19] sm:$0xf]
      %v3504 = vld [vmem:[%s19 + $0x4] sm:$0xf]
      %v3505 = vld [vmem:[%s19 + $0x8] sm:$0xf]
      %v3506 = vld [vmem:[%s19 + $0xc] sm:$0xf]
      %v3511 = vunpack.c.l.b16 %v3503
      %v3512 = vunpack.c.l.b16 %v3504
      %v3513 = vunpack.c.l.b16 %v3505
      %v3514 = vunpack.c.l.b16 %v3506
      %v3515 = vpack.c.b16 %v3512, %v3511
      %v3516 = vpack.c.b16 %v3514, %v3513
      %v3520 = vsel %vm831, 0, 0
      %3522 = vmatprep.subr.bf16.mxu0 0
      %3523 = vmatpush1.bf16.msra.mxu0 %v3515
      %3524 = vmatprep.subr.bf16.mxu0 0
      %3525 = vmatpush1.bf16.msra.mxu0 %v3516
      %3526 = vmatprep.subr.bf16.mxu0 0
      %3527 = vmatpush1.bf16.msra.mxu0 0
      %3528 = vmatprep.subr.bf16.mxu0 0
      %3529 = vmatpush1.bf16.msra.mxu0 0
      %3530 = vmatprep.subr.bf16.mxu0 0
      %3531 = vmatpush1.bf16.msra.mxu0 0
      %3532 = vmatprep.subr.bf16.mxu0 0
      %3533 = vmatpush1.bf16.msra.mxu0 0
      %3534 = vmatprep.subr.bf16.mxu0 0
      %3535 = vmatpush1.bf16.msra.mxu0 0
      %3536 = vmatprep.subr.bf16.mxu0 0
      %3537 = vmatpush1.bf16.msra.mxu0 0
      %3538 = vmatprep.subr.bf16.mxu0 0
      %3539 = vmatpush1.bf16.msra.mxu0 0
      %3540 = vmatprep.subr.bf16.mxu0 0
      %3541 = vmatpush1.bf16.msra.mxu0 0
      %3542 = vmatprep.subr.bf16.mxu0 0
      %3543 = vmatpush1.bf16.msra.mxu0 0
      %3544 = vmatprep.subr.bf16.mxu0 0
      %3545 = vmatpush1.bf16.msra.mxu0 0
      %3546 = vmatprep.subr.bf16.mxu0 0
      %3547 = vmatpush1.bf16.msra.mxu0 0
      %3548 = vmatprep.subr.bf16.mxu0 0
      %3549 = vmatpush1.bf16.msra.mxu0 0
      %3550 = vmatprep.subr.bf16.mxu0 0
      %3551 = vmatpush1.bf16.msra.mxu0 0
      %3552 = vmatprep.subr.bf16.mxu0 0
      %3553 = vmatpush1.bf16.msra.mxu0 0
      %3554 = vmatprep.mubr.bf16.mxu0 0
      %3555 = vmatmul.mubr.bf16.gmra.mrb[0].mxu0 %v3520
      %v3556 = vpop.f32.mrb[0].mxu0
      %v3557 = vadd.f32 0.0, %v3556
      %v3558 = vpop.f32.mrb[0].mxu0
      %v3559 = vpop.f32.mrb[0].mxu0
      %v3560 = vpop.f32.mrb[0].mxu0
      %3561 = vdwg.mxu0
      %v3562 = vadd.f32 %v3498, %v3557
      %v3563 = vxor.u32 %v3562, 2147483648
      %v3564 = vmul.f32 %v3563, 1.442695
      %v3565 = vpow.pop %v3564
      %v3566 = vadd.f32 %v3565, 1.0
      %v3567 = vrcp.pop %v3566
      %v3568 = vmul.f32 1.0, %v3567
      %v3569 = vtanh.pop %v3562
      %v3570 = vmul.f32 %v3568, 0.0
      %3572 = vrot.lane.b32.xlu0 %v3569, 64
      %v3573 = vpop.permute.xlu0 %3572
      %v3575 = vmul.f32 %v3568, %v3573
      %3577 = vrot.lane.b32.xlu0 %v3575, 32
      %v3578 = vpop.permute.xlu0 %3577
      %v3580 = vadd.f32 %v3570, %v3578
      %v3581 = vtanh.pop %v3580
      %3583 = vrot.lane.b32.xlu0 %v3581, 64
      %v3584 = vpop.permute.xlu0 %3583
      %v3586 = vmul.f32 %v3568, %v3584
      %v3587 = vpack.c.bf16 %v3586, %v3586
      %3589 = vrot.lane.b32.xlu0 %v3587, 32
      %v3590 = vpop.permute.xlu0 %3589
      %v3592 = vsel %vm831, %v3590, 0
      %3594 = vmatprep.subr.bf16.mxu0 0
      %3595 = vmatpush1.bf16.msra.mxu0 %v3515
      %3596 = vmatprep.subr.bf16.mxu0 0
      %3597 = vmatpush1.bf16.msra.mxu0 %v3516
      %3598 = vmatprep.subr.bf16.mxu0 0
      %3599 = vmatpush1.bf16.msra.mxu0 0
      %3600 = vmatprep.subr.bf16.mxu0 0
      %3601 = vmatpush1.bf16.msra.mxu0 0
      %3602 = vmatprep.subr.bf16.mxu0 0
      %3603 = vmatpush1.bf16.msra.mxu0 0
      %3604 = vmatprep.subr.bf16.mxu0 0
      %3605 = vmatpush1.bf16.msra.mxu0 0
      %3606 = vmatprep.subr.bf16.mxu0 0
      %3607 = vmatpush1.bf16.msra.mxu0 0
      %3608 = vmatprep.subr.bf16.mxu0 0
      %3609 = vmatpush1.bf16.msra.mxu0 0
      %3610 = vmatprep.subr.bf16.mxu0 0
      %3611 = vmatpush1.bf16.msra.mxu0 0
      %3612 = vmatprep.subr.bf16.mxu0 0
      %3613 = vmatpush1.bf16.msra.mxu0 0
      %3614 = vmatprep.subr.bf16.mxu0 0
      %3615 = vmatpush1.bf16.msra.mxu0 0
      %3616 = vmatprep.subr.bf16.mxu0 0
      %3617 = vmatpush1.bf16.msra.mxu0 0
      %3618 = vmatprep.subr.bf16.mxu0 0
      %3619 = vmatpush1.bf16.msra.mxu0 0
      %3620 = vmatprep.subr.bf16.mxu0 0
      %3621 = vmatpush1.bf16.msra.mxu0 0
      %3622 = vmatprep.subr.bf16.mxu0 0
      %3623 = vmatpush1.bf16.msra.mxu0 0
      %3624 = vmatprep.subr.bf16.mxu0 0
      %3625 = vmatpush1.bf16.msra.mxu0 0
      %3626 = vmatprep.mubr.bf16.mxu0 0
      %3627 = vmatmul.mubr.bf16.gmra.mrb[0].mxu0 %v3592
      %v3628 = vpop.f32.mrb[0].mxu0
      %v3629 = vadd.f32 0.0, %v3628
      %v3630 = vpop.f32.mrb[0].mxu0
      %v3631 = vpop.f32.mrb[0].mxu0
      %v3632 = vpop.f32.mrb[0].mxu0
      %3633 = vdwg.mxu0
      %v3635 = vrot.slane %v3629, 7
      %v3637 = vadd.f32 %v3498, %v3635
      %v3638 = vxor.u32 %v3637, 2147483648
      %v3639 = vmul.f32 %v3638, 1.442695
      %v3640 = vpow.pop %v3639
      %v3641 = vadd.f32 %v3640, 1.0
      %v3642 = vrcp.pop %v3641
      %v3643 = vmul.f32 1.0, %v3642
      %v3644 = vtanh.pop %v3637
      %v3646 = vrot.slane %v3580, 7
      %v3648 = vmul.f32 %v3643, %v3646
      %3650 = vrot.lane.b32.xlu0 %v3644, 64
      %v3651 = vpop.permute.xlu0 %3650
      %v3653 = vmul.f32 %v3643, %v3651
      %3655 = vrot.lane.b32.xlu0 %v3653, 32
      %v3656 = vpop.permute.xlu0 %3655
      %v3658 = vadd.f32 %v3648, %v3656
      %v3659 = vtanh.pop %v3658
      %3661 = vrot.lane.b32.xlu0 %v3659, 64
      %v3662 = vpop.permute.xlu0 %3661
      %v3664 = vmul.f32 %v3643, %v3662
      %v3665 = vpack.c.bf16 %v3664, %v3664
      %v3667 = vshrl.u32 %v3665, 16
      %3669 = vrot.lane.b32.xlu0 %v3667, 32
      %v3670 = vpop.permute.xlu0 %3669
      %v3672 = vsel %vm831, %v3670, 0
      %3674 = vmatprep.subr.bf16.mxu0 0
      %3675 = vmatpush1.bf16.msra.mxu0 %v3515
      %3676 = vmatprep.subr.bf16.mxu0 0
      %3677 = vmatpush1.bf16.msra.mxu0 %v3516
      %3678 = vmatprep.subr.bf16.mxu0 0
      %3679 = vmatpush1.bf16.msra.mxu0 0
      %3680 = vmatprep.subr.bf16.mxu0 0
      %3681 = vmatpush1.bf16.msra.mxu0 0
      %3682 = vmatprep.subr.bf16.mxu0 0
      %3683 = vmatpush1.bf16.msra.mxu0 0
      %3684 = vmatprep.subr.bf16.mxu0 0
      %3685 = vmatpush1.bf16.msra.mxu0 0
      %3686 = vmatprep.subr.bf16.mxu0 0
      %3687 = vmatpush1.bf16.msra.mxu0 0
      %3688 = vmatprep.subr.bf16.mxu0 0
      %3689 = vmatpush1.bf16.msra.mxu0 0
      %3690 = vmatprep.subr.bf16.mxu0 0
      %3691 = vmatpush1.bf16.msra.mxu0 0
      %3692 = vmatprep.subr.bf16.mxu0 0
      %3693 = vmatpush1.bf16.msra.mxu0 0
      %3694 = vmatprep.subr.bf16.mxu0 0
      %3695 = vmatpush1.bf16.msra.mxu0 0
      %3696 = vmatprep.subr.bf16.mxu0 0
      %3697 = vmatpush1.bf16.msra.mxu0 0
      %3698 = vmatprep.subr.bf16.mxu0 0
      %3699 = vmatpush1.bf16.msra.mxu0 0
      %3700 = vmatprep.subr.bf16.mxu0 0
      %3701 = vmatpush1.bf16.msra.mxu0 0
      %3702 = vmatprep.subr.bf16.mxu0 0
      %3703 = vmatpush1.bf16.msra.mxu0 0
      %3704 = vmatprep.subr.bf16.mxu0 0
      %3705 = vmatpush1.bf16.msra.mxu0 0
      %3706 = vmatprep.mubr.bf16.mxu0 0
      %3707 = vmatmul.mubr.bf16.gmra.mrb[0].mxu0 %v3672
      %v3708 = vpop.f32.mrb[0].mxu0
      %v3709 = vadd.f32 0.0, %v3708
      %v3710 = vpop.f32.mrb[0].mxu0
      %v3711 = vpop.f32.mrb[0].mxu0
      %v3712 = vpop.f32.mrb[0].mxu0
      %3713 = vdwg.mxu0
      %v3715 = vrot.slane %v3709, 6
      %v3717 = vadd.f32 %v3498, %v3715
      %v3718 = vxor.u32 %v3717, 2147483648
      %v3719 = vmul.f32 %v3718, 1.442695
      %v3720 = vpow.pop %v3719
      %v3721 = vadd.f32 %v3720, 1.0
      %v3722 = vrcp.pop %v3721
      %v3723 = vmul.f32 1.0, %v3722
      %v3724 = vtanh.pop %v3717
      %v3726 = vrot.slane %v3658, 7
      %v3728 = vmul.f32 %v3723, %v3726
      %3730 = vrot.lane.b32.xlu0 %v3724, 64
      %v3731 = vpop.permute.xlu0 %3730
      %v3733 = vmul.f32 %v3723, %v3731
      %3735 = vrot.lane.b32.xlu0 %v3733, 32
      %v3736 = vpop.permute.xlu0 %3735
      %v3738 = vadd.f32 %v3728, %v3736
      %v3739 = vtanh.pop %v3738
      %3741 = vrot.lane.b32.xlu0 %v3739, 64
      %v3742 = vpop.permute.xlu0 %3741
      %v3744 = vmul.f32 %v3723, %v3742
      %v3745 = vpack.c.bf16 %v3744, %v3744
      %v3747 = vrot.slane %v3745, 1
      %3748 = vrot.lane.b32.xlu0 %v3747, 32
      %v3749 = vpop.permute.xlu0 %3748
      %v3751 = vsel %vm831, %v3749, 0
      %3753 = vmatprep.subr.bf16.mxu0 0
      %3754 = vmatpush1.bf16.msra.mxu0 %v3515
      %3755 = vmatprep.subr.bf16.mxu0 0
      %3756 = vmatpush1.bf16.msra.mxu0 %v3516
      %3757 = vmatprep.subr.bf16.mxu0 0
      %3758 = vmatpush1.bf16.msra.mxu0 0
      %3759 = vmatprep.subr.bf16.mxu0 0
      %3760 = vmatpush1.bf16.msra.mxu0 0
      %3761 = vmatprep.subr.bf16.mxu0 0
      %3762 = vmatpush1.bf16.msra.mxu0 0
      %3763 = vmatprep.subr.bf16.mxu0 0
      %3764 = vmatpush1.bf16.msra.mxu0 0
      %3765 = vmatprep.subr.bf16.mxu0 0
      %3766 = vmatpush1.bf16.msra.mxu0 0
      %3767 = vmatprep.subr.bf16.mxu0 0
      %3768 = vmatpush1.bf16.msra.mxu0 0
      %3769 = vmatprep.subr.bf16.mxu0 0
      %3770 = vmatpush1.bf16.msra.mxu0 0
      %3771 = vmatprep.subr.bf16.mxu0 0
      %3772 = vmatpush1.bf16.msra.mxu0 0
      %3773 = vmatprep.subr.bf16.mxu0 0
      %3774 = vmatpush1.bf16.msra.mxu0 0
      %3775 = vmatprep.subr.bf16.mxu0 0
      %3776 = vmatpush1.bf16.msra.mxu0 0
      %3777 = vmatprep.subr.bf16.mxu0 0
      %3778 = vmatpush1.bf16.msra.mxu0 0
      %3779 = vmatprep.subr.bf16.mxu0 0
      %3780 = vmatpush1.bf16.msra.mxu0 0
      %3781 = vmatprep.subr.bf16.mxu0 0
      %3782 = vmatpush1.bf16.msra.mxu0 0
      %3783 = vmatprep.subr.bf16.mxu0 0
      %3784 = vmatpush1.bf16.msra.mxu0 0
      %3785 = vmatprep.mubr.bf16.mxu0 0
      %3786 = vmatmul.mubr.bf16.gmra.mrb[0].mxu0 %v3751
      %v3787 = vpop.f32.mrb[0].mxu0
      %v3788 = vadd.f32 0.0, %v3787
      %v3789 = vpop.f32.mrb[0].mxu0
      %v3790 = vpop.f32.mrb[0].mxu0
      %v3791 = vpop.f32.mrb[0].mxu0
      %3792 = vdwg.mxu0
      %v3794 = vrot.slane %v3788, 5
      %v3796 = vadd.f32 %v3498, %v3794
      %v3797 = vxor.u32 %v3796, 2147483648
      %v3798 = vmul.f32 %v3797, 1.442695
      %v3799 = vpow.pop %v3798
      %v3800 = vadd.f32 %v3799, 1.0
      %v3801 = vrcp.pop %v3800
      %v3802 = vmul.f32 1.0, %v3801
      %v3803 = vtanh.pop %v3796
      %v3805 = vrot.slane %v3738, 7
      %v3807 = vmul.f32 %v3802, %v3805
      %3809 = vrot.lane.b32.xlu0 %v3803, 64
      %v3810 = vpop.permute.xlu0 %3809
      %v3812 = vmul.f32 %v3802, %v3810
      %3814 = vrot.lane.b32.xlu0 %v3812, 32
      %v3815 = vpop.permute.xlu0 %3814
      %v3817 = vadd.f32 %v3807, %v3815
      %v3818 = vtanh.pop %v3817
      %3820 = vrot.lane.b32.xlu0 %v3818, 64
      %v3821 = vpop.permute.xlu0 %3820
      %v3823 = vmul.f32 %v3802, %v3821
      %v3824 = vpack.c.bf16 %v3823, %v3823
      %v3825 = vld [vmem:[%s21] sm:$0xf]
      %v3826 = vld [vmem:[%s21 + $0x4] sm:$0xf]
      %v3827 = vld [vmem:[%s21 + $0x8] sm:$0xf]
      %v3828 = vld [vmem:[%s21 + $0xc] sm:$0xf]
      %v3829 = vld [vmem:[%s22] sm:$0x1]
      %v3831 = vshrl.u32 %v3824, 16
      %v3833 = vrot.slane %v3831, 1
      %3834 = vrot.lane.b32.xlu0 %v3833, 32
      %v3835 = vpop.permute.xlu0 %3834
      %v3840 = vunpack.c.l.b16 %v3825
      %v3841 = vunpack.c.l.b16 %v3826
      %v3842 = vunpack.c.l.b16 %v3827
      %v3843 = vunpack.c.l.b16 %v3828
      %v3844 = vpack.c.b16 %v3841, %v3840
      %v3845 = vpack.c.b16 %v3843, %v3842
      %v3849 = vsel %vm831, %v3835, 0
      %3851 = vmatprep.subr.bf16.mxu0 0
      %3852 = vmatpush1.bf16.msra.mxu0 %v3844
      %3853 = vmatprep.subr.bf16.mxu0 0
      %3854 = vmatpush1.bf16.msra.mxu0 %v3845
      %3855 = vmatprep.subr.bf16.mxu0 0
      %3856 = vmatpush1.bf16.msra.mxu0 0
      %3857 = vmatprep.subr.bf16.mxu0 0
      %3858 = vmatpush1.bf16.msra.mxu0 0
      %3859 = vmatprep.subr.bf16.mxu0 0
      %3860 = vmatpush1.bf16.msra.mxu0 0
      %3861 = vmatprep.subr.bf16.mxu0 0
      %3862 = vmatpush1.bf16.msra.mxu0 0
      %3863 = vmatprep.subr.bf16.mxu0 0
      %3864 = vmatpush1.bf16.msra.mxu0 0
      %3865 = vmatprep.subr.bf16.mxu0 0
      %3866 = vmatpush1.bf16.msra.mxu0 0
      %3867 = vmatprep.subr.bf16.mxu0 0
      %3868 = vmatpush1.bf16.msra.mxu0 0
      %3869 = vmatprep.subr.bf16.mxu0 0
      %3870 = vmatpush1.bf16.msra.mxu0 0
      %3871 = vmatprep.subr.bf16.mxu0 0
      %3872 = vmatpush1.bf16.msra.mxu0 0
      %3873 = vmatprep.subr.bf16.mxu0 0
      %3874 = vmatpush1.bf16.msra.mxu0 0
      %3875 = vmatprep.subr.bf16.mxu0 0
      %3876 = vmatpush1.bf16.msra.mxu0 0
      %3877 = vmatprep.subr.bf16.mxu0 0
      %3878 = vmatpush1.bf16.msra.mxu0 0
      %3879 = vmatprep.subr.bf16.mxu0 0
      %3880 = vmatpush1.bf16.msra.mxu0 0
      %3881 = vmatprep.subr.bf16.mxu0 0
      %3882 = vmatpush1.bf16.msra.mxu0 0
      %3883 = vmatprep.mubr.bf16.mxu0 0
      %3884 = vmatmul.mubr.bf16.gmra.mrb[0].mxu0 %v3849
      %v3885 = vpop.f32.mrb[0].mxu0
      %v3886 = vadd.f32 %v3829, %v3885
      %v3887 = vpop.f32.mrb[0].mxu0
      %v3888 = vpop.f32.mrb[0].mxu0
      %v3889 = vpop.f32.mrb[0].mxu0
      %3890 = vdwg.mxu0
      %v3891 = vpack.c.bf16 %v3886, %v3886
      %v3892 = vld [vmem:[%s23] sm:$0xf]
      %v3893 = vld [vmem:[%s23 + $0x4] sm:$0xf]
      %v3894 = vld [vmem:[%s23 + $0x8] sm:$0xf]
      %v3895 = vld [vmem:[%s23 + $0xc] sm:$0xf]
      %v3896 = vld [vmem:[%s23 + $0x10] sm:$0xf]
      %v3897 = vld [vmem:[%s23 + $0x14] sm:$0xf]
      %v3898 = vld [vmem:[%s23 + $0x18] sm:$0xf]
      %v3899 = vld [vmem:[%s23 + $0x1c] sm:$0xf]
      %v3900 = vld [vmem:[%s23 + $0x20] sm:$0xf]
      %v3901 = vld [vmem:[%s23 + $0x24] sm:$0xf]
      %v3902 = vld [vmem:[%s23 + $0x28] sm:$0xf]
      %v3903 = vld [vmem:[%s23 + $0x2c] sm:$0xf]
      %v3904 = vld [vmem:[%s23 + $0x30] sm:$0x3]
      %v3905 = vld [vmem:[#allocation3] sm:$0x1]
      %v3919 = vunpack.c.l.b16 %v3892
      %v3920 = vunpack.c.l.b16 %v3893
      %v3921 = vunpack.c.l.b16 %v3894
      %v3922 = vunpack.c.l.b16 %v3895
      %v3923 = vunpack.c.l.b16 %v3896
      %v3924 = vunpack.c.l.b16 %v3897
      %v3925 = vunpack.c.l.b16 %v3898
      %v3926 = vunpack.c.l.b16 %v3899
      %v3927 = vunpack.c.l.b16 %v3900
      %v3928 = vunpack.c.l.b16 %v3901
      %v3929 = vunpack.c.l.b16 %v3902
      %v3930 = vunpack.c.l.b16 %v3903
      %v3931 = vunpack.c.l.b16 %v3904
      %v3932 = vpack.c.b16 %v3920, %v3919
      %v3933 = vpack.c.b16 %v3922, %v3921
      %v3934 = vpack.c.b16 %v3924, %v3923
      %v3935 = vpack.c.b16 %v3926, %v3925
      %v3936 = vpack.c.b16 %v3928, %v3927
      %v3937 = vpack.c.b16 %v3930, %v3929
      %v3938 = vpack.c.b16 %v3931, %v3931
      %vm3945 = vcmask 818176
      %v3947 = vsel %vm3945, %v3891, 0
      %vm3949 = vcmask 1041408
      %v3951 = vsel %vm3949, %v3938, 0
      %3953 = vmatprep.subr.bf16.mxu0 0
      %3954 = vmatpush1.bf16.msra.mxu0 %v3932
      %3955 = vmatprep.subr.bf16.mxu0 0
      %3956 = vmatpush1.bf16.msra.mxu0 %v3933
      %3957 = vmatprep.subr.bf16.mxu0 0
      %3958 = vmatpush1.bf16.msra.mxu0 %v3934
      %3959 = vmatprep.subr.bf16.mxu0 0
      %3960 = vmatpush1.bf16.msra.mxu0 %v3935
      %3961 = vmatprep.subr.bf16.mxu0 0
      %3962 = vmatpush1.bf16.msra.mxu0 %v3936
      %3963 = vmatprep.subr.bf16.mxu0 0
      %3964 = vmatpush1.bf16.msra.mxu0 %v3937
      %3965 = vmatprep.subr.bf16.mxu0 0
      %3966 = vmatpush1.bf16.msra.mxu0 %v3951
      %3967 = vmatprep.subr.bf16.mxu0 0
      %3968 = vmatpush1.bf16.msra.mxu0 0
      %3969 = vmatprep.subr.bf16.mxu0 0
      %3970 = vmatpush1.bf16.msra.mxu0 0
      %3971 = vmatprep.subr.bf16.mxu0 0
      %3972 = vmatpush1.bf16.msra.mxu0 0
      %3973 = vmatprep.subr.bf16.mxu0 0
      %3974 = vmatpush1.bf16.msra.mxu0 0
      %3975 = vmatprep.subr.bf16.mxu0 0
      %3976 = vmatpush1.bf16.msra.mxu0 0
      %3977 = vmatprep.subr.bf16.mxu0 0
      %3978 = vmatpush1.bf16.msra.mxu0 0
      %3979 = vmatprep.subr.bf16.mxu0 0
      %3980 = vmatpush1.bf16.msra.mxu0 0
      %3981 = vmatprep.subr.bf16.mxu0 0
      %3982 = vmatpush1.bf16.msra.mxu0 0
      %3983 = vmatprep.subr.bf16.mxu0 0
      %3984 = vmatpush1.bf16.msra.mxu0 0
      %3985 = vmatprep.mubr.bf16.mxu0 0
      %3986 = vmatmul.mubr.bf16.gmra.mrb[0].mxu0 %v3947
      %v3987 = vpop.f32.mrb[0].mxu0
      %v3988 = vadd.f32 %v3905, %v3987
      %v3989 = vpop.f32.mrb[0].mxu0
      %v3990 = vpop.f32.mrb[0].mxu0
      %v3991 = vpop.f32.mrb[0].mxu0
      %3992 = vdwg.mxu0
      %v3993 = vxor.u32 %v3988, 2147483648
      %v3994 = vmul.f32 %v3993, 1.442695
      %v3995 = vpow.pop %v3994
      %v3996 = vadd.f32 %v3995, 1.0
      %v3997 = vrcp.pop %v3996
      %v3998 = vmul.f32 1.0, %v3997
      %vm3999 = vcmask 0
      %4000 = vst.msk [vmem:[%s823] sm:$0x1] %vm3999, %v3998
      %p4001 = scmp.lt.s32.totalorder %s42, 1
      %s4002 = scalar_select %p4001, %s42, 1
      %s4003 = smul.addr %s4002, 4
      %s4004 = scalar_lea.vmem %s25, %s4003
      %p4005 = scmp.lt.s32.totalorder %s42, 1
      %s4006 = scalar_select %p4005, %s42, 1
      %s4007 = scalar_lea.vmem %s26, %s4006
      // Predicated region
      $region121: #{_lambda_.1} parent=119 // pred_check
        %p4008 = pneg %p595
      $region122: #{_lambda_.1} parent=119 // pred_check_branch
        %4010 = sbr.rel (%p4008) target = $region124
      $region123: #{_lambda_.1} parent=119 // pred_region
        _
      $region124: #{_lambda_.1} parent=119 // pred_fallthru
        _
      // Predicated region
      $region125: #{_lambda_.1} parent=119 // pred_check
        %p4011 = pneg %p621
      $region126: #{_lambda_.1} parent=119 // pred_check_branch
        %4013 = sbr.rel (%p4011) target = $region128
      $region127: #{_lambda_.1} parent=119 // pred_region
        _
      $region128: #{_lambda_.1} parent=119 // pred_fallthru
        _
    $region120: #{_lambda_.1} parent=5 // pred_fallthru
      _
    %p4014 = scmp.le.s32.totalorder 2, %s37
    // Predicated region
    $region129: #{_lambda_.1} parent=5 // pred_check
      %p4015 = pneg %p4014
    $region130: #{_lambda_.1} parent=5 // pred_check_branch
      %4017 = sbr.rel (%p4015) target = $region132
    $region131: #{_lambda_.1} parent=5 // pred_region
      %s4018 = ssub.s32 %s37, 2
      // Predicated region
      $region133: #{_lambda_.1} parent=131 // pred_check
        %p4019 = pneg %p601
      $region134: #{_lambda_.1} parent=131 // pred_check_branch
        %4021 = sbr.rel (%p4019) target = $region136
      $region135: #{_lambda_.1} parent=131 // pred_region
        %p4022 = scmp.lt.s32.totalorder %s43, 1
        %s4023 = scalar_select %p4022, %s43, 1
        %s4024 = smul.addr %s4023, 4
        %s4025 = scalar_lea.vmem %s25, %s4024
      $region136: #{_lambda_.1} parent=131 // pred_fallthru
        _
      // Predicated region
      $region137: #{_lambda_.1} parent=131 // pred_check
        %p4026 = pneg %p627
      $region138: #{_lambda_.1} parent=131 // pred_check_branch
        %4028 = sbr.rel (%p4026) target = $region140
      $region139: #{_lambda_.1} parent=131 // pred_region
        %p4029 = scmp.lt.s32.totalorder %s43, 1
        %s4030 = scalar_select %p4029, %s43, 1
        %s4031 = scalar_lea.vmem %s26, %s4030
      $region140: #{_lambda_.1} parent=131 // pred_fallthru
        _
    $region132: #{_lambda_.1} parent=5 // pred_fallthru
      _
  $region6: #{_lambda_.1} parent=0 // loop_footer
    %s41 = sadd.s32 1, %s37
  $region7: #{_lambda_.1} parent=0 // loop_footer_branch
    %36 = sbr.rel target = $region3
  $region8: #{_lambda_.1} parent=0 // loop_exit
    _

</llo_original>
